<compile_context>
chip_gen: v5e
topology: v5e:2x2
jax: 0.10.0
libtpu: 0.0.40
codegen_flags: <defaults>
</compile_context>

<pallas_src>
import math
from functools import partial

import jax
import jax.numpy as jnp
from jax.experimental import pallas as pl
from jax.experimental.pallas import tpu as pltpu

BN_EPS = 1e-5
_VMEM_LIMIT = 64 * 1024 * 1024  # fits v5e/v6e/v7x physical VMEM, above default scoped limit


def _round_up(x, m):
    return (x + m - 1) // m * m


def _cdiv(a, b):
    return (a + b - 1) // b


def _pick_tm(m):
    """Largest row-tile (multiple of 8, <= 1024) that divides m; else full m."""
    for t in (1024, 512, 256, 128, 64, 32, 16, 8):
        if m % t == 0:
            return t
    return m


# ---------------------------------------------------------------------------
# Pallas kernels
# ---------------------------------------------------------------------------

def _conv_bn_kernel(x_ref, w_ref, isc_ref, ish_ref, y_ref, st_ref, *,
                    kh, kw, stride, Ho, Wo, Wop, phase_pos, in_act):
    """Fused conv (tap-loop, bf16 MXU matmuls, f32 acc) + per-channel sum/sumsq.

    x_ref : (n_phases, Hs, Ws, Cin) f32 block -- phase-decomposed padded input
    w_ref : (kh*kw, Cin, TN)        bf16 block
    isc/ish: (1, Cin) f32 -- optional folded BN affine of the *previous* layer
    y_ref : (1, Ho, Wo, TN) f32 -- raw conv output
    st_ref: (1, 2, TN)      f32 -- row 0 = sum, row 1 = sum of squares
    """
    cin = w_ref.shape[1]
    tn = w_ref.shape[2]
    acc = jnp.zeros((Ho * Wop, tn), jnp.float32)
    t = 0
    for di in range(kh):
        for dj in range(kw):
            p = phase_pos[(di % stride, dj % stride)]
            qi = di // stride
            qj = dj // stride
            win = x_ref[p, qi:qi + Ho, qj:qj + Wop, :]          # (Ho, Wop, Cin) f32
            if in_act:
                sc = isc_ref[...].reshape(1, 1, cin)
                sh = ish_ref[...].reshape(1, 1, cin)
                win = jnp.maximum(win * sc + sh, 0.0)           # previous BN + ReLU, folded
            lhs = win.reshape(Ho * Wop, cin).astype(jnp.bfloat16)
            acc = acc + jnp.dot(lhs, w_ref[t], preferred_element_type=jnp.float32)
            t += 1
    y = acc.reshape(Ho, Wop, tn)[:, :Wo, :]                     # strip lane-alignment columns
    y_ref[0] = y
    csum = jnp.sum(jnp.sum(y, axis=0), axis=0, keepdims=True)   # (1, tn)
    csq = jnp.sum(jnp.sum(y * y, axis=0), axis=0, keepdims=True)
    st_ref[0] = jnp.concatenate([csum, csq], axis=0)            # (2, tn)


def _maxpool_kernel(x_ref, o_ref, *, Ho, Wo, phase_pos):
    """3x3 / stride-2 / pad-1 max pooling over a phase-decomposed (>=0) input."""
    out = None
    for di in range(3):
        for dj in range(3):
            p = phase_pos[(di % 2, dj % 2)]
            qi = di // 2
            qj = dj // 2
            win = x_ref[p, qi:qi + Ho, qj:qj + Wo, :]
            out = win if out is None else jnp.maximum(out, win)
    o_ref[0] = out


def _affine_act_kernel(x_ref, sc_ref, sh_ref, o_ref, *, relu):
    y = x_ref[...] * sc_ref[...] + sh_ref[...]
    if relu:
        y = jnp.maximum(y, 0.0)
    o_ref[...] = y


def _bn_add_relu_kernel(y_ref, sc_ref, sh_ref, r_ref, rsc_ref, rsh_ref, o_ref):
    a = y_ref[...] * sc_ref[...] + sh_ref[...]
    b = r_ref[...] * rsc_ref[...] + rsh_ref[...]
    o_ref[...] = jnp.maximum(a + b, 0.0)


# ---------------------------------------------------------------------------
# Host-side wrappers
# ---------------------------------------------------------------------------

def _phase_decompose(x, kh, kw, stride, padding, Ho, Wo_al, pad_value=0.0):
    """Zero-pad NHWC input and split it into stride-phase planes.

    Returns xph [N*n_phases, Hs, Ws, C], phase_pos, n_phases, Hs, Ws such that
    phase (pi, pj) element (i, j) == padded_x[stride*i + pi, stride*j + pj].
    Total HBM footprint ~= one copy of the (padded) input -- no im2col blowup.
    """
    N, H, W, C = x.shape
    s = stride
    Hs = Ho + _cdiv(kh, s) - 1
    Ws = Wo_al + _cdiv(kw, s) - 1
    Ht, Wt = s * Hs, s * Ws
    xp = jnp.pad(x, ((0, 0),
                     (padding, max(0, Ht - H - padding)),
                     (padding, max(0, Wt - W - padding)),
                     (0, 0)), constant_values=pad_value)
    xp = xp[:, :Ht, :Wt, :]
    phase_list = sorted({(di % s, dj % s) for di in range(kh) for dj in range(kw)})
    phase_pos = {ph: i for i, ph in enumerate(phase_list)}
    if s == 1:
        xph = xp                                               # single phase
    else:
        xr = xp.reshape(N, Hs, s, Ws, s, C)
        xph = jnp.stack([xr[:, :, pi, :, pj, :] for (pi, pj) in phase_list], axis=1)
        xph = xph.reshape(N * len(phase_list), Hs, Ws, C)
    return xph, phase_pos, len(phase_list), Hs, Ws


def conv2d_bn_stats(x, w, stride, padding, in_scale=None, in_shift=None):
    """Conv2d(bias=False) with optional folded input affine+ReLU (previous BN).

    Returns raw conv output y (N, Ho, Wo, Cout) plus batch mean / biased var per
    channel (computed in-kernel, training-mode BatchNorm statistics).
    """
    N, H, W, Cin = x.shape
    Cout, Cin_w, kh, kw = w.shape
    assert Cin_w == Cin
    s = stride
    Ho = (H + 2 * padding - kh) // s + 1
    Wo = (W + 2 * padding - kw) // s + 1
    Wop = Wo if Wo % 8 == 0 else _round_up(Wo, 8)               # sublane-friendly row width
    in_act = in_scale is not None
    if in_act:
        assert kh == 1 and kw == 1 and padding == 0             # exact only without padding

    xph, phase_pos, n_ph, Hs, Ws = _phase_decompose(x, kh, kw, s, padding, Ho, Wop)
    wmat = jnp.transpose(w, (2, 3, 1, 0)).reshape(kh * kw, Cin, Cout).astype(jnp.bfloat16)
    isc = (in_scale if in_act else jnp.ones((Cin,), jnp.float32)).reshape(1, Cin).astype(jnp.float32)
    ish = (in_shift if in_act else jnp.zeros((Cin,), jnp.float32)).reshape(1, Cin).astype(jnp.float32)

    TN = 128 if Cout % 128 == 0 else Cout
    nct = Cout // TN
    kern = partial(_conv_bn_kernel, kh=kh, kw=kw, stride=s, Ho=Ho, Wo=Wo, Wop=Wop,
                   phase_pos=phase_pos, in_act=in_act)
    y, stats = pl.pallas_call(
        kern,
        out_shape=(jax.ShapeDtypeStruct((N, Ho, Wo, Cout), jnp.float32),
                   jax.ShapeDtypeStruct((N, 2, Cout), jnp.float32)),
        grid=(N, nct),
        in_specs=[pl.BlockSpec((n_ph, Hs, Ws, Cin), lambda n, c: (n, 0, 0, 0)),
                  pl.BlockSpec((kh * kw, Cin, TN), lambda n, c: (0, 0, c)),
                  pl.BlockSpec((1, Cin), lambda n, c: (0, 0)),
                  pl.BlockSpec((1, Cin), lambda n, c: (0, 0))],
        out_specs=(pl.BlockSpec((1, Ho, Wo, TN), lambda n, c: (n, 0, 0, c)),
                   pl.BlockSpec((1, 2, TN), lambda n, c: (n, 0, c))),
        compiler_params=pltpu.CompilerParams(
            dimension_semantics=("parallel", "parallel"),
            vmem_limit_bytes=_VMEM_LIMIT),
    )(xph, wmat, isc, ish)

    cnt = float(N * Ho * Wo)
    mean = jnp.sum(stats[:, 0, :], axis=0) / cnt
    var = jnp.maximum(jnp.sum(stats[:, 1, :], axis=0) / cnt - mean * mean, 0.0)
    return y, mean, var


def bn_affine(gamma, beta, mean, var):
    scale = gamma / jnp.sqrt(var + BN_EPS)
    shift = beta - mean * scale
    return scale, shift


def affine_act(x, scale, shift, relu=True):
    """y = x * scale + shift (per channel), optional ReLU.  Tiled over rows."""
    N, H, W, C = x.shape
    M = N * H * W
    TM = _pick_tm(M)
    out = pl.pallas_call(
        partial(_affine_act_kernel, relu=relu),
        out_shape=jax.ShapeDtypeStruct((M, C), jnp.float32),
        grid=(M // TM,),
        in_specs=[pl.BlockSpec((TM, C), lambda i: (i, 0)),
                  pl.BlockSpec((1, C), lambda i: (0, 0)),
                  pl.BlockSpec((1, C), lambda i: (0, 0))],
        out_specs=pl.BlockSpec((TM, C), lambda i: (i, 0)),
        compiler_params=pltpu.CompilerParams(dimension_semantics=("parallel",),
                                             vmem_limit_bytes=_VMEM_LIMIT),
    )(x.reshape(M, C), scale.reshape(1, C), shift.reshape(1, C))
    return out.reshape(N, H, W, C)


def bn_add_relu(y, sc, sh, res, rsc, rsh):
    """relu( (y*sc+sh) + (res*rsc+rsh) ) -- fused bottleneck tail.  Tiled over rows."""
    N, H, W, C = y.shape
    M = N * H * W
    TM = _pick_tm(M)
    out = pl.pallas_call(
        _bn_add_relu_kernel,
        out_shape=jax.ShapeDtypeStruct((M, C), jnp.float32),
        grid=(M // TM,),
        in_specs=[pl.BlockSpec((TM, C), lambda i: (i, 0)),
                  pl.BlockSpec((1, C), lambda i: (0, 0)),
                  pl.BlockSpec((1, C), lambda i: (0, 0)),
                  pl.BlockSpec((TM, C), lambda i: (i, 0)),
                  pl.BlockSpec((1, C), lambda i: (0, 0)),
                  pl.BlockSpec((1, C), lambda i: (0, 0))],
        out_specs=pl.BlockSpec((TM, C), lambda i: (i, 0)),
        compiler_params=pltpu.CompilerParams(dimension_semantics=("parallel",),
                                             vmem_limit_bytes=_VMEM_LIMIT),
    )(y.reshape(M, C), sc.reshape(1, C), sh.reshape(1, C),
      res.reshape(M, C), rsc.reshape(1, C), rsh.reshape(1, C))
    return out.reshape(N, H, W, C)


def maxpool_3x3_s2_p1(x):
    """MaxPool2d(kernel=3, stride=2, padding=1) on a post-ReLU (>=0) NHWC tensor."""
    N, H, W, C = x.shape
    Ho = (H + 2 - 3) // 2 + 1
    Wo = (W + 2 - 3) // 2 + 1
    # x >= 0 (post-ReLU), so zero padding is equivalent to -inf padding for the max.
    xph, phase_pos, n_ph, Hs, Ws = _phase_decompose(x, 3, 3, 2, 1, Ho, Wo, pad_value=0.0)
    out = pl.pallas_call(
        partial(_maxpool_kernel, Ho=Ho, Wo=Wo, phase_pos=phase_pos),
        out_shape=jax.ShapeDtypeStruct((N, Ho, Wo, C), jnp.float32),
        grid=(N,),
        in_specs=[pl.BlockSpec((n_ph, Hs, Ws, C), lambda n: (n, 0, 0, 0))],
        out_specs=pl.BlockSpec((1, Ho, Wo, C), lambda n: (n, 0, 0, 0)),
        compiler_params=pltpu.CompilerParams(dimension_semantics=("parallel",),
                                             vmem_limit_bytes=_VMEM_LIMIT),
    )(xph)
    return out


# ---------------------------------------------------------------------------
# Parameter init (deterministic; mirrors nn.init in the PyTorch module)
# ---------------------------------------------------------------------------

def _conv_w(key, cout, cin, kh, kw):
    fan_out = cout * kh * kw                                    # kaiming_normal_, fan_out, relu
    std = math.sqrt(2.0 / fan_out)
    return jax.random.normal(key, (cout, cin, kh, kw), jnp.float32) * std


def _init_bottleneck(key, inplanes, planes, stride, downsample):
    width = planes                                              # groups=1, base_width=64
    expansion = 4
    k = jax.random.split(key, 4)
    p = {
        'stride': stride,
        'conv1_w': _conv_w(k[0], width, inplanes, 1, 1),
        'bn1_g': jnp.ones((width,), jnp.float32), 'bn1_b': jnp.zeros((width,), jnp.float32),
        'conv2_w': _conv_w(k[1], width, width, 3, 3),
        'bn2_g': jnp.ones((width,), jnp.float32), 'bn2_b': jnp.zeros((width,), jnp.float32),
        'conv3_w': _conv_w(k[2], planes * expansion, width, 1, 1),
        'bn3_g': jnp.ones((planes * expansion,), jnp.float32),
        'bn3_b': jnp.zeros((planes * expansion,), jnp.float32),
    }
    if downsample:
        p['ds_w'] = _conv_w(k[3], planes * expansion, inplanes, 1, 1)
        p['ds_g'] = jnp.ones((planes * expansion,), jnp.float32)
        p['ds_b'] = jnp.zeros((planes * expansion,), jnp.float32)
    return p


def init_params(key):
    keys = jax.random.split(key, 8)
    params = {
        'stem_w': _conv_w(keys[0], 64, 3, 7, 7),
        'stem_g': jnp.ones((64,), jnp.float32),
        'stem_b': jnp.zeros((64,), jnp.float32),
    }
    # layer1: _make_layer(64, 3), inplanes 64 -> 256 (first block downsamples channels, stride 1)
    params['layer1'] = [
        _init_bottleneck(keys[1], 64, 64, 1, True),
        _init_bottleneck(keys[2], 256, 64, 1, False),
        _init_bottleneck(keys[3], 256, 64, 1, False),
    ]
    # layer2: _make_layer(128, 4, stride=2), inplanes 256 -> 512
    params['layer2'] = [
        _init_bottleneck(keys[4], 256, 128, 2, True),
        _init_bottleneck(keys[5], 512, 128, 1, False),
        _init_bottleneck(keys[6], 512, 128, 1, False),
        _init_bottleneck(keys[7], 512, 128, 1, False),
    ]
    return params


# ---------------------------------------------------------------------------
# Forward pass
# ---------------------------------------------------------------------------

def bottleneck_forward(x, p):
    # conv1 (1x1) + BN stats fused
    y1, m1, v1 = conv2d_bn_stats(x, p['conv1_w'], stride=1, padding=0)
    s1, b1 = bn_affine(p['bn1_g'], p['bn1_b'], m1, v1)
    a1 = affine_act(y1, s1, b1, relu=True)          # materialized: conv2 needs zero-padded post-act
    # conv2 (3x3, stride) + BN stats fused
    y2, m2, v2 = conv2d_bn_stats(a1, p['conv2_w'], stride=p['stride'], padding=1)
    s2, b2 = bn_affine(p['bn2_g'], p['bn2_b'], m2, v2)
    # conv3 (1x1): BN2 affine + ReLU folded into the conv's input read
    y3, m3, v3 = conv2d_bn_stats(y2, p['conv3_w'], stride=1, padding=0,
                                 in_scale=s2, in_shift=b2)
    s3, b3 = bn_affine(p['bn3_g'], p['bn3_b'], m3, v3)
    if 'ds_w' in p:
        yd, md, vd = conv2d_bn_stats(x, p['ds_w'], stride=p['stride'], padding=0)
        sd, bd = bn_affine(p['ds_g'], p['ds_b'], md, vd)
        res, rsc, rsh = yd, sd, bd
    else:
        C = x.shape[-1]
        res = x
        rsc = jnp.ones((C,), jnp.float32)
        rsh = jnp.zeros((C,), jnp.float32)
    # fused: relu( bn3(y3) + (bn_ds(yd) | identity) )
    return bn_add_relu(y3, s3, b3, res, rsc, rsh)


def resnet_shard1_forward(x_nchw, params):
    x = jnp.transpose(x_nchw, (0, 2, 3, 1)).astype(jnp.float32)      # NCHW -> NHWC
    y0, m0, v0 = conv2d_bn_stats(x, params['stem_w'], stride=2, padding=3)   # 7x7/2 conv + stats
    s0, b0 = bn_affine(params['stem_g'], params['stem_b'], m0, v0)
    a0 = affine_act(y0, s0, b0, relu=True)                           # stem BN + ReLU
    x = maxpool_3x3_s2_p1(a0)                                        # MaxPool 3x3/2 pad 1
    for blk in params['layer1']:
        x = bottleneck_forward(x, blk)
    for blk in params['layer2']:
        x = bottleneck_forward(x, blk)
    return jnp.transpose(x, (0, 3, 1, 2))                            # NHWC -> NCHW


if __name__ == "__main__":
    key = jax.random.PRNGKey(0)
    pkey, xkey = jax.random.split(key)
    params = init_params(pkey)
    x = jax.random.normal(xkey, (2, 3, 16, 16), jnp.float32)         # small NCHW input (C=3 required)
    out = resnet_shard1_forward(x, params)
    out = jax.block_until_ready(out)
    assert out.shape == (2, 512, 2, 2), out.shape
    assert bool(jnp.all(jnp.isfinite(out)))
    print("KERNEL_OK")
</pallas_src>

<mosaic_0001>
module attributes {stable_mosaic.version = 11 : i64} {
  func.func @_conv_bn_kernel(%arg0: i32, %arg1: i32, %arg2: memref<4x11x11x3xf32, #tpu.memory_space<vmem>>, %arg3: memref<49x3x64xbf16, #tpu.memory_space<vmem>>, %arg4: memref<1x3xf32, #tpu.memory_space<vmem>>, %arg5: memref<1x3xf32, #tpu.memory_space<vmem>>, %arg6: memref<1x8x8x64xf32, #tpu.memory_space<vmem>>, %arg7: memref<1x2x64xf32, #tpu.memory_space<vmem>>) attributes {dimension_semantics = [#tpu.dimension_semantics<parallel>, #tpu.dimension_semantics<parallel>], iteration_bounds = array<i64: 2, 1>, scalar_prefetch = 0 : i64, scratch_operands = 0 : i64, tpu.core_type = #tpu.core_type<tc>, window_params = [{transform_indices = @transform_0, window_bounds = array<i64: 4, 11, 11, 3>}, {transform_indices = @transform_1, window_bounds = array<i64: 49, 3, 64>}, {pipeline_mode = #tpu.pipeline_mode<synchronous>, transform_indices = @transform_2, window_bounds = array<i64: 1, 3>}, {pipeline_mode = #tpu.pipeline_mode<synchronous>, transform_indices = @transform_3, window_bounds = array<i64: 1, 3>}, {transform_indices = @transform_4, window_bounds = array<i64: 1, 8, 8, 64>}, {transform_indices = @transform_5, window_bounds = array<i64: 1, 2, 64>}]} {
    %cst = arith.constant 0.000000e+00 : f32
    %0 = vector.broadcast %cst : f32 to vector<64x64xf32>
    %c0 = arith.constant 0 : index
    %c0_0 = arith.constant 0 : index
    %c0_1 = arith.constant 0 : index
    %c0_2 = arith.constant 0 : index
    %1 = vector.load %arg2[%c0, %c0_0, %c0_1, %c0_2] : memref<4x11x11x3xf32, #tpu.memory_space<vmem>>, vector<1x8x8x3xf32>
    %2 = vector.shape_cast %1 : vector<1x8x8x3xf32> to vector<8x8x3xf32>
    %3 = vector.shape_cast %2 : vector<8x8x3xf32> to vector<64x3xf32>
    %4 = arith.truncf %3 : vector<64x3xf32> to vector<64x3xbf16>
    %c0_3 = arith.constant 0 : index
    %c0_4 = arith.constant 0 : index
    %c0_5 = arith.constant 0 : index
    %5 = vector.load %arg3[%c0_3, %c0_4, %c0_5] : memref<49x3x64xbf16, #tpu.memory_space<vmem>>, vector<1x3x64xbf16>
    %6 = vector.shape_cast %5 : vector<1x3x64xbf16> to vector<3x64xbf16>
    %cst_6 = arith.constant dense<0.000000e+00> : vector<64x64xf32>
    %7 = tpu.matmul %4, %6, %cst_6 {dimension_numbers = #tpu.dot_dimension_numbers<[1], [0], [0], [1], [0, 0, 1, 1], [], []>} : vector<64x3xbf16>, vector<3x64xbf16>, vector<64x64xf32> -> vector<64x64xf32>
    %8 = arith.addf %0, %7 : vector<64x64xf32>
    %c1 = arith.constant 1 : index
    %c0_7 = arith.constant 0 : index
    %c0_8 = arith.constant 0 : index
    %c0_9 = arith.constant 0 : index
    %9 = vector.load %arg2[%c1, %c0_7, %c0_8, %c0_9] : memref<4x11x11x3xf32, #tpu.memory_space<vmem>>, vector<1x8x8x3xf32>
    %10 = vector.shape_cast %9 : vector<1x8x8x3xf32> to vector<8x8x3xf32>
    %11 = vector.shape_cast %10 : vector<8x8x3xf32> to vector<64x3xf32>
    %12 = arith.truncf %11 : vector<64x3xf32> to vector<64x3xbf16>
    %c1_10 = arith.constant 1 : index
    %c0_11 = arith.constant 0 : index
    %c0_12 = arith.constant 0 : index
    %13 = vector.load %arg3[%c1_10, %c0_11, %c0_12] : memref<49x3x64xbf16, #tpu.memory_space<vmem>>, vector<1x3x64xbf16>
    %14 = vector.shape_cast %13 : vector<1x3x64xbf16> to vector<3x64xbf16>
    %cst_13 = arith.constant dense<0.000000e+00> : vector<64x64xf32>
    %15 = tpu.matmul %12, %14, %cst_13 {dimension_numbers = #tpu.dot_dimension_numbers<[1], [0], [0], [1], [0, 0, 1, 1], [], []>} : vector<64x3xbf16>, vector<3x64xbf16>, vector<64x64xf32> -> vector<64x64xf32>
    %16 = arith.addf %8, %15 : vector<64x64xf32>
    %c0_14 = arith.constant 0 : index
    %c0_15 = arith.constant 0 : index
    %c1_16 = arith.constant 1 : index
    %c0_17 = arith.constant 0 : index
    %17 = vector.load %arg2[%c0_14, %c0_15, %c1_16, %c0_17] : memref<4x11x11x3xf32, #tpu.memory_space<vmem>>, vector<1x8x8x3xf32>
    %18 = vector.shape_cast %17 : vector<1x8x8x3xf32> to vector<8x8x3xf32>
    %19 = vector.shape_cast %18 : vector<8x8x3xf32> to vector<64x3xf32>
    %20 = arith.truncf %19 : vector<64x3xf32> to vector<64x3xbf16>
    %c2 = arith.constant 2 : index
    %c0_18 = arith.constant 0 : index
    %c0_19 = arith.constant 0 : index
    %21 = vector.load %arg3[%c2, %c0_18, %c0_19] : memref<49x3x64xbf16, #tpu.memory_space<vmem>>, vector<1x3x64xbf16>
    %22 = vector.shape_cast %21 : vector<1x3x64xbf16> to vector<3x64xbf16>
    %cst_20 = arith.constant dense<0.000000e+00> : vector<64x64xf32>
    %23 = tpu.matmul %20, %22, %cst_20 {dimension_numbers = #tpu.dot_dimension_numbers<[1], [0], [0], [1], [0, 0, 1, 1], [], []>} : vector<64x3xbf16>, vector<3x64xbf16>, vector<64x64xf32> -> vector<64x64xf32>
    %24 = arith.addf %16, %23 : vector<64x64xf32>
    %c1_21 = arith.constant 1 : index
    %c0_22 = arith.constant 0 : index
    %c1_23 = arith.constant 1 : index
    %c0_24 = arith.constant 0 : index
    %25 = vector.load %arg2[%c1_21, %c0_22, %c1_23, %c0_24] : memref<4x11x11x3xf32, #tpu.memory_space<vmem>>, vector<1x8x8x3xf32>
    %26 = vector.shape_cast %25 : vector<1x8x8x3xf32> to vector<8x8x3xf32>
    %27 = vector.shape_cast %26 : vector<8x8x3xf32> to vector<64x3xf32>
    %28 = arith.truncf %27 : vector<64x3xf32> to vector<64x3xbf16>
    %c3 = arith.constant 3 : index
    %c0_25 = arith.constant 0 : index
    %c0_26 = arith.constant 0 : index
    %29 = vector.load %arg3[%c3, %c0_25, %c0_26] : memref<49x3x64xbf16, #tpu.memory_space<vmem>>, vector<1x3x64xbf16>
    %30 = vector.shape_cast %29 : vector<1x3x64xbf16> to vector<3x64xbf16>
    %cst_27 = arith.constant dense<0.000000e+00> : vector<64x64xf32>
    %31 = tpu.matmul %28, %30, %cst_27 {dimension_numbers = #tpu.dot_dimension_numbers<[1], [0], [0], [1], [0, 0, 1, 1], [], []>} : vector<64x3xbf16>, vector<3x64xbf16>, vector<64x64xf32> -> vector<64x64xf32>
    %32 = arith.addf %24, %31 : vector<64x64xf32>
    %c0_28 = arith.constant 0 : index
    %c0_29 = arith.constant 0 : index
    %c2_30 = arith.constant 2 : index
    %c0_31 = arith.constant 0 : index
    %33 = vector.load %arg2[%c0_28, %c0_29, %c2_30, %c0_31] : memref<4x11x11x3xf32, #tpu.memory_space<vmem>>, vector<1x8x8x3xf32>
    %34 = vector.shape_cast %33 : vector<1x8x8x3xf32> to vector<8x8x3xf32>
    %35 = vector.shape_cast %34 : vector<8x8x3xf32> to vector<64x3xf32>
    %36 = arith.truncf %35 : vector<64x3xf32> to vector<64x3xbf16>
    %c4 = arith.constant 4 : index
    %c0_32 = arith.constant 0 : index
    %c0_33 = arith.constant 0 : index
    %37 = vector.load %arg3[%c4, %c0_32, %c0_33] : memref<49x3x64xbf16, #tpu.memory_space<vmem>>, vector<1x3x64xbf16>
    %38 = vector.shape_cast %37 : vector<1x3x64xbf16> to vector<3x64xbf16>
    %cst_34 = arith.constant dense<0.000000e+00> : vector<64x64xf32>
    %39 = tpu.matmul %36, %38, %cst_34 {dimension_numbers = #tpu.dot_dimension_numbers<[1], [0], [0], [1], [0, 0, 1, 1], [], []>} : vector<64x3xbf16>, vector<3x64xbf16>, vector<64x64xf32> -> vector<64x64xf32>
    %40 = arith.addf %32, %39 : vector<64x64xf32>
    %c1_35 = arith.constant 1 : index
    %c0_36 = arith.constant 0 : index
    %c2_37 = arith.constant 2 : index
    %c0_38 = arith.constant 0 : index
    %41 = vector.load %arg2[%c1_35, %c0_36, %c2_37, %c0_38] : memref<4x11x11x3xf32, #tpu.memory_space<vmem>>, vector<1x8x8x3xf32>
    %42 = vector.shape_cast %41 : vector<1x8x8x3xf32> to vector<8x8x3xf32>
    %43 = vector.shape_cast %42 : vector<8x8x3xf32> to vector<64x3xf32>
    %44 = arith.truncf %43 : vector<64x3xf32> to vector<64x3xbf16>
    %c5 = arith.constant 5 : index
    %c0_39 = arith.constant 0 : index
    %c0_40 = arith.constant 0 : index
    %45 = vector.load %arg3[%c5, %c0_39, %c0_40] : memref<49x3x64xbf16, #tpu.memory_space<vmem>>, vector<1x3x64xbf16>
    %46 = vector.shape_cast %45 : vector<1x3x64xbf16> to vector<3x64xbf16>
    %cst_41 = arith.constant dense<0.000000e+00> : vector<64x64xf32>
    %47 = tpu.matmul %44, %46, %cst_41 {dimension_numbers = #tpu.dot_dimension_numbers<[1], [0], [0], [1], [0, 0, 1, 1], [], []>} : vector<64x3xbf16>, vector<3x64xbf16>, vector<64x64xf32> -> vector<64x64xf32>
    %48 = arith.addf %40, %47 : vector<64x64xf32>
    %c0_42 = arith.constant 0 : index
    %c0_43 = arith.constant 0 : index
    %c3_44 = arith.constant 3 : index
    %c0_45 = arith.constant 0 : index
    %49 = vector.load %arg2[%c0_42, %c0_43, %c3_44, %c0_45] : memref<4x11x11x3xf32, #tpu.memory_space<vmem>>, vector<1x8x8x3xf32>
    %50 = vector.shape_cast %49 : vector<1x8x8x3xf32> to vector<8x8x3xf32>
    %51 = vector.shape_cast %50 : vector<8x8x3xf32> to vector<64x3xf32>
    %52 = arith.truncf %51 : vector<64x3xf32> to vector<64x3xbf16>
    %c6 = arith.constant 6 : index
    %c0_46 = arith.constant 0 : index
    %c0_47 = arith.constant 0 : index
    %53 = vector.load %arg3[%c6, %c0_46, %c0_47] : memref<49x3x64xbf16, #tpu.memory_space<vmem>>, vector<1x3x64xbf16>
    %54 = vector.shape_cast %53 : vector<1x3x64xbf16> to vector<3x64xbf16>
    %cst_48 = arith.constant dense<0.000000e+00> : vector<64x64xf32>
    %55 = tpu.matmul %52, %54, %cst_48 {dimension_numbers = #tpu.dot_dimension_numbers<[1], [0], [0], [1], [0, 0, 1, 1], [], []>} : vector<64x3xbf16>, vector<3x64xbf16>, vector<64x64xf32> -> vector<64x64xf32>
    %56 = arith.addf %48, %55 : vector<64x64xf32>
    %c2_49 = arith.constant 2 : index
    %c0_50 = arith.constant 0 : index
    %c0_51 = arith.constant 0 : index
    %c0_52 = arith.constant 0 : index
    %57 = vector.load %arg2[%c2_49, %c0_50, %c0_51, %c0_52] : memref<4x11x11x3xf32, #tpu.memory_space<vmem>>, vector<1x8x8x3xf32>
    %58 = vector.shape_cast %57 : vector<1x8x8x3xf32> to vector<8x8x3xf32>
    %59 = vector.shape_cast %58 : vector<8x8x3xf32> to vector<64x3xf32>
    %60 = arith.truncf %59 : vector<64x3xf32> to vector<64x3xbf16>
    %c7 = arith.constant 7 : index
    %c0_53 = arith.constant 0 : index
    %c0_54 = arith.constant 0 : index
    %61 = vector.load %arg3[%c7, %c0_53, %c0_54] : memref<49x3x64xbf16, #tpu.memory_space<vmem>>, vector<1x3x64xbf16>
    %62 = vector.shape_cast %61 : vector<1x3x64xbf16> to vector<3x64xbf16>
    %cst_55 = arith.constant dense<0.000000e+00> : vector<64x64xf32>
    %63 = tpu.matmul %60, %62, %cst_55 {dimension_numbers = #tpu.dot_dimension_numbers<[1], [0], [0], [1], [0, 0, 1, 1], [], []>} : vector<64x3xbf16>, vector<3x64xbf16>, vector<64x64xf32> -> vector<64x64xf32>
    %64 = arith.addf %56, %63 : vector<64x64xf32>
    %c3_56 = arith.constant 3 : index
    %c0_57 = arith.constant 0 : index
    %c0_58 = arith.constant 0 : index
    %c0_59 = arith.constant 0 : index
    %65 = vector.load %arg2[%c3_56, %c0_57, %c0_58, %c0_59] : memref<4x11x11x3xf32, #tpu.memory_space<vmem>>, vector<1x8x8x3xf32>
    %66 = vector.shape_cast %65 : vector<1x8x8x3xf32> to vector<8x8x3xf32>
    %67 = vector.shape_cast %66 : vector<8x8x3xf32> to vector<64x3xf32>
    %68 = arith.truncf %67 : vector<64x3xf32> to vector<64x3xbf16>
    %c8 = arith.constant 8 : index
    %c0_60 = arith.constant 0 : index
    %c0_61 = arith.constant 0 : index
    %69 = vector.load %arg3[%c8, %c0_60, %c0_61] : memref<49x3x64xbf16, #tpu.memory_space<vmem>>, vector<1x3x64xbf16>
    %70 = vector.shape_cast %69 : vector<1x3x64xbf16> to vector<3x64xbf16>
    %cst_62 = arith.constant dense<0.000000e+00> : vector<64x64xf32>
    %71 = tpu.matmul %68, %70, %cst_62 {dimension_numbers = #tpu.dot_dimension_numbers<[1], [0], [0], [1], [0, 0, 1, 1], [], []>} : vector<64x3xbf16>, vector<3x64xbf16>, vector<64x64xf32> -> vector<64x64xf32>
    %72 = arith.addf %64, %71 : vector<64x64xf32>
    %c2_63 = arith.constant 2 : index
    %c0_64 = arith.constant 0 : index
    %c1_65 = arith.constant 1 : index
    %c0_66 = arith.constant 0 : index
    %73 = vector.load %arg2[%c2_63, %c0_64, %c1_65, %c0_66] : memref<4x11x11x3xf32, #tpu.memory_space<vmem>>, vector<1x8x8x3xf32>
    %74 = vector.shape_cast %73 : vector<1x8x8x3xf32> to vector<8x8x3xf32>
    %75 = vector.shape_cast %74 : vector<8x8x3xf32> to vector<64x3xf32>
    %76 = arith.truncf %75 : vector<64x3xf32> to vector<64x3xbf16>
    %c9 = arith.constant 9 : index
    %c0_67 = arith.constant 0 : index
    %c0_68 = arith.constant 0 : index
    %77 = vector.load %arg3[%c9, %c0_67, %c0_68] : memref<49x3x64xbf16, #tpu.memory_space<vmem>>, vector<1x3x64xbf16>
    %78 = vector.shape_cast %77 : vector<1x3x64xbf16> to vector<3x64xbf16>
    %cst_69 = arith.constant dense<0.000000e+00> : vector<64x64xf32>
    %79 = tpu.matmul %76, %78, %cst_69 {dimension_numbers = #tpu.dot_dimension_numbers<[1], [0], [0], [1], [0, 0, 1, 1], [], []>} : vector<64x3xbf16>, vector<3x64xbf16>, vector<64x64xf32> -> vector<64x64xf32>
    %80 = arith.addf %72, %79 : vector<64x64xf32>
    %c3_70 = arith.constant 3 : index
    %c0_71 = arith.constant 0 : index
    %c1_72 = arith.constant 1 : index
    %c0_73 = arith.constant 0 : index
    %81 = vector.load %arg2[%c3_70, %c0_71, %c1_72, %c0_73] : memref<4x11x11x3xf32, #tpu.memory_space<vmem>>, vector<1x8x8x3xf32>
    %82 = vector.shape_cast %81 : vector<1x8x8x3xf32> to vector<8x8x3xf32>
    %83 = vector.shape_cast %82 : vector<8x8x3xf32> to vector<64x3xf32>
    %84 = arith.truncf %83 : vector<64x3xf32> to vector<64x3xbf16>
    %c10 = arith.constant 10 : index
    %c0_74 = arith.constant 0 : index
    %c0_75 = arith.constant 0 : index
    %85 = vector.load %arg3[%c10, %c0_74, %c0_75] : memref<49x3x64xbf16, #tpu.memory_space<vmem>>, vector<1x3x64xbf16>
    %86 = vector.shape_cast %85 : vector<1x3x64xbf16> to vector<3x64xbf16>
    %cst_76 = arith.constant dense<0.000000e+00> : vector<64x64xf32>
    %87 = tpu.matmul %84, %86, %cst_76 {dimension_numbers = #tpu.dot_dimension_numbers<[1], [0], [0], [1], [0, 0, 1, 1], [], []>} : vector<64x3xbf16>, vector<3x64xbf16>, vector<64x64xf32> -> vector<64x64xf32>
    %88 = arith.addf %80, %87 : vector<64x64xf32>
    %c2_77 = arith.constant 2 : index
    %c0_78 = arith.constant 0 : index
    %c2_79 = arith.constant 2 : index
    %c0_80 = arith.constant 0 : index
    %89 = vector.load %arg2[%c2_77, %c0_78, %c2_79, %c0_80] : memref<4x11x11x3xf32, #tpu.memory_space<vmem>>, vector<1x8x8x3xf32>
    %90 = vector.shape_cast %89 : vector<1x8x8x3xf32> to vector<8x8x3xf32>
    %91 = vector.shape_cast %90 : vector<8x8x3xf32> to vector<64x3xf32>
    %92 = arith.truncf %91 : vector<64x3xf32> to vector<64x3xbf16>
    %c11 = arith.constant 11 : index
    %c0_81 = arith.constant 0 : index
    %c0_82 = arith.constant 0 : index
    %93 = vector.load %arg3[%c11, %c0_81, %c0_82] : memref<49x3x64xbf16, #tpu.memory_space<vmem>>, vector<1x3x64xbf16>
    %94 = vector.shape_cast %93 : vector<1x3x64xbf16> to vector<3x64xbf16>
    %cst_83 = arith.constant dense<0.000000e+00> : vector<64x64xf32>
    %95 = tpu.matmul %92, %94, %cst_83 {dimension_numbers = #tpu.dot_dimension_numbers<[1], [0], [0], [1], [0, 0, 1, 1], [], []>} : vector<64x3xbf16>, vector<3x64xbf16>, vector<64x64xf32> -> vector<64x64xf32>
    %96 = arith.addf %88, %95 : vector<64x64xf32>
    %c3_84 = arith.constant 3 : index
    %c0_85 = arith.constant 0 : index
    %c2_86 = arith.constant 2 : index
    %c0_87 = arith.constant 0 : index
    %97 = vector.load %arg2[%c3_84, %c0_85, %c2_86, %c0_87] : memref<4x11x11x3xf32, #tpu.memory_space<vmem>>, vector<1x8x8x3xf32>
    %98 = vector.shape_cast %97 : vector<1x8x8x3xf32> to vector<8x8x3xf32>
    %99 = vector.shape_cast %98 : vector<8x8x3xf32> to vector<64x3xf32>
    %100 = arith.truncf %99 : vector<64x3xf32> to vector<64x3xbf16>
    %c12 = arith.constant 12 : index
    %c0_88 = arith.constant 0 : index
    %c0_89 = arith.constant 0 : index
    %101 = vector.load %arg3[%c12, %c0_88, %c0_89] : memref<49x3x64xbf16, #tpu.memory_space<vmem>>, vector<1x3x64xbf16>
    %102 = vector.shape_cast %101 : vector<1x3x64xbf16> to vector<3x64xbf16>
    %cst_90 = arith.constant dense<0.000000e+00> : vector<64x64xf32>
    %103 = tpu.matmul %100, %102, %cst_90 {dimension_numbers = #tpu.dot_dimension_numbers<[1], [0], [0], [1], [0, 0, 1, 1], [], []>} : vector<64x3xbf16>, vector<3x64xbf16>, vector<64x64xf32> -> vector<64x64xf32>
    %104 = arith.addf %96, %103 : vector<64x64xf32>
    %c2_91 = arith.constant 2 : index
    %c0_92 = arith.constant 0 : index
    %c3_93 = arith.constant 3 : index
    %c0_94 = arith.constant 0 : index
    %105 = vector.load %arg2[%c2_91, %c0_92, %c3_93, %c0_94] : memref<4x11x11x3xf32, #tpu.memory_space<vmem>>, vector<1x8x8x3xf32>
    %106 = vector.shape_cast %105 : vector<1x8x8x3xf32> to vector<8x8x3xf32>
    %107 = vector.shape_cast %106 : vector<8x8x3xf32> to vector<64x3xf32>
    %108 = arith.truncf %107 : vector<64x3xf32> to vector<64x3xbf16>
    %c13 = arith.constant 13 : index
    %c0_95 = arith.constant 0 : index
    %c0_96 = arith.constant 0 : index
    %109 = vector.load %arg3[%c13, %c0_95, %c0_96] : memref<49x3x64xbf16, #tpu.memory_space<vmem>>, vector<1x3x64xbf16>
    %110 = vector.shape_cast %109 : vector<1x3x64xbf16> to vector<3x64xbf16>
    %cst_97 = arith.constant dense<0.000000e+00> : vector<64x64xf32>
    %111 = tpu.matmul %108, %110, %cst_97 {dimension_numbers = #tpu.dot_dimension_numbers<[1], [0], [0], [1], [0, 0, 1, 1], [], []>} : vector<64x3xbf16>, vector<3x64xbf16>, vector<64x64xf32> -> vector<64x64xf32>
    %112 = arith.addf %104, %111 : vector<64x64xf32>
    %c0_98 = arith.constant 0 : index
    %c1_99 = arith.constant 1 : index
    %c0_100 = arith.constant 0 : index
    %c0_101 = arith.constant 0 : index
    %113 = vector.load %arg2[%c0_98, %c1_99, %c0_100, %c0_101] : memref<4x11x11x3xf32, #tpu.memory_space<vmem>>, vector<1x8x8x3xf32>
    %114 = vector.shape_cast %113 : vector<1x8x8x3xf32> to vector<8x8x3xf32>
    %115 = vector.shape_cast %114 : vector<8x8x3xf32> to vector<64x3xf32>
    %116 = arith.truncf %115 : vector<64x3xf32> to vector<64x3xbf16>
    %c14 = arith.constant 14 : index
    %c0_102 = arith.constant 0 : index
    %c0_103 = arith.constant 0 : index
    %117 = vector.load %arg3[%c14, %c0_102, %c0_103] : memref<49x3x64xbf16, #tpu.memory_space<vmem>>, vector<1x3x64xbf16>
    %118 = vector.shape_cast %117 : vector<1x3x64xbf16> to vector<3x64xbf16>
    %cst_104 = arith.constant dense<0.000000e+00> : vector<64x64xf32>
    %119 = tpu.matmul %116, %118, %cst_104 {dimension_numbers = #tpu.dot_dimension_numbers<[1], [0], [0], [1], [0, 0, 1, 1], [], []>} : vector<64x3xbf16>, vector<3x64xbf16>, vector<64x64xf32> -> vector<64x64xf32>
    %120 = arith.addf %112, %119 : vector<64x64xf32>
    %c1_105 = arith.constant 1 : index
    %c1_106 = arith.constant 1 : index
    %c0_107 = arith.constant 0 : index
    %c0_108 = arith.constant 0 : index
    %121 = vector.load %arg2[%c1_105, %c1_106, %c0_107, %c0_108] : memref<4x11x11x3xf32, #tpu.memory_space<vmem>>, vector<1x8x8x3xf32>
    %122 = vector.shape_cast %121 : vector<1x8x8x3xf32> to vector<8x8x3xf32>
    %123 = vector.shape_cast %122 : vector<8x8x3xf32> to vector<64x3xf32>
    %124 = arith.truncf %123 : vector<64x3xf32> to vector<64x3xbf16>
    %c15 = arith.constant 15 : index
    %c0_109 = arith.constant 0 : index
    %c0_110 = arith.constant 0 : index
    %125 = vector.load %arg3[%c15, %c0_109, %c0_110] : memref<49x3x64xbf16, #tpu.memory_space<vmem>>, vector<1x3x64xbf16>
    %126 = vector.shape_cast %125 : vector<1x3x64xbf16> to vector<3x64xbf16>
    %cst_111 = arith.constant dense<0.000000e+00> : vector<64x64xf32>
    %127 = tpu.matmul %124, %126, %cst_111 {dimension_numbers = #tpu.dot_dimension_numbers<[1], [0], [0], [1], [0, 0, 1, 1], [], []>} : vector<64x3xbf16>, vector<3x64xbf16>, vector<64x64xf32> -> vector<64x64xf32>
    %128 = arith.addf %120, %127 : vector<64x64xf32>
    %c0_112 = arith.constant 0 : index
    %c1_113 = arith.constant 1 : index
    %c1_114 = arith.constant 1 : index
    %c0_115 = arith.constant 0 : index
    %129 = vector.load %arg2[%c0_112, %c1_113, %c1_114, %c0_115] : memref<4x11x11x3xf32, #tpu.memory_space<vmem>>, vector<1x8x8x3xf32>
    %130 = vector.shape_cast %129 : vector<1x8x8x3xf32> to vector<8x8x3xf32>
    %131 = vector.shape_cast %130 : vector<8x8x3xf32> to vector<64x3xf32>
    %132 = arith.truncf %131 : vector<64x3xf32> to vector<64x3xbf16>
    %c16 = arith.constant 16 : index
    %c0_116 = arith.constant 0 : index
    %c0_117 = arith.constant 0 : index
    %133 = vector.load %arg3[%c16, %c0_116, %c0_117] : memref<49x3x64xbf16, #tpu.memory_space<vmem>>, vector<1x3x64xbf16>
    %134 = vector.shape_cast %133 : vector<1x3x64xbf16> to vector<3x64xbf16>
    %cst_118 = arith.constant dense<0.000000e+00> : vector<64x64xf32>
    %135 = tpu.matmul %132, %134, %cst_118 {dimension_numbers = #tpu.dot_dimension_numbers<[1], [0], [0], [1], [0, 0, 1, 1], [], []>} : vector<64x3xbf16>, vector<3x64xbf16>, vector<64x64xf32> -> vector<64x64xf32>
    %136 = arith.addf %128, %135 : vector<64x64xf32>
    %c1_119 = arith.constant 1 : index
    %c1_120 = arith.constant 1 : index
    %c1_121 = arith.constant 1 : index
    %c0_122 = arith.constant 0 : index
    %137 = vector.load %arg2[%c1_119, %c1_120, %c1_121, %c0_122] : memref<4x11x11x3xf32, #tpu.memory_space<vmem>>, vector<1x8x8x3xf32>
    %138 = vector.shape_cast %137 : vector<1x8x8x3xf32> to vector<8x8x3xf32>
    %139 = vector.shape_cast %138 : vector<8x8x3xf32> to vector<64x3xf32>
    %140 = arith.truncf %139 : vector<64x3xf32> to vector<64x3xbf16>
    %c17 = arith.constant 17 : index
    %c0_123 = arith.constant 0 : index
    %c0_124 = arith.constant 0 : index
    %141 = vector.load %arg3[%c17, %c0_123, %c0_124] : memref<49x3x64xbf16, #tpu.memory_space<vmem>>, vector<1x3x64xbf16>
    %142 = vector.shape_cast %141 : vector<1x3x64xbf16> to vector<3x64xbf16>
    %cst_125 = arith.constant dense<0.000000e+00> : vector<64x64xf32>
    %143 = tpu.matmul %140, %142, %cst_125 {dimension_numbers = #tpu.dot_dimension_numbers<[1], [0], [0], [1], [0, 0, 1, 1], [], []>} : vector<64x3xbf16>, vector<3x64xbf16>, vector<64x64xf32> -> vector<64x64xf32>
    %144 = arith.addf %136, %143 : vector<64x64xf32>
    %c0_126 = arith.constant 0 : index
    %c1_127 = arith.constant 1 : index
    %c2_128 = arith.constant 2 : index
    %c0_129 = arith.constant 0 : index
    %145 = vector.load %arg2[%c0_126, %c1_127, %c2_128, %c0_129] : memref<4x11x11x3xf32, #tpu.memory_space<vmem>>, vector<1x8x8x3xf32>
    %146 = vector.shape_cast %145 : vector<1x8x8x3xf32> to vector<8x8x3xf32>
    %147 = vector.shape_cast %146 : vector<8x8x3xf32> to vector<64x3xf32>
    %148 = arith.truncf %147 : vector<64x3xf32> to vector<64x3xbf16>
    %c18 = arith.constant 18 : index
    %c0_130 = arith.constant 0 : index
    %c0_131 = arith.constant 0 : index
    %149 = vector.load %arg3[%c18, %c0_130, %c0_131] : memref<49x3x64xbf16, #tpu.memory_space<vmem>>, vector<1x3x64xbf16>
    %150 = vector.shape_cast %149 : vector<1x3x64xbf16> to vector<3x64xbf16>
    %cst_132 = arith.constant dense<0.000000e+00> : vector<64x64xf32>
    %151 = tpu.matmul %148, %150, %cst_132 {dimension_numbers = #tpu.dot_dimension_numbers<[1], [0], [0], [1], [0, 0, 1, 1], [], []>} : vector<64x3xbf16>, vector<3x64xbf16>, vector<64x64xf32> -> vector<64x64xf32>
    %152 = arith.addf %144, %151 : vector<64x64xf32>
    %c1_133 = arith.constant 1 : index
    %c1_134 = arith.constant 1 : index
    %c2_135 = arith.constant 2 : index
    %c0_136 = arith.constant 0 : index
    %153 = vector.load %arg2[%c1_133, %c1_134, %c2_135, %c0_136] : memref<4x11x11x3xf32, #tpu.memory_space<vmem>>, vector<1x8x8x3xf32>
    %154 = vector.shape_cast %153 : vector<1x8x8x3xf32> to vector<8x8x3xf32>
    %155 = vector.shape_cast %154 : vector<8x8x3xf32> to vector<64x3xf32>
    %156 = arith.truncf %155 : vector<64x3xf32> to vector<64x3xbf16>
    %c19 = arith.constant 19 : index
    %c0_137 = arith.constant 0 : index
    %c0_138 = arith.constant 0 : index
    %157 = vector.load %arg3[%c19, %c0_137, %c0_138] : memref<49x3x64xbf16, #tpu.memory_space<vmem>>, vector<1x3x64xbf16>
    %158 = vector.shape_cast %157 : vector<1x3x64xbf16> to vector<3x64xbf16>
    %cst_139 = arith.constant dense<0.000000e+00> : vector<64x64xf32>
    %159 = tpu.matmul %156, %158, %cst_139 {dimension_numbers = #tpu.dot_dimension_numbers<[1], [0], [0], [1], [0, 0, 1, 1], [], []>} : vector<64x3xbf16>, vector<3x64xbf16>, vector<64x64xf32> -> vector<64x64xf32>
    %160 = arith.addf %152, %159 : vector<64x64xf32>
    %c0_140 = arith.constant 0 : index
    %c1_141 = arith.constant 1 : index
    %c3_142 = arith.constant 3 : index
    %c0_143 = arith.constant 0 : index
    %161 = vector.load %arg2[%c0_140, %c1_141, %c3_142, %c0_143] : memref<4x11x11x3xf32, #tpu.memory_space<vmem>>, vector<1x8x8x3xf32>
    %162 = vector.shape_cast %161 : vector<1x8x8x3xf32> to vector<8x8x3xf32>
    %163 = vector.shape_cast %162 : vector<8x8x3xf32> to vector<64x3xf32>
    %164 = arith.truncf %163 : vector<64x3xf32> to vector<64x3xbf16>
    %c20 = arith.constant 20 : index
    %c0_144 = arith.constant 0 : index
    %c0_145 = arith.constant 0 : index
    %165 = vector.load %arg3[%c20, %c0_144, %c0_145] : memref<49x3x64xbf16, #tpu.memory_space<vmem>>, vector<1x3x64xbf16>
    %166 = vector.shape_cast %165 : vector<1x3x64xbf16> to vector<3x64xbf16>
    %cst_146 = arith.constant dense<0.000000e+00> : vector<64x64xf32>
    %167 = tpu.matmul %164, %166, %cst_146 {dimension_numbers = #tpu.dot_dimension_numbers<[1], [0], [0], [1], [0, 0, 1, 1], [], []>} : vector<64x3xbf16>, vector<3x64xbf16>, vector<64x64xf32> -> vector<64x64xf32>
    %168 = arith.addf %160, %167 : vector<64x64xf32>
    %c2_147 = arith.constant 2 : index
    %c1_148 = arith.constant 1 : index
    %c0_149 = arith.constant 0 : index
    %c0_150 = arith.constant 0 : index
    %169 = vector.load %arg2[%c2_147, %c1_148, %c0_149, %c0_150] : memref<4x11x11x3xf32, #tpu.memory_space<vmem>>, vector<1x8x8x3xf32>
    %170 = vector.shape_cast %169 : vector<1x8x8x3xf32> to vector<8x8x3xf32>
    %171 = vector.shape_cast %170 : vector<8x8x3xf32> to vector<64x3xf32>
    %172 = arith.truncf %171 : vector<64x3xf32> to vector<64x3xbf16>
    %c21 = arith.constant 21 : index
    %c0_151 = arith.constant 0 : index
    %c0_152 = arith.constant 0 : index
    %173 = vector.load %arg3[%c21, %c0_151, %c0_152] : memref<49x3x64xbf16, #tpu.memory_space<vmem>>, vector<1x3x64xbf16>
    %174 = vector.shape_cast %173 : vector<1x3x64xbf16> to vector<3x64xbf16>
    %cst_153 = arith.constant dense<0.000000e+00> : vector<64x64xf32>
    %175 = tpu.matmul %172, %174, %cst_153 {dimension_numbers = #tpu.dot_dimension_numbers<[1], [0], [0], [1], [0, 0, 1, 1], [], []>} : vector<64x3xbf16>, vector<3x64xbf16>, vector<64x64xf32> -> vector<64x64xf32>
    %176 = arith.addf %168, %175 : vector<64x64xf32>
    %c3_154 = arith.constant 3 : index
    %c1_155 = arith.constant 1 : index
    %c0_156 = arith.constant 0 : index
    %c0_157 = arith.constant 0 : index
    %177 = vector.load %arg2[%c3_154, %c1_155, %c0_156, %c0_157] : memref<4x11x11x3xf32, #tpu.memory_space<vmem>>, vector<1x8x8x3xf32>
    %178 = vector.shape_cast %177 : vector<1x8x8x3xf32> to vector<8x8x3xf32>
    %179 = vector.shape_cast %178 : vector<8x8x3xf32> to vector<64x3xf32>
    %180 = arith.truncf %179 : vector<64x3xf32> to vector<64x3xbf16>
    %c22 = arith.constant 22 : index
    %c0_158 = arith.constant 0 : index
    %c0_159 = arith.constant 0 : index
    %181 = vector.load %arg3[%c22, %c0_158, %c0_159] : memref<49x3x64xbf16, #tpu.memory_space<vmem>>, vector<1x3x64xbf16>
    %182 = vector.shape_cast %181 : vector<1x3x64xbf16> to vector<3x64xbf16>
    %cst_160 = arith.constant dense<0.000000e+00> : vector<64x64xf32>
    %183 = tpu.matmul %180, %182, %cst_160 {dimension_numbers = #tpu.dot_dimension_numbers<[1], [0], [0], [1], [0, 0, 1, 1], [], []>} : vector<64x3xbf16>, vector<3x64xbf16>, vector<64x64xf32> -> vector<64x64xf32>
    %184 = arith.addf %176, %183 : vector<64x64xf32>
    %c2_161 = arith.constant 2 : index
    %c1_162 = arith.constant 1 : index
    %c1_163 = arith.constant 1 : index
    %c0_164 = arith.constant 0 : index
    %185 = vector.load %arg2[%c2_161, %c1_162, %c1_163, %c0_164] : memref<4x11x11x3xf32, #tpu.memory_space<vmem>>, vector<1x8x8x3xf32>
    %186 = vector.shape_cast %185 : vector<1x8x8x3xf32> to vector<8x8x3xf32>
    %187 = vector.shape_cast %186 : vector<8x8x3xf32> to vector<64x3xf32>
    %188 = arith.truncf %187 : vector<64x3xf32> to vector<64x3xbf16>
    %c23 = arith.constant 23 : index
    %c0_165 = arith.constant 0 : index
    %c0_166 = arith.constant 0 : index
    %189 = vector.load %arg3[%c23, %c0_165, %c0_166] : memref<49x3x64xbf16, #tpu.memory_space<vmem>>, vector<1x3x64xbf16>
    %190 = vector.shape_cast %189 : vector<1x3x64xbf16> to vector<3x64xbf16>
    %cst_167 = arith.constant dense<0.000000e+00> : vector<64x64xf32>
    %191 = tpu.matmul %188, %190, %cst_167 {dimension_numbers = #tpu.dot_dimension_numbers<[1], [0], [0], [1], [0, 0, 1, 1], [], []>} : vector<64x3xbf16>, vector<3x64xbf16>, vector<64x64xf32> -> vector<64x64xf32>
    %192 = arith.addf %184, %191 : vector<64x64xf32>
    %c3_168 = arith.constant 3 : index
    %c1_169 = arith.constant 1 : index
    %c1_170 = arith.constant 1 : index
    %c0_171 = arith.constant 0 : index
    %193 = vector.load %arg2[%c3_168, %c1_169, %c1_170, %c0_171] : memref<4x11x11x3xf32, #tpu.memory_space<vmem>>, vector<1x8x8x3xf32>
    %194 = vector.shape_cast %193 : vector<1x8x8x3xf32> to vector<8x8x3xf32>
    %195 = vector.shape_cast %194 : vector<8x8x3xf32> to vector<64x3xf32>
    %196 = arith.truncf %195 : vector<64x3xf32> to vector<64x3xbf16>
    %c24 = arith.constant 24 : index
    %c0_172 = arith.constant 0 : index
    %c0_173 = arith.constant 0 : index
    %197 = vector.load %arg3[%c24, %c0_172, %c0_173] : memref<49x3x64xbf16, #tpu.memory_space<vmem>>, vector<1x3x64xbf16>
    %198 = vector.shape_cast %197 : vector<1x3x64xbf16> to vector<3x64xbf16>
    %cst_174 = arith.constant dense<0.000000e+00> : vector<64x64xf32>
    %199 = tpu.matmul %196, %198, %cst_174 {dimension_numbers = #tpu.dot_dimension_numbers<[1], [0], [0], [1], [0, 0, 1, 1], [], []>} : vector<64x3xbf16>, vector<3x64xbf16>, vector<64x64xf32> -> vector<64x64xf32>
    %200 = arith.addf %192, %199 : vector<64x64xf32>
    %c2_175 = arith.constant 2 : index
    %c1_176 = arith.constant 1 : index
    %c2_177 = arith.constant 2 : index
    %c0_178 = arith.constant 0 : index
    %201 = vector.load %arg2[%c2_175, %c1_176, %c2_177, %c0_178] : memref<4x11x11x3xf32, #tpu.memory_space<vmem>>, vector<1x8x8x3xf32>
    %202 = vector.shape_cast %201 : vector<1x8x8x3xf32> to vector<8x8x3xf32>
    %203 = vector.shape_cast %202 : vector<8x8x3xf32> to vector<64x3xf32>
    %204 = arith.truncf %203 : vector<64x3xf32> to vector<64x3xbf16>
    %c25 = arith.constant 25 : index
    %c0_179 = arith.constant 0 : index
    %c0_180 = arith.constant 0 : index
    %205 = vector.load %arg3[%c25, %c0_179, %c0_180] : memref<49x3x64xbf16, #tpu.memory_space<vmem>>, vector<1x3x64xbf16>
    %206 = vector.shape_cast %205 : vector<1x3x64xbf16> to vector<3x64xbf16>
    %cst_181 = arith.constant dense<0.000000e+00> : vector<64x64xf32>
    %207 = tpu.matmul %204, %206, %cst_181 {dimension_numbers = #tpu.dot_dimension_numbers<[1], [0], [0], [1], [0, 0, 1, 1], [], []>} : vector<64x3xbf16>, vector<3x64xbf16>, vector<64x64xf32> -> vector<64x64xf32>
    %208 = arith.addf %200, %207 : vector<64x64xf32>
    %c3_182 = arith.constant 3 : index
    %c1_183 = arith.constant 1 : index
    %c2_184 = arith.constant 2 : index
    %c0_185 = arith.constant 0 : index
    %209 = vector.load %arg2[%c3_182, %c1_183, %c2_184, %c0_185] : memref<4x11x11x3xf32, #tpu.memory_space<vmem>>, vector<1x8x8x3xf32>
    %210 = vector.shape_cast %209 : vector<1x8x8x3xf32> to vector<8x8x3xf32>
    %211 = vector.shape_cast %210 : vector<8x8x3xf32> to vector<64x3xf32>
    %212 = arith.truncf %211 : vector<64x3xf32> to vector<64x3xbf16>
    %c26 = arith.constant 26 : index
    %c0_186 = arith.constant 0 : index
    %c0_187 = arith.constant 0 : index
    %213 = vector.load %arg3[%c26, %c0_186, %c0_187] : memref<49x3x64xbf16, #tpu.memory_space<vmem>>, vector<1x3x64xbf16>
    %214 = vector.shape_cast %213 : vector<1x3x64xbf16> to vector<3x64xbf16>
    %cst_188 = arith.constant dense<0.000000e+00> : vector<64x64xf32>
    %215 = tpu.matmul %212, %214, %cst_188 {dimension_numbers = #tpu.dot_dimension_numbers<[1], [0], [0], [1], [0, 0, 1, 1], [], []>} : vector<64x3xbf16>, vector<3x64xbf16>, vector<64x64xf32> -> vector<64x64xf32>
    %216 = arith.addf %208, %215 : vector<64x64xf32>
    %c2_189 = arith.constant 2 : index
    %c1_190 = arith.constant 1 : index
    %c3_191 = arith.constant 3 : index
    %c0_192 = arith.constant 0 : index
    %217 = vector.load %arg2[%c2_189, %c1_190, %c3_191, %c0_192] : memref<4x11x11x3xf32, #tpu.memory_space<vmem>>, vector<1x8x8x3xf32>
    %218 = vector.shape_cast %217 : vector<1x8x8x3xf32> to vector<8x8x3xf32>
    %219 = vector.shape_cast %218 : vector<8x8x3xf32> to vector<64x3xf32>
    %220 = arith.truncf %219 : vector<64x3xf32> to vector<64x3xbf16>
    %c27 = arith.constant 27 : index
    %c0_193 = arith.constant 0 : index
    %c0_194 = arith.constant 0 : index
    %221 = vector.load %arg3[%c27, %c0_193, %c0_194] : memref<49x3x64xbf16, #tpu.memory_space<vmem>>, vector<1x3x64xbf16>
    %222 = vector.shape_cast %221 : vector<1x3x64xbf16> to vector<3x64xbf16>
    %cst_195 = arith.constant dense<0.000000e+00> : vector<64x64xf32>
    %223 = tpu.matmul %220, %222, %cst_195 {dimension_numbers = #tpu.dot_dimension_numbers<[1], [0], [0], [1], [0, 0, 1, 1], [], []>} : vector<64x3xbf16>, vector<3x64xbf16>, vector<64x64xf32> -> vector<64x64xf32>
    %224 = arith.addf %216, %223 : vector<64x64xf32>
    %c0_196 = arith.constant 0 : index
    %c2_197 = arith.constant 2 : index
    %c0_198 = arith.constant 0 : index
    %c0_199 = arith.constant 0 : index
    %225 = vector.load %arg2[%c0_196, %c2_197, %c0_198, %c0_199] : memref<4x11x11x3xf32, #tpu.memory_space<vmem>>, vector<1x8x8x3xf32>
    %226 = vector.shape_cast %225 : vector<1x8x8x3xf32> to vector<8x8x3xf32>
    %227 = vector.shape_cast %226 : vector<8x8x3xf32> to vector<64x3xf32>
    %228 = arith.truncf %227 : vector<64x3xf32> to vector<64x3xbf16>
    %c28 = arith.constant 28 : index
    %c0_200 = arith.constant 0 : index
    %c0_201 = arith.constant 0 : index
    %229 = vector.load %arg3[%c28, %c0_200, %c0_201] : memref<49x3x64xbf16, #tpu.memory_space<vmem>>, vector<1x3x64xbf16>
    %230 = vector.shape_cast %229 : vector<1x3x64xbf16> to vector<3x64xbf16>
    %cst_202 = arith.constant dense<0.000000e+00> : vector<64x64xf32>
    %231 = tpu.matmul %228, %230, %cst_202 {dimension_numbers = #tpu.dot_dimension_numbers<[1], [0], [0], [1], [0, 0, 1, 1], [], []>} : vector<64x3xbf16>, vector<3x64xbf16>, vector<64x64xf32> -> vector<64x64xf32>
    %232 = arith.addf %224, %231 : vector<64x64xf32>
    %c1_203 = arith.constant 1 : index
    %c2_204 = arith.constant 2 : index
    %c0_205 = arith.constant 0 : index
    %c0_206 = arith.constant 0 : index
    %233 = vector.load %arg2[%c1_203, %c2_204, %c0_205, %c0_206] : memref<4x11x11x3xf32, #tpu.memory_space<vmem>>, vector<1x8x8x3xf32>
    %234 = vector.shape_cast %233 : vector<1x8x8x3xf32> to vector<8x8x3xf32>
    %235 = vector.shape_cast %234 : vector<8x8x3xf32> to vector<64x3xf32>
    %236 = arith.truncf %235 : vector<64x3xf32> to vector<64x3xbf16>
    %c29 = arith.constant 29 : index
    %c0_207 = arith.constant 0 : index
    %c0_208 = arith.constant 0 : index
    %237 = vector.load %arg3[%c29, %c0_207, %c0_208] : memref<49x3x64xbf16, #tpu.memory_space<vmem>>, vector<1x3x64xbf16>
    %238 = vector.shape_cast %237 : vector<1x3x64xbf16> to vector<3x64xbf16>
    %cst_209 = arith.constant dense<0.000000e+00> : vector<64x64xf32>
    %239 = tpu.matmul %236, %238, %cst_209 {dimension_numbers = #tpu.dot_dimension_numbers<[1], [0], [0], [1], [0, 0, 1, 1], [], []>} : vector<64x3xbf16>, vector<3x64xbf16>, vector<64x64xf32> -> vector<64x64xf32>
    %240 = arith.addf %232, %239 : vector<64x64xf32>
    %c0_210 = arith.constant 0 : index
    %c2_211 = arith.constant 2 : index
    %c1_212 = arith.constant 1 : index
    %c0_213 = arith.constant 0 : index
    %241 = vector.load %arg2[%c0_210, %c2_211, %c1_212, %c0_213] : memref<4x11x11x3xf32, #tpu.memory_space<vmem>>, vector<1x8x8x3xf32>
    %242 = vector.shape_cast %241 : vector<1x8x8x3xf32> to vector<8x8x3xf32>
    %243 = vector.shape_cast %242 : vector<8x8x3xf32> to vector<64x3xf32>
    %244 = arith.truncf %243 : vector<64x3xf32> to vector<64x3xbf16>
    %c30 = arith.constant 30 : index
    %c0_214 = arith.constant 0 : index
    %c0_215 = arith.constant 0 : index
    %245 = vector.load %arg3[%c30, %c0_214, %c0_215] : memref<49x3x64xbf16, #tpu.memory_space<vmem>>, vector<1x3x64xbf16>
    %246 = vector.shape_cast %245 : vector<1x3x64xbf16> to vector<3x64xbf16>
    %cst_216 = arith.constant dense<0.000000e+00> : vector<64x64xf32>
    %247 = tpu.matmul %244, %246, %cst_216 {dimension_numbers = #tpu.dot_dimension_numbers<[1], [0], [0], [1], [0, 0, 1, 1], [], []>} : vector<64x3xbf16>, vector<3x64xbf16>, vector<64x64xf32> -> vector<64x64xf32>
    %248 = arith.addf %240, %247 : vector<64x64xf32>
    %c1_217 = arith.constant 1 : index
    %c2_218 = arith.constant 2 : index
    %c1_219 = arith.constant 1 : index
    %c0_220 = arith.constant 0 : index
    %249 = vector.load %arg2[%c1_217, %c2_218, %c1_219, %c0_220] : memref<4x11x11x3xf32, #tpu.memory_space<vmem>>, vector<1x8x8x3xf32>
    %250 = vector.shape_cast %249 : vector<1x8x8x3xf32> to vector<8x8x3xf32>
    %251 = vector.shape_cast %250 : vector<8x8x3xf32> to vector<64x3xf32>
    %252 = arith.truncf %251 : vector<64x3xf32> to vector<64x3xbf16>
    %c31 = arith.constant 31 : index
    %c0_221 = arith.constant 0 : index
    %c0_222 = arith.constant 0 : index
    %253 = vector.load %arg3[%c31, %c0_221, %c0_222] : memref<49x3x64xbf16, #tpu.memory_space<vmem>>, vector<1x3x64xbf16>
    %254 = vector.shape_cast %253 : vector<1x3x64xbf16> to vector<3x64xbf16>
    %cst_223 = arith.constant dense<0.000000e+00> : vector<64x64xf32>
    %255 = tpu.matmul %252, %254, %cst_223 {dimension_numbers = #tpu.dot_dimension_numbers<[1], [0], [0], [1], [0, 0, 1, 1], [], []>} : vector<64x3xbf16>, vector<3x64xbf16>, vector<64x64xf32> -> vector<64x64xf32>
    %256 = arith.addf %248, %255 : vector<64x64xf32>
    %c0_224 = arith.constant 0 : index
    %c2_225 = arith.constant 2 : index
    %c2_226 = arith.constant 2 : index
    %c0_227 = arith.constant 0 : index
    %257 = vector.load %arg2[%c0_224, %c2_225, %c2_226, %c0_227] : memref<4x11x11x3xf32, #tpu.memory_space<vmem>>, vector<1x8x8x3xf32>
    %258 = vector.shape_cast %257 : vector<1x8x8x3xf32> to vector<8x8x3xf32>
    %259 = vector.shape_cast %258 : vector<8x8x3xf32> to vector<64x3xf32>
    %260 = arith.truncf %259 : vector<64x3xf32> to vector<64x3xbf16>
    %c32 = arith.constant 32 : index
    %c0_228 = arith.constant 0 : index
    %c0_229 = arith.constant 0 : index
    %261 = vector.load %arg3[%c32, %c0_228, %c0_229] : memref<49x3x64xbf16, #tpu.memory_space<vmem>>, vector<1x3x64xbf16>
    %262 = vector.shape_cast %261 : vector<1x3x64xbf16> to vector<3x64xbf16>
    %cst_230 = arith.constant dense<0.000000e+00> : vector<64x64xf32>
    %263 = tpu.matmul %260, %262, %cst_230 {dimension_numbers = #tpu.dot_dimension_numbers<[1], [0], [0], [1], [0, 0, 1, 1], [], []>} : vector<64x3xbf16>, vector<3x64xbf16>, vector<64x64xf32> -> vector<64x64xf32>
    %264 = arith.addf %256, %263 : vector<64x64xf32>
    %c1_231 = arith.constant 1 : index
    %c2_232 = arith.constant 2 : index
    %c2_233 = arith.constant 2 : index
    %c0_234 = arith.constant 0 : index
    %265 = vector.load %arg2[%c1_231, %c2_232, %c2_233, %c0_234] : memref<4x11x11x3xf32, #tpu.memory_space<vmem>>, vector<1x8x8x3xf32>
    %266 = vector.shape_cast %265 : vector<1x8x8x3xf32> to vector<8x8x3xf32>
    %267 = vector.shape_cast %266 : vector<8x8x3xf32> to vector<64x3xf32>
    %268 = arith.truncf %267 : vector<64x3xf32> to vector<64x3xbf16>
    %c33 = arith.constant 33 : index
    %c0_235 = arith.constant 0 : index
    %c0_236 = arith.constant 0 : index
    %269 = vector.load %arg3[%c33, %c0_235, %c0_236] : memref<49x3x64xbf16, #tpu.memory_space<vmem>>, vector<1x3x64xbf16>
    %270 = vector.shape_cast %269 : vector<1x3x64xbf16> to vector<3x64xbf16>
    %cst_237 = arith.constant dense<0.000000e+00> : vector<64x64xf32>
    %271 = tpu.matmul %268, %270, %cst_237 {dimension_numbers = #tpu.dot_dimension_numbers<[1], [0], [0], [1], [0, 0, 1, 1], [], []>} : vector<64x3xbf16>, vector<3x64xbf16>, vector<64x64xf32> -> vector<64x64xf32>
    %272 = arith.addf %264, %271 : vector<64x64xf32>
    %c0_238 = arith.constant 0 : index
    %c2_239 = arith.constant 2 : index
    %c3_240 = arith.constant 3 : index
    %c0_241 = arith.constant 0 : index
    %273 = vector.load %arg2[%c0_238, %c2_239, %c3_240, %c0_241] : memref<4x11x11x3xf32, #tpu.memory_space<vmem>>, vector<1x8x8x3xf32>
    %274 = vector.shape_cast %273 : vector<1x8x8x3xf32> to vector<8x8x3xf32>
    %275 = vector.shape_cast %274 : vector<8x8x3xf32> to vector<64x3xf32>
    %276 = arith.truncf %275 : vector<64x3xf32> to vector<64x3xbf16>
    %c34 = arith.constant 34 : index
    %c0_242 = arith.constant 0 : index
    %c0_243 = arith.constant 0 : index
    %277 = vector.load %arg3[%c34, %c0_242, %c0_243] : memref<49x3x64xbf16, #tpu.memory_space<vmem>>, vector<1x3x64xbf16>
    %278 = vector.shape_cast %277 : vector<1x3x64xbf16> to vector<3x64xbf16>
    %cst_244 = arith.constant dense<0.000000e+00> : vector<64x64xf32>
    %279 = tpu.matmul %276, %278, %cst_244 {dimension_numbers = #tpu.dot_dimension_numbers<[1], [0], [0], [1], [0, 0, 1, 1], [], []>} : vector<64x3xbf16>, vector<3x64xbf16>, vector<64x64xf32> -> vector<64x64xf32>
    %280 = arith.addf %272, %279 : vector<64x64xf32>
    %c2_245 = arith.constant 2 : index
    %c2_246 = arith.constant 2 : index
    %c0_247 = arith.constant 0 : index
    %c0_248 = arith.constant 0 : index
    %281 = vector.load %arg2[%c2_245, %c2_246, %c0_247, %c0_248] : memref<4x11x11x3xf32, #tpu.memory_space<vmem>>, vector<1x8x8x3xf32>
    %282 = vector.shape_cast %281 : vector<1x8x8x3xf32> to vector<8x8x3xf32>
    %283 = vector.shape_cast %282 : vector<8x8x3xf32> to vector<64x3xf32>
    %284 = arith.truncf %283 : vector<64x3xf32> to vector<64x3xbf16>
    %c35 = arith.constant 35 : index
    %c0_249 = arith.constant 0 : index
    %c0_250 = arith.constant 0 : index
    %285 = vector.load %arg3[%c35, %c0_249, %c0_250] : memref<49x3x64xbf16, #tpu.memory_space<vmem>>, vector<1x3x64xbf16>
    %286 = vector.shape_cast %285 : vector<1x3x64xbf16> to vector<3x64xbf16>
    %cst_251 = arith.constant dense<0.000000e+00> : vector<64x64xf32>
    %287 = tpu.matmul %284, %286, %cst_251 {dimension_numbers = #tpu.dot_dimension_numbers<[1], [0], [0], [1], [0, 0, 1, 1], [], []>} : vector<64x3xbf16>, vector<3x64xbf16>, vector<64x64xf32> -> vector<64x64xf32>
    %288 = arith.addf %280, %287 : vector<64x64xf32>
    %c3_252 = arith.constant 3 : index
    %c2_253 = arith.constant 2 : index
    %c0_254 = arith.constant 0 : index
    %c0_255 = arith.constant 0 : index
    %289 = vector.load %arg2[%c3_252, %c2_253, %c0_254, %c0_255] : memref<4x11x11x3xf32, #tpu.memory_space<vmem>>, vector<1x8x8x3xf32>
    %290 = vector.shape_cast %289 : vector<1x8x8x3xf32> to vector<8x8x3xf32>
    %291 = vector.shape_cast %290 : vector<8x8x3xf32> to vector<64x3xf32>
    %292 = arith.truncf %291 : vector<64x3xf32> to vector<64x3xbf16>
    %c36 = arith.constant 36 : index
    %c0_256 = arith.constant 0 : index
    %c0_257 = arith.constant 0 : index
    %293 = vector.load %arg3[%c36, %c0_256, %c0_257] : memref<49x3x64xbf16, #tpu.memory_space<vmem>>, vector<1x3x64xbf16>
    %294 = vector.shape_cast %293 : vector<1x3x64xbf16> to vector<3x64xbf16>
    %cst_258 = arith.constant dense<0.000000e+00> : vector<64x64xf32>
    %295 = tpu.matmul %292, %294, %cst_258 {dimension_numbers = #tpu.dot_dimension_numbers<[1], [0], [0], [1], [0, 0, 1, 1], [], []>} : vector<64x3xbf16>, vector<3x64xbf16>, vector<64x64xf32> -> vector<64x64xf32>
    %296 = arith.addf %288, %295 : vector<64x64xf32>
    %c2_259 = arith.constant 2 : index
    %c2_260 = arith.constant 2 : index
    %c1_261 = arith.constant 1 : index
    %c0_262 = arith.constant 0 : index
    %297 = vector.load %arg2[%c2_259, %c2_260, %c1_261, %c0_262] : memref<4x11x11x3xf32, #tpu.memory_space<vmem>>, vector<1x8x8x3xf32>
    %298 = vector.shape_cast %297 : vector<1x8x8x3xf32> to vector<8x8x3xf32>
    %299 = vector.shape_cast %298 : vector<8x8x3xf32> to vector<64x3xf32>
    %300 = arith.truncf %299 : vector<64x3xf32> to vector<64x3xbf16>
    %c37 = arith.constant 37 : index
    %c0_263 = arith.constant 0 : index
    %c0_264 = arith.constant 0 : index
    %301 = vector.load %arg3[%c37, %c0_263, %c0_264] : memref<49x3x64xbf16, #tpu.memory_space<vmem>>, vector<1x3x64xbf16>
    %302 = vector.shape_cast %301 : vector<1x3x64xbf16> to vector<3x64xbf16>
    %cst_265 = arith.constant dense<0.000000e+00> : vector<64x64xf32>
    %303 = tpu.matmul %300, %302, %cst_265 {dimension_numbers = #tpu.dot_dimension_numbers<[1], [0], [0], [1], [0, 0, 1, 1], [], []>} : vector<64x3xbf16>, vector<3x64xbf16>, vector<64x64xf32> -> vector<64x64xf32>
    %304 = arith.addf %296, %303 : vector<64x64xf32>
    %c3_266 = arith.constant 3 : index
    %c2_267 = arith.constant 2 : index
    %c1_268 = arith.constant 1 : index
    %c0_269 = arith.constant 0 : index
    %305 = vector.load %arg2[%c3_266, %c2_267, %c1_268, %c0_269] : memref<4x11x11x3xf32, #tpu.memory_space<vmem>>, vector<1x8x8x3xf32>
    %306 = vector.shape_cast %305 : vector<1x8x8x3xf32> to vector<8x8x3xf32>
    %307 = vector.shape_cast %306 : vector<8x8x3xf32> to vector<64x3xf32>
    %308 = arith.truncf %307 : vector<64x3xf32> to vector<64x3xbf16>
    %c38 = arith.constant 38 : index
    %c0_270 = arith.constant 0 : index
    %c0_271 = arith.constant 0 : index
    %309 = vector.load %arg3[%c38, %c0_270, %c0_271] : memref<49x3x64xbf16, #tpu.memory_space<vmem>>, vector<1x3x64xbf16>
    %310 = vector.shape_cast %309 : vector<1x3x64xbf16> to vector<3x64xbf16>
    %cst_272 = arith.constant dense<0.000000e+00> : vector<64x64xf32>
    %311 = tpu.matmul %308, %310, %cst_272 {dimension_numbers = #tpu.dot_dimension_numbers<[1], [0], [0], [1], [0, 0, 1, 1], [], []>} : vector<64x3xbf16>, vector<3x64xbf16>, vector<64x64xf32> -> vector<64x64xf32>
    %312 = arith.addf %304, %311 : vector<64x64xf32>
    %c2_273 = arith.constant 2 : index
    %c2_274 = arith.constant 2 : index
    %c2_275 = arith.constant 2 : index
    %c0_276 = arith.constant 0 : index
    %313 = vector.load %arg2[%c2_273, %c2_274, %c2_275, %c0_276] : memref<4x11x11x3xf32, #tpu.memory_space<vmem>>, vector<1x8x8x3xf32>
    %314 = vector.shape_cast %313 : vector<1x8x8x3xf32> to vector<8x8x3xf32>
    %315 = vector.shape_cast %314 : vector<8x8x3xf32> to vector<64x3xf32>
    %316 = arith.truncf %315 : vector<64x3xf32> to vector<64x3xbf16>
    %c39 = arith.constant 39 : index
    %c0_277 = arith.constant 0 : index
    %c0_278 = arith.constant 0 : index
    %317 = vector.load %arg3[%c39, %c0_277, %c0_278] : memref<49x3x64xbf16, #tpu.memory_space<vmem>>, vector<1x3x64xbf16>
    %318 = vector.shape_cast %317 : vector<1x3x64xbf16> to vector<3x64xbf16>
    %cst_279 = arith.constant dense<0.000000e+00> : vector<64x64xf32>
    %319 = tpu.matmul %316, %318, %cst_279 {dimension_numbers = #tpu.dot_dimension_numbers<[1], [0], [0], [1], [0, 0, 1, 1], [], []>} : vector<64x3xbf16>, vector<3x64xbf16>, vector<64x64xf32> -> vector<64x64xf32>
    %320 = arith.addf %312, %319 : vector<64x64xf32>
    %c3_280 = arith.constant 3 : index
    %c2_281 = arith.constant 2 : index
    %c2_282 = arith.constant 2 : index
    %c0_283 = arith.constant 0 : index
    %321 = vector.load %arg2[%c3_280, %c2_281, %c2_282, %c0_283] : memref<4x11x11x3xf32, #tpu.memory_space<vmem>>, vector<1x8x8x3xf32>
    %322 = vector.shape_cast %321 : vector<1x8x8x3xf32> to vector<8x8x3xf32>
    %323 = vector.shape_cast %322 : vector<8x8x3xf32> to vector<64x3xf32>
    %324 = arith.truncf %323 : vector<64x3xf32> to vector<64x3xbf16>
    %c40 = arith.constant 40 : index
    %c0_284 = arith.constant 0 : index
    %c0_285 = arith.constant 0 : index
    %325 = vector.load %arg3[%c40, %c0_284, %c0_285] : memref<49x3x64xbf16, #tpu.memory_space<vmem>>, vector<1x3x64xbf16>
    %326 = vector.shape_cast %325 : vector<1x3x64xbf16> to vector<3x64xbf16>
    %cst_286 = arith.constant dense<0.000000e+00> : vector<64x64xf32>
    %327 = tpu.matmul %324, %326, %cst_286 {dimension_numbers = #tpu.dot_dimension_numbers<[1], [0], [0], [1], [0, 0, 1, 1], [], []>} : vector<64x3xbf16>, vector<3x64xbf16>, vector<64x64xf32> -> vector<64x64xf32>
    %328 = arith.addf %320, %327 : vector<64x64xf32>
    %c2_287 = arith.constant 2 : index
    %c2_288 = arith.constant 2 : index
    %c3_289 = arith.constant 3 : index
    %c0_290 = arith.constant 0 : index
    %329 = vector.load %arg2[%c2_287, %c2_288, %c3_289, %c0_290] : memref<4x11x11x3xf32, #tpu.memory_space<vmem>>, vector<1x8x8x3xf32>
    %330 = vector.shape_cast %329 : vector<1x8x8x3xf32> to vector<8x8x3xf32>
    %331 = vector.shape_cast %330 : vector<8x8x3xf32> to vector<64x3xf32>
    %332 = arith.truncf %331 : vector<64x3xf32> to vector<64x3xbf16>
    %c41 = arith.constant 41 : index
    %c0_291 = arith.constant 0 : index
    %c0_292 = arith.constant 0 : index
    %333 = vector.load %arg3[%c41, %c0_291, %c0_292] : memref<49x3x64xbf16, #tpu.memory_space<vmem>>, vector<1x3x64xbf16>
    %334 = vector.shape_cast %333 : vector<1x3x64xbf16> to vector<3x64xbf16>
    %cst_293 = arith.constant dense<0.000000e+00> : vector<64x64xf32>
    %335 = tpu.matmul %332, %334, %cst_293 {dimension_numbers = #tpu.dot_dimension_numbers<[1], [0], [0], [1], [0, 0, 1, 1], [], []>} : vector<64x3xbf16>, vector<3x64xbf16>, vector<64x64xf32> -> vector<64x64xf32>
    %336 = arith.addf %328, %335 : vector<64x64xf32>
    %c0_294 = arith.constant 0 : index
    %c3_295 = arith.constant 3 : index
    %c0_296 = arith.constant 0 : index
    %c0_297 = arith.constant 0 : index
    %337 = vector.load %arg2[%c0_294, %c3_295, %c0_296, %c0_297] : memref<4x11x11x3xf32, #tpu.memory_space<vmem>>, vector<1x8x8x3xf32>
    %338 = vector.shape_cast %337 : vector<1x8x8x3xf32> to vector<8x8x3xf32>
    %339 = vector.shape_cast %338 : vector<8x8x3xf32> to vector<64x3xf32>
    %340 = arith.truncf %339 : vector<64x3xf32> to vector<64x3xbf16>
    %c42 = arith.constant 42 : index
    %c0_298 = arith.constant 0 : index
    %c0_299 = arith.constant 0 : index
    %341 = vector.load %arg3[%c42, %c0_298, %c0_299] : memref<49x3x64xbf16, #tpu.memory_space<vmem>>, vector<1x3x64xbf16>
    %342 = vector.shape_cast %341 : vector<1x3x64xbf16> to vector<3x64xbf16>
    %cst_300 = arith.constant dense<0.000000e+00> : vector<64x64xf32>
    %343 = tpu.matmul %340, %342, %cst_300 {dimension_numbers = #tpu.dot_dimension_numbers<[1], [0], [0], [1], [0, 0, 1, 1], [], []>} : vector<64x3xbf16>, vector<3x64xbf16>, vector<64x64xf32> -> vector<64x64xf32>
    %344 = arith.addf %336, %343 : vector<64x64xf32>
    %c1_301 = arith.constant 1 : index
    %c3_302 = arith.constant 3 : index
    %c0_303 = arith.constant 0 : index
    %c0_304 = arith.constant 0 : index
    %345 = vector.load %arg2[%c1_301, %c3_302, %c0_303, %c0_304] : memref<4x11x11x3xf32, #tpu.memory_space<vmem>>, vector<1x8x8x3xf32>
    %346 = vector.shape_cast %345 : vector<1x8x8x3xf32> to vector<8x8x3xf32>
    %347 = vector.shape_cast %346 : vector<8x8x3xf32> to vector<64x3xf32>
    %348 = arith.truncf %347 : vector<64x3xf32> to vector<64x3xbf16>
    %c43 = arith.constant 43 : index
    %c0_305 = arith.constant 0 : index
    %c0_306 = arith.constant 0 : index
    %349 = vector.load %arg3[%c43, %c0_305, %c0_306] : memref<49x3x64xbf16, #tpu.memory_space<vmem>>, vector<1x3x64xbf16>
    %350 = vector.shape_cast %349 : vector<1x3x64xbf16> to vector<3x64xbf16>
    %cst_307 = arith.constant dense<0.000000e+00> : vector<64x64xf32>
    %351 = tpu.matmul %348, %350, %cst_307 {dimension_numbers = #tpu.dot_dimension_numbers<[1], [0], [0], [1], [0, 0, 1, 1], [], []>} : vector<64x3xbf16>, vector<3x64xbf16>, vector<64x64xf32> -> vector<64x64xf32>
    %352 = arith.addf %344, %351 : vector<64x64xf32>
    %c0_308 = arith.constant 0 : index
    %c3_309 = arith.constant 3 : index
    %c1_310 = arith.constant 1 : index
    %c0_311 = arith.constant 0 : index
    %353 = vector.load %arg2[%c0_308, %c3_309, %c1_310, %c0_311] : memref<4x11x11x3xf32, #tpu.memory_space<vmem>>, vector<1x8x8x3xf32>
    %354 = vector.shape_cast %353 : vector<1x8x8x3xf32> to vector<8x8x3xf32>
    %355 = vector.shape_cast %354 : vector<8x8x3xf32> to vector<64x3xf32>
    %356 = arith.truncf %355 : vector<64x3xf32> to vector<64x3xbf16>
    %c44 = arith.constant 44 : index
    %c0_312 = arith.constant 0 : index
    %c0_313 = arith.constant 0 : index
    %357 = vector.load %arg3[%c44, %c0_312, %c0_313] : memref<49x3x64xbf16, #tpu.memory_space<vmem>>, vector<1x3x64xbf16>
    %358 = vector.shape_cast %357 : vector<1x3x64xbf16> to vector<3x64xbf16>
    %cst_314 = arith.constant dense<0.000000e+00> : vector<64x64xf32>
    %359 = tpu.matmul %356, %358, %cst_314 {dimension_numbers = #tpu.dot_dimension_numbers<[1], [0], [0], [1], [0, 0, 1, 1], [], []>} : vector<64x3xbf16>, vector<3x64xbf16>, vector<64x64xf32> -> vector<64x64xf32>
    %360 = arith.addf %352, %359 : vector<64x64xf32>
    %c1_315 = arith.constant 1 : index
    %c3_316 = arith.constant 3 : index
    %c1_317 = arith.constant 1 : index
    %c0_318 = arith.constant 0 : index
    %361 = vector.load %arg2[%c1_315, %c3_316, %c1_317, %c0_318] : memref<4x11x11x3xf32, #tpu.memory_space<vmem>>, vector<1x8x8x3xf32>
    %362 = vector.shape_cast %361 : vector<1x8x8x3xf32> to vector<8x8x3xf32>
    %363 = vector.shape_cast %362 : vector<8x8x3xf32> to vector<64x3xf32>
    %364 = arith.truncf %363 : vector<64x3xf32> to vector<64x3xbf16>
    %c45 = arith.constant 45 : index
    %c0_319 = arith.constant 0 : index
    %c0_320 = arith.constant 0 : index
    %365 = vector.load %arg3[%c45, %c0_319, %c0_320] : memref<49x3x64xbf16, #tpu.memory_space<vmem>>, vector<1x3x64xbf16>
    %366 = vector.shape_cast %365 : vector<1x3x64xbf16> to vector<3x64xbf16>
    %cst_321 = arith.constant dense<0.000000e+00> : vector<64x64xf32>
    %367 = tpu.matmul %364, %366, %cst_321 {dimension_numbers = #tpu.dot_dimension_numbers<[1], [0], [0], [1], [0, 0, 1, 1], [], []>} : vector<64x3xbf16>, vector<3x64xbf16>, vector<64x64xf32> -> vector<64x64xf32>
    %368 = arith.addf %360, %367 : vector<64x64xf32>
    %c0_322 = arith.constant 0 : index
    %c3_323 = arith.constant 3 : index
    %c2_324 = arith.constant 2 : index
    %c0_325 = arith.constant 0 : index
    %369 = vector.load %arg2[%c0_322, %c3_323, %c2_324, %c0_325] : memref<4x11x11x3xf32, #tpu.memory_space<vmem>>, vector<1x8x8x3xf32>
    %370 = vector.shape_cast %369 : vector<1x8x8x3xf32> to vector<8x8x3xf32>
    %371 = vector.shape_cast %370 : vector<8x8x3xf32> to vector<64x3xf32>
    %372 = arith.truncf %371 : vector<64x3xf32> to vector<64x3xbf16>
    %c46 = arith.constant 46 : index
    %c0_326 = arith.constant 0 : index
    %c0_327 = arith.constant 0 : index
    %373 = vector.load %arg3[%c46, %c0_326, %c0_327] : memref<49x3x64xbf16, #tpu.memory_space<vmem>>, vector<1x3x64xbf16>
    %374 = vector.shape_cast %373 : vector<1x3x64xbf16> to vector<3x64xbf16>
    %cst_328 = arith.constant dense<0.000000e+00> : vector<64x64xf32>
    %375 = tpu.matmul %372, %374, %cst_328 {dimension_numbers = #tpu.dot_dimension_numbers<[1], [0], [0], [1], [0, 0, 1, 1], [], []>} : vector<64x3xbf16>, vector<3x64xbf16>, vector<64x64xf32> -> vector<64x64xf32>
    %376 = arith.addf %368, %375 : vector<64x64xf32>
    %c1_329 = arith.constant 1 : index
    %c3_330 = arith.constant 3 : index
    %c2_331 = arith.constant 2 : index
    %c0_332 = arith.constant 0 : index
    %377 = vector.load %arg2[%c1_329, %c3_330, %c2_331, %c0_332] : memref<4x11x11x3xf32, #tpu.memory_space<vmem>>, vector<1x8x8x3xf32>
    %378 = vector.shape_cast %377 : vector<1x8x8x3xf32> to vector<8x8x3xf32>
    %379 = vector.shape_cast %378 : vector<8x8x3xf32> to vector<64x3xf32>
    %380 = arith.truncf %379 : vector<64x3xf32> to vector<64x3xbf16>
    %c47 = arith.constant 47 : index
    %c0_333 = arith.constant 0 : index
    %c0_334 = arith.constant 0 : index
    %381 = vector.load %arg3[%c47, %c0_333, %c0_334] : memref<49x3x64xbf16, #tpu.memory_space<vmem>>, vector<1x3x64xbf16>
    %382 = vector.shape_cast %381 : vector<1x3x64xbf16> to vector<3x64xbf16>
    %cst_335 = arith.constant dense<0.000000e+00> : vector<64x64xf32>
    %383 = tpu.matmul %380, %382, %cst_335 {dimension_numbers = #tpu.dot_dimension_numbers<[1], [0], [0], [1], [0, 0, 1, 1], [], []>} : vector<64x3xbf16>, vector<3x64xbf16>, vector<64x64xf32> -> vector<64x64xf32>
    %384 = arith.addf %376, %383 : vector<64x64xf32>
    %c0_336 = arith.constant 0 : index
    %c3_337 = arith.constant 3 : index
    %c3_338 = arith.constant 3 : index
    %c0_339 = arith.constant 0 : index
    %385 = vector.load %arg2[%c0_336, %c3_337, %c3_338, %c0_339] : memref<4x11x11x3xf32, #tpu.memory_space<vmem>>, vector<1x8x8x3xf32>
    %386 = vector.shape_cast %385 : vector<1x8x8x3xf32> to vector<8x8x3xf32>
    %387 = vector.shape_cast %386 : vector<8x8x3xf32> to vector<64x3xf32>
    %388 = arith.truncf %387 : vector<64x3xf32> to vector<64x3xbf16>
    %c48 = arith.constant 48 : index
    %c0_340 = arith.constant 0 : index
    %c0_341 = arith.constant 0 : index
    %389 = vector.load %arg3[%c48, %c0_340, %c0_341] : memref<49x3x64xbf16, #tpu.memory_space<vmem>>, vector<1x3x64xbf16>
    %390 = vector.shape_cast %389 : vector<1x3x64xbf16> to vector<3x64xbf16>
    %cst_342 = arith.constant dense<0.000000e+00> : vector<64x64xf32>
    %391 = tpu.matmul %388, %390, %cst_342 {dimension_numbers = #tpu.dot_dimension_numbers<[1], [0], [0], [1], [0, 0, 1, 1], [], []>} : vector<64x3xbf16>, vector<3x64xbf16>, vector<64x64xf32> -> vector<64x64xf32>
    %392 = arith.addf %384, %391 : vector<64x64xf32>
    %393 = vector.shape_cast %392 : vector<64x64xf32> to vector<8x8x64xf32>
    %c0_343 = arith.constant 0 : index
    %c0_344 = arith.constant 0 : index
    %c0_345 = arith.constant 0 : index
    %c0_346 = arith.constant 0 : index
    %394 = vector.load %arg6[%c0_343, %c0_344, %c0_345, %c0_346] : memref<1x8x8x64xf32, #tpu.memory_space<vmem>>, vector<1x8x8x64xf32>
    %395 = vector.shape_cast %394 : vector<1x8x8x64xf32> to vector<8x8x64xf32>
    %396 = vector.shape_cast %393 : vector<8x8x64xf32> to vector<1x8x8x64xf32>
    tpu.vector_store %arg6[%c0_343, %c0_344, %c0_345, %c0_346], %396 {strides = array<i32>} : memref<1x8x8x64xf32, #tpu.memory_space<vmem>>, vector<1x8x8x64xf32>,
    %cst_347 = arith.constant dense<0.000000e+00> : vector<8x64xf32>
    %397 = vector.multi_reduction <add>, %393, %cst_347 [0] : vector<8x8x64xf32> to vector<8x64xf32>
    %cst_348 = arith.constant dense<0.000000e+00> : vector<64xf32>
    %398 = vector.multi_reduction <add>, %397, %cst_348 [0] : vector<8x64xf32> to vector<64xf32>
    %399 = vector.shape_cast %398 : vector<64xf32> to vector<1x64xf32>
    %400 = arith.mulf %393, %393 : vector<8x8x64xf32>
    %cst_349 = arith.constant dense<0.000000e+00> : vector<8x64xf32>
    %401 = vector.multi_reduction <add>, %400, %cst_349 [0] : vector<8x8x64xf32> to vector<8x64xf32>
    %cst_350 = arith.constant dense<0.000000e+00> : vector<64xf32>
    %402 = vector.multi_reduction <add>, %401, %cst_350 [0] : vector<8x64xf32> to vector<64xf32>
    %403 = vector.shape_cast %402 : vector<64xf32> to vector<1x64xf32>
    %404 = tpu.concatenate %399, %403 in 0 : vector<1x64xf32>, vector<1x64xf32> -> vector<2x64xf32>
    %c0_351 = arith.constant 0 : index
    %c0_352 = arith.constant 0 : index
    %c0_353 = arith.constant 0 : index
    %405 = vector.load %arg7[%c0_351, %c0_352, %c0_353] : memref<1x2x64xf32, #tpu.memory_space<vmem>>, vector<1x2x64xf32>
    %406 = vector.shape_cast %405 : vector<1x2x64xf32> to vector<2x64xf32>
    %407 = vector.shape_cast %404 : vector<2x64xf32> to vector<1x2x64xf32>
    tpu.vector_store %arg7[%c0_351, %c0_352, %c0_353], %407 {strides = array<i32>} : memref<1x2x64xf32, #tpu.memory_space<vmem>>, vector<1x2x64xf32>,
    return
  }
  func.func @transform_0(%arg0: i32, %arg1: i32) -> (i32, i32, i32, i32) {
    %c0_i32 = arith.constant 0 : i32
    %c0_i32_0 = arith.constant 0 : i32
    %c0_i32_1 = arith.constant 0 : i32
    %c0_i32_2 = arith.constant 0 : i32
    return %arg0, %c0_i32, %c0_i32_0, %c0_i32_1 : i32, i32, i32, i32
  }
  func.func @transform_1(%arg0: i32, %arg1: i32) -> (i32, i32, i32) {
    %c0_i32 = arith.constant 0 : i32
    %c0_i32_0 = arith.constant 0 : i32
    %c0_i32_1 = arith.constant 0 : i32
    return %c0_i32, %c0_i32_0, %arg1 : i32, i32, i32
  }
  func.func @transform_2(%arg0: i32, %arg1: i32) -> (i32, i32) {
    %c0_i32 = arith.constant 0 : i32
    %c0_i32_0 = arith.constant 0 : i32
    %c0_i32_1 = arith.constant 0 : i32
    return %c0_i32, %c0_i32_0 : i32, i32
  }
  func.func @transform_3(%arg0: i32, %arg1: i32) -> (i32, i32) {
    %c0_i32 = arith.constant 0 : i32
    %c0_i32_0 = arith.constant 0 : i32
    %c0_i32_1 = arith.constant 0 : i32
    return %c0_i32, %c0_i32_0 : i32, i32
  }
  func.func @transform_4(%arg0: i32, %arg1: i32) -> (i32, i32, i32, i32) {
    %c0_i32 = arith.constant 0 : i32
    %c0_i32_0 = arith.constant 0 : i32
    %c0_i32_1 = arith.constant 0 : i32
    return %arg0, %c0_i32, %c0_i32_0, %arg1 : i32, i32, i32, i32
  }
  func.func @transform_5(%arg0: i32, %arg1: i32) -> (i32, i32, i32) {
    %c0_i32 = arith.constant 0 : i32
    %c0_i32_0 = arith.constant 0 : i32
    return %arg0, %c0_i32, %arg1 : i32, i32, i32
  }
}

</mosaic_0001>

<llo_original>
// kernel: tpu_custom_call.1
$region0: #{tpu_custom_call.1}
  #allocation0 [shape = 'u32[]', space=smem, size = 0x4, offset = 0x4, fixed_abs, tag = 'smem constant byte address 0x4 - core index']
  #allocation1 [shape = 'u32[72,128]{1,0:T(1,128)}', space=vmem, size = 0x9000, scoped, tag = 'internal scratch']
  %s0 = inlined_call_operand.vmem [shape: f32[8,11,11,3], index: 0, kind: input, shape index: {}]
  %s1 = inlined_call_operand.vmem [shape: bf16[49,3,64], index: 1, kind: input, shape index: {}]
  %s2 = inlined_call_operand.vmem [shape: f32[1,3], index: 2, kind: input, shape index: {}]
  %s3 = inlined_call_operand.vmem [shape: f32[1,3], index: 3, kind: input, shape index: {}]
  %s4 = inlined_call_operand.hbm [shape: f32[2,8,8,64], index: 4, kind: output, shape index: {0}]
  %s5 = inlined_call_operand.hbm [shape: f32[2,2,64], index: 5, kind: output, shape index: {1}]
  %6 = xla_tuple %s4, %s5
  %s7 = sld [smem:[#allocation0]]
  $region57: #{tpu_custom_call.1} parent=0
    _
  %s9 = ssub.s32 1, %s7
  %s10 = scalar_select 0, %s9, %s7
  $region1: #{tpu_custom_call.1} parent=0
    #allocation2 [shape = 'u8[65536]{0}', space=vmem, size = 0x10000, scoped, tag = 'output window, operand 0']
    #allocation3 [shape = 's32[2]{0}', space=sflag, size = 0x8, scoped, tag = 'scoped memory for tpu_custom_call.1']
    #allocation4 [shape = 'u8[2048]{0}', space=vmem, size = 0x800, scoped, tag = 'output window, operand 1']
    #allocation5 [shape = 's32[2]{0}', space=sflag, size = 0x8, scoped, tag = 'scoped memory for tpu_custom_call.1']
    %11 = vsyncpa [#allocation3], 0
    %s12 = scalar_lea.sflag [#allocation3], 1
    %13 = vsyncpa %s12, 0
    %14 = vsyncpa [#allocation5], 0
    %s15 = scalar_lea.sflag [#allocation5], 1
    %16 = vsyncpa %s15, 0
    loop: start=0, step=1, limit=4
    $region2: #{tpu_custom_call.1} parent=1 // loop_pre_header
      _
    $region3: #{tpu_custom_call.1} parent=1 // loop_header
      %s18 = sphi 0, %s22
      %p19 = scmp.ge.s32.totalorder %s18, 4
      %s25 = sphi 0, %s37
      %s26 = sphi 0, %s33
      %s27 = sphi 0, %s25
      %s28 = sphi 0, %s26
      %s29 = sphi 0, %s27
      %s30 = sphi 0, %s28
      %s40 = sphi 0, %s42
      %s43 = sphi 0, %s40
      %s44 = sphi 0, %s43
      %s60 = sphi 0, %s44
      %s66 = sphi 0, %s68
      %s69 = sphi 0, %s66
      %s70 = sphi 0, %s69
      %s86 = sphi 0, %s70
      %s90 = sphi 0, %s90
      %s92 = sphi 0, %s90
      %s93 = sphi 0, %s92
      %s107 = sphi 0, %s93
      %s111 = sphi 0, %s111
      %s113 = sphi 0, %s111
      %s114 = sphi 0, %s113
      %s128 = sphi 0, %s114
      %s136 = sphi 0, %s138
      %s139 = sphi 0, %s136
      %s140 = sphi 0, %s139
      %s156 = sphi 0, %s140
      %s164 = sphi 0, %s166
      %s167 = sphi 0, %s164
      %s168 = sphi 0, %s167
      %s184 = sphi 0, %s168
    $region4: #{tpu_custom_call.1} parent=1 // loop_header_branch
      %21 = sbr.rel (%p19) target = $region8
    $region5: #{tpu_custom_call.1} parent=1 // loop_body
      %s23 = ssub.s32 %s18, 1
      %s24 = ssub.s32 %s18, 2
      %s31 = sadd.s32 1, %s26
      %p32 = scmp.ge.s32.totalorder %s31, 1
      %s33 = scalar_select %p32, 0, %s31
      %s34 = sadd.s32 1, %s25
      %s35 = scalar_select %p32, %s34, %s25
      %p36 = scmp.ge.s32.totalorder %s35, 2
      %s37 = scalar_select %p36, 0, %s35
      %s38 = ssub.s32 %s25, %s37
      %p39 = scmp.eq.s32.totalorder %s38, 0
      %s41 = sadd.s32 %s40, 1
      %s42 = scalar_select %p39, %s40, %s41
      %p45 = pneg %p39
      %p46 = scmp.eq.s32.totalorder %s18, 1
      %p47 = por %p45, %p46
      %p48 = scmp.ne.s32.totalorder %s40, %s43
      %p49 = scmp.eq.s32.totalorder %s18, 0
      %p50 = por %p48, %p49
      %p51 = scmp.ne.s32.totalorder %s40, %s43
      %p52 = scmp.eq.s32.totalorder %s23, 1
      %p53 = por %p51, %p52
      %p54 = scmp.ne.s32.totalorder %s43, %s44
      %p55 = scmp.eq.s32.totalorder %s23, 0
      %p56 = por %p54, %p55
      %p57 = scmp.ne.s32.totalorder %s43, %s44
      %p58 = scmp.eq.s32.totalorder %s24, 1
      %p59 = por %p57, %p58
      %p61 = scmp.ne.s32.totalorder %s44, %s60
      %p62 = scmp.eq.s32.totalorder %s24, 0
      %p63 = por %p61, %p62
      %s64 = ssub.s32 %s26, %s33
      %p65 = scmp.eq.s32.totalorder %s64, 0
      %s67 = sadd.s32 %s66, 1
      %s68 = scalar_select %p65, %s66, %s67
      %p71 = pneg %p65
      %p72 = scmp.eq.s32.totalorder %s18, 1
      %p73 = por %p71, %p72
      %p74 = scmp.ne.s32.totalorder %s66, %s69
      %p75 = scmp.eq.s32.totalorder %s18, 0
      %p76 = por %p74, %p75
      %p77 = scmp.ne.s32.totalorder %s66, %s69
      %p78 = scmp.eq.s32.totalorder %s23, 1
      %p79 = por %p77, %p78
      %p80 = scmp.ne.s32.totalorder %s69, %s70
      %p81 = scmp.eq.s32.totalorder %s23, 0
      %p82 = por %p80, %p81
      %p83 = scmp.ne.s32.totalorder %s69, %s70
      %p84 = scmp.eq.s32.totalorder %s24, 1
      %p85 = por %p83, %p84
      %p87 = scmp.ne.s32.totalorder %s70, %s86
      %p88 = scmp.eq.s32.totalorder %s24, 0
      %p89 = por %p87, %p88
      %s91 = sadd.s32 %s90, 1
      %p94 = scmp.eq.s32.totalorder %s18, 1
      %p95 = scmp.ne.s32.totalorder %s90, %s92
      %p96 = scmp.eq.s32.totalorder %s18, 0
      %p97 = por %p95, %p96
      %p98 = scmp.ne.s32.totalorder %s90, %s92
      %p99 = scmp.eq.s32.totalorder %s23, 1
      %p100 = por %p98, %p99
      %p101 = scmp.ne.s32.totalorder %s92, %s93
      %p102 = scmp.eq.s32.totalorder %s23, 0
      %p103 = por %p101, %p102
      %p104 = scmp.ne.s32.totalorder %s92, %s93
      %p105 = scmp.eq.s32.totalorder %s24, 1
      %p106 = por %p104, %p105
      %p108 = scmp.ne.s32.totalorder %s93, %s107
      %p109 = scmp.eq.s32.totalorder %s24, 0
      %p110 = por %p108, %p109
      %s112 = sadd.s32 %s111, 1
      %p115 = scmp.eq.s32.totalorder %s18, 1
      %p116 = scmp.ne.s32.totalorder %s111, %s113
      %p117 = scmp.eq.s32.totalorder %s18, 0
      %p118 = por %p116, %p117
      %p119 = scmp.ne.s32.totalorder %s111, %s113
      %p120 = scmp.eq.s32.totalorder %s23, 1
      %p121 = por %p119, %p120
      %p122 = scmp.ne.s32.totalorder %s113, %s114
      %p123 = scmp.eq.s32.totalorder %s23, 0
      %p124 = por %p122, %p123
      %p125 = scmp.ne.s32.totalorder %s113, %s114
      %p126 = scmp.eq.s32.totalorder %s24, 1
      %p127 = por %p125, %p126
      %p129 = scmp.ne.s32.totalorder %s114, %s128
      %p130 = scmp.eq.s32.totalorder %s24, 0
      %p131 = por %p129, %p130
      %s132 = ssub.s32 %s25, %s37
      %s133 = ssub.s32 %s26, %s33
      %s134 = sor.u32 %s132, %s133
      %p135 = scmp.eq.s32.totalorder %s134, 0
      %s137 = sadd.s32 %s136, 1
      %s138 = scalar_select %p135, %s136, %s137
      %p141 = pneg %p135
      %p142 = scmp.eq.s32.totalorder %s18, 1
      %p143 = por %p141, %p142
      %p144 = scmp.ne.s32.totalorder %s136, %s139
      %p145 = scmp.eq.s32.totalorder %s18, 0
      %p146 = por %p144, %p145
      %p147 = scmp.ne.s32.totalorder %s136, %s139
      %p148 = scmp.eq.s32.totalorder %s23, 1
      %p149 = por %p147, %p148
      %p150 = scmp.ne.s32.totalorder %s139, %s140
      %p151 = scmp.eq.s32.totalorder %s23, 0
      %p152 = por %p150, %p151
      %p153 = scmp.ne.s32.totalorder %s139, %s140
      %p154 = scmp.eq.s32.totalorder %s24, 1
      %p155 = por %p153, %p154
      %p157 = scmp.ne.s32.totalorder %s140, %s156
      %p158 = scmp.eq.s32.totalorder %s24, 0
      %p159 = por %p157, %p158
      %s160 = ssub.s32 %s25, %s37
      %s161 = ssub.s32 %s26, %s33
      %s162 = sor.u32 %s160, %s161
      %p163 = scmp.eq.s32.totalorder %s162, 0
      %s165 = sadd.s32 %s164, 1
      %s166 = scalar_select %p163, %s164, %s165
      %p169 = pneg %p163
      %p170 = scmp.eq.s32.totalorder %s18, 1
      %p171 = por %p169, %p170
      %p172 = scmp.ne.s32.totalorder %s164, %s167
      %p173 = scmp.eq.s32.totalorder %s18, 0
      %p174 = por %p172, %p173
      %p175 = scmp.ne.s32.totalorder %s164, %s167
      %p176 = scmp.eq.s32.totalorder %s23, 1
      %p177 = por %p175, %p176
      %p178 = scmp.ne.s32.totalorder %s167, %s168
      %p179 = scmp.eq.s32.totalorder %s23, 0
      %p180 = por %p178, %p179
      %p181 = scmp.ne.s32.totalorder %s167, %s168
      %p182 = scmp.eq.s32.totalorder %s24, 1
      %p183 = por %p181, %p182
      %p185 = scmp.ne.s32.totalorder %s168, %s184
      %p186 = scmp.eq.s32.totalorder %s24, 0
      %p187 = por %p185, %p186
      %p188 = scmp.le.s32.totalorder 1, %s18
      %p189 = scmp.lt.s32.totalorder %s18, 3
      %p190 = pnand %p188, %p189
      %p191 = pneg %p190
      // Predicated region
      $region9: #{tpu_custom_call.1} parent=5 // pred_check
        _
      $region10: #{tpu_custom_call.1} parent=5 // pred_check_branch
        %193 = sbr.rel (%p190) target = $region12
      $region11: #{tpu_custom_call.1} parent=5 // pred_region
        %s194 = ssub.s32 %s18, 1
        // Predicated region
        $region13: #{tpu_custom_call.1} parent=11 // pred_check
          %p195 = pneg %p82
        $region14: #{tpu_custom_call.1} parent=11 // pred_check_branch
          %197 = sbr.rel (%p195) target = $region16
        $region15: #{tpu_custom_call.1} parent=11 // pred_region
          %p198 = scmp.lt.s32.totalorder %s28, 0
          %s199 = scalar_select %p198, %s28, 0
          %s200 = smul.addr %s199, 2
          %s201 = scalar_lea.vmem %s1, %s200
        $region16: #{tpu_custom_call.1} parent=11 // pred_fallthru
          _
        // Predicated region
        $region17: #{tpu_custom_call.1} parent=11 // pred_check
          %p202 = pneg %p103
        $region18: #{tpu_custom_call.1} parent=11 // pred_check_branch
          %204 = sbr.rel (%p202) target = $region20
        $region19: #{tpu_custom_call.1} parent=11 // pred_region
          _
        $region20: #{tpu_custom_call.1} parent=11 // pred_fallthru
          _
        // Predicated region
        $region21: #{tpu_custom_call.1} parent=11 // pred_check
          %p205 = pneg %p124
        $region22: #{tpu_custom_call.1} parent=11 // pred_check_branch
          %207 = sbr.rel (%p205) target = $region24
        $region23: #{tpu_custom_call.1} parent=11 // pred_region
          _
        $region24: #{tpu_custom_call.1} parent=11 // pred_fallthru
          _
      $region12: #{tpu_custom_call.1} parent=5 // pred_fallthru
        _
      %p208 = scmp.lt.s32.totalorder %s18, 2
      // Predicated region
      $region25: #{tpu_custom_call.1} parent=5 // pred_check
        %p209 = pneg %p208
      $region26: #{tpu_custom_call.1} parent=5 // pred_check_branch
        %211 = sbr.rel (%p209) target = $region28
      $region27: #{tpu_custom_call.1} parent=5 // pred_region
        // Predicated region
        $region29: #{tpu_custom_call.1} parent=27 // pred_check
          %p212 = pneg %p50
        $region30: #{tpu_custom_call.1} parent=27 // pred_check_branch
          %214 = sbr.rel (%p212) target = $region32
        $region31: #{tpu_custom_call.1} parent=27 // pred_region
          %s215 = smul.u32 4, %s25
          %p216 = scmp.lt.s32.totalorder %s215, 7
          %s217 = scalar_select %p216, %s215, 7
          %s218 = smul.addr %s217, 22
          %s219 = smul.addr %s218, 8
          %s220 = scalar_lea.vmem %s0, %s219
          %s221 = smul.u32 4, %s25
        $region32: #{tpu_custom_call.1} parent=27 // pred_fallthru
          _
      $region28: #{tpu_custom_call.1} parent=5 // pred_fallthru
        _
      %p222 = scmp.le.s32.totalorder 1, %s18
      %p223 = scmp.lt.s32.totalorder %s18, 3
      %p224 = pnand %p222, %p223
      %p225 = pneg %p224
      // Predicated region
      $region33: #{tpu_custom_call.1} parent=5 // pred_check
        _
      $region34: #{tpu_custom_call.1} parent=5 // pred_check_branch
        %227 = sbr.rel (%p224) target = $region36
      $region35: #{tpu_custom_call.1} parent=5 // pred_region
        %s228 = ssub.s32 %s18, 1
        %s229 = smul.u32 4, %s27
        %p230 = scmp.lt.s32.totalorder %s229, 7
        %s231 = scalar_select %p230, %s229, 7
        %s232 = smul.addr %s231, 22
        %s233 = smul.addr %s232, 8
        %s234 = scalar_lea.vmem %s0, %s233
        %p235 = pneg %p56
        %p236 = pneg %p53
        %p237 = scmp.lt.s32.totalorder %s28, 0
        %s238 = scalar_select %p237, %s28, 0
        %s239 = smul.addr %s238, 2
        %s240 = scalar_lea.vmem %s1, %s239
        %p241 = pneg %p82
        %p242 = pneg %p79
        %p243 = pneg %p103
        %p244 = pneg %p100
        %p245 = pneg %p124
        %p246 = pneg %p121
        %p247 = pneg %p152
        %p248 = pneg %p149
        %s249 = sand.u32 %s139, 1
        %s250 = scalar_lea.sflag [#allocation3], %s249
        %s251 = sand.u32 %s139, 1
        %s252 = smul.addr %s251, 64
        %s253 = scalar_lea.vmem [#allocation2], %s252
        %p254 = pneg %p180
        %p255 = pneg %p177
        %s256 = sand.u32 %s167, 1
        %s257 = scalar_lea.sflag [#allocation5], %s256
        %s258 = sand.u32 %s167, 1
        %s259 = smul.addr %s258, 2
        %s260 = scalar_lea.vmem [#allocation4], %s259
        %s261 = smul.u32 4, %s27
        %p262 = scmp.lt.s32.totalorder %s261, 7
        %s263 = scalar_select %p262, %s261, 7
        %s264 = smul.addr %s263, 22
        %s265 = smul.addr %s264, 8
        %s266 = scalar_lea.vmem %s0, %s265
        %s267 = smul.u32 4, %s27
        %p268 = scmp.lt.s32.totalorder %s28, 0
        %s269 = scalar_select %p268, %s28, 0
        %s270 = smul.addr %s269, 2
        %s271 = scalar_lea.vmem %s1, %s270
        %v273 = vld [vmem:[%s266] sm:$0xff]
        %v274 = vld [vmem:[%s266 + $0x10] sm:$0xff]
        %v275 = vld [vmem:[%s266 + $0x20] sm:$0xff]
        %v276 = vld [vmem:[%s266 + $0x30] sm:$0xff]
        %v277 = vld [vmem:[%s266 + $0x40] sm:$0xff]
        %v278 = vld [vmem:[%s266 + $0x50] sm:$0xff]
        %v279 = vld [vmem:[%s266 + $0x60] sm:$0xff]
        %v280 = vld [vmem:[%s266 + $0x70] sm:$0xff]
        %v281 = vpack.c.bf16 %v274, %v273
        %v282 = vpack.c.bf16 %v276, %v275
        %v283 = vpack.c.bf16 %v278, %v277
        %v284 = vpack.c.bf16 %v280, %v279
        %v285 = vld [vmem:[%s271] sm:$0x3]
        %s286 = scalar_lea.vmem %s266, 176
        %v287 = vld [vmem:[%s286] sm:$0xff]
        %v288 = vld [vmem:[%s286 + $0x10] sm:$0xff]
        %v289 = vld [vmem:[%s286 + $0x20] sm:$0xff]
        %v290 = vld [vmem:[%s286 + $0x30] sm:$0xff]
        %v291 = vld [vmem:[%s286 + $0x40] sm:$0xff]
        %v292 = vld [vmem:[%s286 + $0x50] sm:$0xff]
        %v293 = vld [vmem:[%s286 + $0x60] sm:$0xff]
        %v294 = vld [vmem:[%s286 + $0x70] sm:$0xff]
        %v295 = vpack.c.bf16 %v288, %v287
        %v296 = vpack.c.bf16 %v290, %v289
        %v297 = vpack.c.bf16 %v292, %v291
        %v298 = vpack.c.bf16 %v294, %v293
        %s299 = scalar_lea.vmem %s271, 2
        %v300 = vld [vmem:[%s299] sm:$0x3]
        %vm301 = vcmask 23552
        %v303 = vsel %vm301, %v295, 0
        %v306 = vsel %vm301, %v296, 0
        %v309 = vsel %vm301, %v297, 0
        %v312 = vsel %vm301, %v298, 0
        %vm314 = vcmask 1040384
        %vm315 = vcmask 1041408
        %v316 = vsel %vm314, 4294967295, 65535
        %v317 = vsel %vm315, %v316, 0
        %v319 = vand.u32 %v300, %v317
        %321 = vmatpush.bf16.msra.mxu0 0
        %322 = vmatpush.bf16.msra.mxu0 0
        %323 = vmatpush.bf16.msra.mxu0 0
        %324 = vmatpush.bf16.msra.mxu0 0
        %325 = vmatpush.bf16.msra.mxu0 0
        %326 = vmatpush.bf16.msra.mxu0 0
        %327 = vmatpush.bf16.msra.mxu0 0
        %328 = vmatpush.bf16.msra.mxu0 %v319
        %329 = vmatmul.bf16.gmra.mxu0 %v303
        %v330 = vpop.f32.mrf.mxu0
        %v331 = vadd.f32 0.0, %v330
        %v332 = vpop.f32.mrf.mxu0
        %v333 = vadd.f32 0.0, %v332
        %334 = vmatmul.bf16.gmra.mxu0 %v306
        %v335 = vpop.f32.mrf.mxu0
        %v336 = vadd.f32 0.0, %v335
        %v337 = vpop.f32.mrf.mxu0
        %v338 = vadd.f32 0.0, %v337
        %339 = vmatmul.bf16.gmra.mxu0 %v309
        %v340 = vpop.f32.mrf.mxu0
        %v341 = vadd.f32 0.0, %v340
        %v342 = vpop.f32.mrf.mxu0
        %v343 = vadd.f32 0.0, %v342
        %344 = vmatmul.bf16.gmra.mxu0 %v312
        %v345 = vpop.f32.mrf.mxu0
        %v346 = vadd.f32 0.0, %v345
        %v347 = vpop.f32.mrf.mxu0
        %v348 = vadd.f32 0.0, %v347
        %349 = vdwg.mxu0
        %v351 = vsel %vm301, %v281, 0
        %v354 = vsel %vm301, %v282, 0
        %v357 = vsel %vm301, %v283, 0
        %v360 = vsel %vm301, %v284, 0
        %v363 = vand.u32 %v285, %v317
        %365 = vmatpush.bf16.msra.mxu0 0
        %366 = vmatpush.bf16.msra.mxu0 0
        %367 = vmatpush.bf16.msra.mxu0 0
        %368 = vmatpush.bf16.msra.mxu0 0
        %369 = vmatpush.bf16.msra.mxu0 0
        %370 = vmatpush.bf16.msra.mxu0 0
        %371 = vmatpush.bf16.msra.mxu0 0
        %372 = vmatpush.bf16.msra.mxu0 %v363
        %373 = vmatmul.bf16.gmra.mxu0 %v351
        %v374 = vpop.f32.mrf.mxu0
        %v375 = vadd.f32 %v331, %v374
        %v376 = vpop.f32.mrf.mxu0
        %v377 = vadd.f32 %v333, %v376
        %378 = vmatmul.bf16.gmra.mxu0 %v354
        %v379 = vpop.f32.mrf.mxu0
        %v380 = vadd.f32 %v336, %v379
        %v381 = vpop.f32.mrf.mxu0
        %v382 = vadd.f32 %v338, %v381
        %383 = vmatmul.bf16.gmra.mxu0 %v357
        %v384 = vpop.f32.mrf.mxu0
        %v385 = vadd.f32 %v341, %v384
        %v386 = vpop.f32.mrf.mxu0
        %v387 = vadd.f32 %v343, %v386
        %388 = vmatmul.bf16.gmra.mxu0 %v360
        %v389 = vpop.f32.mrf.mxu0
        %v390 = vadd.f32 %v346, %v389
        %v391 = vpop.f32.mrf.mxu0
        %v392 = vadd.f32 %v348, %v391
        %393 = vdwg.mxu0
        %v394 = vld [vmem:[%s266 + $0x1] sm:$0xff]
        %v395 = vld [vmem:[%s266 + $0x11] sm:$0xff]
        %v396 = vld [vmem:[%s266 + $0x21] sm:$0xff]
        %v397 = vld [vmem:[%s266 + $0x31] sm:$0xff]
        %v398 = vld [vmem:[%s266 + $0x41] sm:$0xff]
        %v399 = vld [vmem:[%s266 + $0x51] sm:$0xff]
        %v400 = vld [vmem:[%s266 + $0x61] sm:$0xff]
        %v401 = vld [vmem:[%s266 + $0x71] sm:$0xff]
        %v402 = vpack.c.bf16 %v395, %v394
        %v403 = vpack.c.bf16 %v397, %v396
        %v404 = vpack.c.bf16 %v399, %v398
        %v405 = vpack.c.bf16 %v401, %v400
        %s406 = scalar_lea.vmem %s271, 4
        %v407 = vld [vmem:[%s406] sm:$0x3]
        %v409 = vsel %vm301, %v402, 0
        %v412 = vsel %vm301, %v403, 0
        %v415 = vsel %vm301, %v404, 0
        %v418 = vsel %vm301, %v405, 0
        %v421 = vand.u32 %v407, %v317
        %423 = vmatpush.bf16.msra.mxu0 0
        %424 = vmatpush.bf16.msra.mxu0 0
        %425 = vmatpush.bf16.msra.mxu0 0
        %426 = vmatpush.bf16.msra.mxu0 0
        %427 = vmatpush.bf16.msra.mxu0 0
        %428 = vmatpush.bf16.msra.mxu0 0
        %429 = vmatpush.bf16.msra.mxu0 0
        %430 = vmatpush.bf16.msra.mxu0 %v421
        %431 = vmatmul.bf16.gmra.mxu0 %v409
        %v432 = vpop.f32.mrf.mxu0
        %v433 = vadd.f32 0.0, %v432
        %v434 = vpop.f32.mrf.mxu0
        %v435 = vadd.f32 0.0, %v434
        %436 = vmatmul.bf16.gmra.mxu0 %v412
        %v437 = vpop.f32.mrf.mxu0
        %v438 = vadd.f32 0.0, %v437
        %v439 = vpop.f32.mrf.mxu0
        %v440 = vadd.f32 0.0, %v439
        %441 = vmatmul.bf16.gmra.mxu0 %v415
        %v442 = vpop.f32.mrf.mxu0
        %v443 = vadd.f32 0.0, %v442
        %v444 = vpop.f32.mrf.mxu0
        %v445 = vadd.f32 0.0, %v444
        %446 = vmatmul.bf16.gmra.mxu0 %v418
        %v447 = vpop.f32.mrf.mxu0
        %v448 = vadd.f32 0.0, %v447
        %v449 = vpop.f32.mrf.mxu0
        %v450 = vadd.f32 0.0, %v449
        %451 = vdwg.mxu0
        %v452 = vadd.f32 %v375, %v433
        %v453 = vadd.f32 %v377, %v435
        %v454 = vadd.f32 %v380, %v438
        %v455 = vadd.f32 %v382, %v440
        %v456 = vadd.f32 %v385, %v443
        %v457 = vadd.f32 %v387, %v445
        %v458 = vadd.f32 %v390, %v448
        %v459 = vadd.f32 %v392, %v450
        %v460 = vld [vmem:[%s286 + $0x1] sm:$0xff]
        %v461 = vld [vmem:[%s286 + $0x11] sm:$0xff]
        %v462 = vld [vmem:[%s286 + $0x21] sm:$0xff]
        %v463 = vld [vmem:[%s286 + $0x31] sm:$0xff]
        %v464 = vld [vmem:[%s286 + $0x41] sm:$0xff]
        %v465 = vld [vmem:[%s286 + $0x51] sm:$0xff]
        %v466 = vld [vmem:[%s286 + $0x61] sm:$0xff]
        %v467 = vld [vmem:[%s286 + $0x71] sm:$0xff]
        %v468 = vpack.c.bf16 %v461, %v460
        %v469 = vpack.c.bf16 %v463, %v462
        %v470 = vpack.c.bf16 %v465, %v464
        %v471 = vpack.c.bf16 %v467, %v466
        %s472 = scalar_lea.vmem %s271, 6
        %v473 = vld [vmem:[%s472] sm:$0x3]
        %v475 = vsel %vm301, %v468, 0
        %v478 = vsel %vm301, %v469, 0
        %v481 = vsel %vm301, %v470, 0
        %v484 = vsel %vm301, %v471, 0
        %v487 = vand.u32 %v473, %v317
        %489 = vmatpush.bf16.msra.mxu0 0
        %490 = vmatpush.bf16.msra.mxu0 0
        %491 = vmatpush.bf16.msra.mxu0 0
        %492 = vmatpush.bf16.msra.mxu0 0
        %493 = vmatpush.bf16.msra.mxu0 0
        %494 = vmatpush.bf16.msra.mxu0 0
        %495 = vmatpush.bf16.msra.mxu0 0
        %496 = vmatpush.bf16.msra.mxu0 %v487
        %497 = vmatmul.bf16.gmra.mxu0 %v475
        %v498 = vpop.f32.mrf.mxu0
        %v499 = vadd.f32 0.0, %v498
        %v500 = vpop.f32.mrf.mxu0
        %v501 = vadd.f32 0.0, %v500
        %502 = vmatmul.bf16.gmra.mxu0 %v478
        %v503 = vpop.f32.mrf.mxu0
        %v504 = vadd.f32 0.0, %v503
        %v505 = vpop.f32.mrf.mxu0
        %v506 = vadd.f32 0.0, %v505
        %507 = vmatmul.bf16.gmra.mxu0 %v481
        %v508 = vpop.f32.mrf.mxu0
        %v509 = vadd.f32 0.0, %v508
        %v510 = vpop.f32.mrf.mxu0
        %v511 = vadd.f32 0.0, %v510
        %512 = vmatmul.bf16.gmra.mxu0 %v484
        %v513 = vpop.f32.mrf.mxu0
        %v514 = vadd.f32 0.0, %v513
        %v515 = vpop.f32.mrf.mxu0
        %v516 = vadd.f32 0.0, %v515
        %517 = vdwg.mxu0
        %v518 = vadd.f32 %v452, %v499
        %v519 = vadd.f32 %v453, %v501
        %v520 = vadd.f32 %v454, %v504
        %v521 = vadd.f32 %v455, %v506
        %v522 = vadd.f32 %v456, %v509
        %v523 = vadd.f32 %v457, %v511
        %v524 = vadd.f32 %v458, %v514
        %v525 = vadd.f32 %v459, %v516
        %v526 = vld [vmem:[%s266 + $0x2] sm:$0xff]
        %v527 = vld [vmem:[%s266 + $0x12] sm:$0xff]
        %v528 = vld [vmem:[%s266 + $0x22] sm:$0xff]
        %v529 = vld [vmem:[%s266 + $0x32] sm:$0xff]
        %v530 = vld [vmem:[%s266 + $0x42] sm:$0xff]
        %v531 = vld [vmem:[%s266 + $0x52] sm:$0xff]
        %v532 = vld [vmem:[%s266 + $0x62] sm:$0xff]
        %v533 = vld [vmem:[%s266 + $0x72] sm:$0xff]
        %v534 = vpack.c.bf16 %v527, %v526
        %v535 = vpack.c.bf16 %v529, %v528
        %v536 = vpack.c.bf16 %v531, %v530
        %v537 = vpack.c.bf16 %v533, %v532
        %s538 = scalar_lea.vmem %s271, 8
        %v539 = vld [vmem:[%s538] sm:$0x3]
        %v541 = vsel %vm301, %v534, 0
        %v544 = vsel %vm301, %v535, 0
        %v547 = vsel %vm301, %v536, 0
        %v550 = vsel %vm301, %v537, 0
        %v553 = vand.u32 %v539, %v317
        %555 = vmatpush.bf16.msra.mxu0 0
        %556 = vmatpush.bf16.msra.mxu0 0
        %557 = vmatpush.bf16.msra.mxu0 0
        %558 = vmatpush.bf16.msra.mxu0 0
        %559 = vmatpush.bf16.msra.mxu0 0
        %560 = vmatpush.bf16.msra.mxu0 0
        %561 = vmatpush.bf16.msra.mxu0 0
        %562 = vmatpush.bf16.msra.mxu0 %v553
        %563 = vmatmul.bf16.gmra.mxu0 %v541
        %v564 = vpop.f32.mrf.mxu0
        %v565 = vadd.f32 0.0, %v564
        %v566 = vpop.f32.mrf.mxu0
        %v567 = vadd.f32 0.0, %v566
        %568 = vmatmul.bf16.gmra.mxu0 %v544
        %v569 = vpop.f32.mrf.mxu0
        %v570 = vadd.f32 0.0, %v569
        %v571 = vpop.f32.mrf.mxu0
        %v572 = vadd.f32 0.0, %v571
        %573 = vmatmul.bf16.gmra.mxu0 %v547
        %v574 = vpop.f32.mrf.mxu0
        %v575 = vadd.f32 0.0, %v574
        %v576 = vpop.f32.mrf.mxu0
        %v577 = vadd.f32 0.0, %v576
        %578 = vmatmul.bf16.gmra.mxu0 %v550
        %v579 = vpop.f32.mrf.mxu0
        %v580 = vadd.f32 0.0, %v579
        %v581 = vpop.f32.mrf.mxu0
        %v582 = vadd.f32 0.0, %v581
        %583 = vdwg.mxu0
        %v584 = vadd.f32 %v518, %v565
        %v585 = vadd.f32 %v519, %v567
        %v586 = vadd.f32 %v520, %v570
        %v587 = vadd.f32 %v521, %v572
        %v588 = vadd.f32 %v522, %v575
        %v589 = vadd.f32 %v523, %v577
        %v590 = vadd.f32 %v524, %v580
        %v591 = vadd.f32 %v525, %v582
        %v592 = vld [vmem:[%s286 + $0x2] sm:$0xff]
        %v593 = vld [vmem:[%s286 + $0x12] sm:$0xff]
        %v594 = vld [vmem:[%s286 + $0x22] sm:$0xff]
        %v595 = vld [vmem:[%s286 + $0x32] sm:$0xff]
        %v596 = vld [vmem:[%s286 + $0x42] sm:$0xff]
        %v597 = vld [vmem:[%s286 + $0x52] sm:$0xff]
        %v598 = vld [vmem:[%s286 + $0x62] sm:$0xff]
        %v599 = vld [vmem:[%s286 + $0x72] sm:$0xff]
        %v600 = vpack.c.bf16 %v593, %v592
        %v601 = vpack.c.bf16 %v595, %v594
        %v602 = vpack.c.bf16 %v597, %v596
        %v603 = vpack.c.bf16 %v599, %v598
        %s604 = scalar_lea.vmem %s271, 10
        %v605 = vld [vmem:[%s604] sm:$0x3]
        %v607 = vsel %vm301, %v600, 0
        %v610 = vsel %vm301, %v601, 0
        %v613 = vsel %vm301, %v602, 0
        %v616 = vsel %vm301, %v603, 0
        %v619 = vand.u32 %v605, %v317
        %621 = vmatpush.bf16.msra.mxu0 0
        %622 = vmatpush.bf16.msra.mxu0 0
        %623 = vmatpush.bf16.msra.mxu0 0
        %624 = vmatpush.bf16.msra.mxu0 0
        %625 = vmatpush.bf16.msra.mxu0 0
        %626 = vmatpush.bf16.msra.mxu0 0
        %627 = vmatpush.bf16.msra.mxu0 0
        %628 = vmatpush.bf16.msra.mxu0 %v619
        %629 = vmatmul.bf16.gmra.mxu0 %v607
        %v630 = vpop.f32.mrf.mxu0
        %v631 = vadd.f32 0.0, %v630
        %v632 = vpop.f32.mrf.mxu0
        %v633 = vadd.f32 0.0, %v632
        %634 = vmatmul.bf16.gmra.mxu0 %v610
        %v635 = vpop.f32.mrf.mxu0
        %v636 = vadd.f32 0.0, %v635
        %v637 = vpop.f32.mrf.mxu0
        %v638 = vadd.f32 0.0, %v637
        %639 = vmatmul.bf16.gmra.mxu0 %v613
        %v640 = vpop.f32.mrf.mxu0
        %v641 = vadd.f32 0.0, %v640
        %v642 = vpop.f32.mrf.mxu0
        %v643 = vadd.f32 0.0, %v642
        %644 = vmatmul.bf16.gmra.mxu0 %v616
        %v645 = vpop.f32.mrf.mxu0
        %v646 = vadd.f32 0.0, %v645
        %v647 = vpop.f32.mrf.mxu0
        %v648 = vadd.f32 0.0, %v647
        %649 = vdwg.mxu0
        %v650 = vadd.f32 %v584, %v631
        %v651 = vadd.f32 %v585, %v633
        %v652 = vadd.f32 %v586, %v636
        %v653 = vadd.f32 %v587, %v638
        %v654 = vadd.f32 %v588, %v641
        %v655 = vadd.f32 %v589, %v643
        %v656 = vadd.f32 %v590, %v646
        %v657 = vadd.f32 %v591, %v648
        %v658 = vld [vmem:[%s266 + $0x3] sm:$0xff]
        %v659 = vld [vmem:[%s266 + $0x13] sm:$0xff]
        %v660 = vld [vmem:[%s266 + $0x23] sm:$0xff]
        %v661 = vld [vmem:[%s266 + $0x33] sm:$0xff]
        %v662 = vld [vmem:[%s266 + $0x43] sm:$0xff]
        %v663 = vld [vmem:[%s266 + $0x53] sm:$0xff]
        %v664 = vld [vmem:[%s266 + $0x63] sm:$0xff]
        %v665 = vld [vmem:[%s266 + $0x73] sm:$0xff]
        %v666 = vpack.c.bf16 %v659, %v658
        %v667 = vpack.c.bf16 %v661, %v660
        %v668 = vpack.c.bf16 %v663, %v662
        %v669 = vpack.c.bf16 %v665, %v664
        %s670 = scalar_lea.vmem %s271, 12
        %v671 = vld [vmem:[%s670] sm:$0x3]
        %v673 = vsel %vm301, %v666, 0
        %v676 = vsel %vm301, %v667, 0
        %v679 = vsel %vm301, %v668, 0
        %v682 = vsel %vm301, %v669, 0
        %v685 = vand.u32 %v671, %v317
        %687 = vmatpush.bf16.msra.mxu0 0
        %688 = vmatpush.bf16.msra.mxu0 0
        %689 = vmatpush.bf16.msra.mxu0 0
        %690 = vmatpush.bf16.msra.mxu0 0
        %691 = vmatpush.bf16.msra.mxu0 0
        %692 = vmatpush.bf16.msra.mxu0 0
        %693 = vmatpush.bf16.msra.mxu0 0
        %694 = vmatpush.bf16.msra.mxu0 %v685
        %695 = vmatmul.bf16.gmra.mxu0 %v673
        %v696 = vpop.f32.mrf.mxu0
        %v697 = vadd.f32 0.0, %v696
        %v698 = vpop.f32.mrf.mxu0
        %v699 = vadd.f32 0.0, %v698
        %700 = vmatmul.bf16.gmra.mxu0 %v676
        %v701 = vpop.f32.mrf.mxu0
        %v702 = vadd.f32 0.0, %v701
        %v703 = vpop.f32.mrf.mxu0
        %v704 = vadd.f32 0.0, %v703
        %705 = vmatmul.bf16.gmra.mxu0 %v679
        %v706 = vpop.f32.mrf.mxu0
        %v707 = vadd.f32 0.0, %v706
        %v708 = vpop.f32.mrf.mxu0
        %v709 = vadd.f32 0.0, %v708
        %710 = vmatmul.bf16.gmra.mxu0 %v682
        %v711 = vpop.f32.mrf.mxu0
        %v712 = vadd.f32 0.0, %v711
        %v713 = vpop.f32.mrf.mxu0
        %v714 = vadd.f32 0.0, %v713
        %715 = vdwg.mxu0
        %v716 = vadd.f32 %v650, %v697
        %v717 = vadd.f32 %v651, %v699
        %v718 = vadd.f32 %v652, %v702
        %v719 = vadd.f32 %v653, %v704
        %v720 = vadd.f32 %v654, %v707
        %v721 = vadd.f32 %v655, %v709
        %v722 = vadd.f32 %v656, %v712
        %v723 = vadd.f32 %v657, %v714
        %s724 = scalar_lea.vmem %s266, 352
        %v725 = vld [vmem:[%s724] sm:$0xff]
        %v726 = vld [vmem:[%s724 + $0x10] sm:$0xff]
        %v727 = vld [vmem:[%s724 + $0x20] sm:$0xff]
        %v728 = vld [vmem:[%s724 + $0x30] sm:$0xff]
        %v729 = vld [vmem:[%s724 + $0x40] sm:$0xff]
        %v730 = vld [vmem:[%s724 + $0x50] sm:$0xff]
        %v731 = vld [vmem:[%s724 + $0x60] sm:$0xff]
        %v732 = vld [vmem:[%s724 + $0x70] sm:$0xff]
        %v733 = vpack.c.bf16 %v726, %v725
        %v734 = vpack.c.bf16 %v728, %v727
        %v735 = vpack.c.bf16 %v730, %v729
        %v736 = vpack.c.bf16 %v732, %v731
        %s737 = scalar_lea.vmem %s271, 14
        %v738 = vld [vmem:[%s737] sm:$0x3]
        %v740 = vsel %vm301, %v733, 0
        %v743 = vsel %vm301, %v734, 0
        %v746 = vsel %vm301, %v735, 0
        %v749 = vsel %vm301, %v736, 0
        %v752 = vand.u32 %v738, %v317
        %754 = vmatpush.bf16.msra.mxu0 0
        %755 = vmatpush.bf16.msra.mxu0 0
        %756 = vmatpush.bf16.msra.mxu0 0
        %757 = vmatpush.bf16.msra.mxu0 0
        %758 = vmatpush.bf16.msra.mxu0 0
        %759 = vmatpush.bf16.msra.mxu0 0
        %760 = vmatpush.bf16.msra.mxu0 0
        %761 = vmatpush.bf16.msra.mxu0 %v752
        %762 = vmatmul.bf16.gmra.mxu0 %v740
        %v763 = vpop.f32.mrf.mxu0
        %v764 = vadd.f32 0.0, %v763
        %v765 = vpop.f32.mrf.mxu0
        %v766 = vadd.f32 0.0, %v765
        %767 = vmatmul.bf16.gmra.mxu0 %v743
        %v768 = vpop.f32.mrf.mxu0
        %v769 = vadd.f32 0.0, %v768
        %v770 = vpop.f32.mrf.mxu0
        %v771 = vadd.f32 0.0, %v770
        %772 = vmatmul.bf16.gmra.mxu0 %v746
        %v773 = vpop.f32.mrf.mxu0
        %v774 = vadd.f32 0.0, %v773
        %v775 = vpop.f32.mrf.mxu0
        %v776 = vadd.f32 0.0, %v775
        %777 = vmatmul.bf16.gmra.mxu0 %v749
        %v778 = vpop.f32.mrf.mxu0
        %v779 = vadd.f32 0.0, %v778
        %v780 = vpop.f32.mrf.mxu0
        %v781 = vadd.f32 0.0, %v780
        %782 = vdwg.mxu0
        %v783 = vadd.f32 %v716, %v764
        %v784 = vadd.f32 %v717, %v766
        %v785 = vadd.f32 %v718, %v769
        %v786 = vadd.f32 %v719, %v771
        %v787 = vadd.f32 %v720, %v774
        %v788 = vadd.f32 %v721, %v776
        %v789 = vadd.f32 %v722, %v779
        %v790 = vadd.f32 %v723, %v781
        %s791 = scalar_lea.vmem %s266, 528
        %v792 = vld [vmem:[%s791] sm:$0xff]
        %v793 = vld [vmem:[%s791 + $0x10] sm:$0xff]
        %v794 = vld [vmem:[%s791 + $0x20] sm:$0xff]
        %v795 = vld [vmem:[%s791 + $0x30] sm:$0xff]
        %v796 = vld [vmem:[%s791 + $0x40] sm:$0xff]
        %v797 = vld [vmem:[%s791 + $0x50] sm:$0xff]
        %v798 = vld [vmem:[%s791 + $0x60] sm:$0xff]
        %v799 = vld [vmem:[%s791 + $0x70] sm:$0xff]
        %v800 = vpack.c.bf16 %v793, %v792
        %v801 = vpack.c.bf16 %v795, %v794
        %v802 = vpack.c.bf16 %v797, %v796
        %v803 = vpack.c.bf16 %v799, %v798
        %s804 = scalar_lea.vmem %s271, 16
        %v805 = vld [vmem:[%s804] sm:$0x3]
        %v807 = vsel %vm301, %v800, 0
        %v810 = vsel %vm301, %v801, 0
        %v813 = vsel %vm301, %v802, 0
        %v816 = vsel %vm301, %v803, 0
        %v819 = vand.u32 %v805, %v317
        %821 = vmatpush.bf16.msra.mxu0 0
        %822 = vmatpush.bf16.msra.mxu0 0
        %823 = vmatpush.bf16.msra.mxu0 0
        %824 = vmatpush.bf16.msra.mxu0 0
        %825 = vmatpush.bf16.msra.mxu0 0
        %826 = vmatpush.bf16.msra.mxu0 0
        %827 = vmatpush.bf16.msra.mxu0 0
        %828 = vmatpush.bf16.msra.mxu0 %v819
        %829 = vmatmul.bf16.gmra.mxu0 %v807
        %v830 = vpop.f32.mrf.mxu0
        %v831 = vadd.f32 0.0, %v830
        %v832 = vpop.f32.mrf.mxu0
        %v833 = vadd.f32 0.0, %v832
        %834 = vmatmul.bf16.gmra.mxu0 %v810
        %v835 = vpop.f32.mrf.mxu0
        %v836 = vadd.f32 0.0, %v835
        %v837 = vpop.f32.mrf.mxu0
        %v838 = vadd.f32 0.0, %v837
        %839 = vmatmul.bf16.gmra.mxu0 %v813
        %v840 = vpop.f32.mrf.mxu0
        %v841 = vadd.f32 0.0, %v840
        %v842 = vpop.f32.mrf.mxu0
        %v843 = vadd.f32 0.0, %v842
        %844 = vmatmul.bf16.gmra.mxu0 %v816
        %v845 = vpop.f32.mrf.mxu0
        %v846 = vadd.f32 0.0, %v845
        %v847 = vpop.f32.mrf.mxu0
        %v848 = vadd.f32 0.0, %v847
        %849 = vdwg.mxu0
        %v850 = vadd.f32 %v783, %v831
        %v851 = vadd.f32 %v784, %v833
        %v852 = vadd.f32 %v785, %v836
        %v853 = vadd.f32 %v786, %v838
        %v854 = vadd.f32 %v787, %v841
        %v855 = vadd.f32 %v788, %v843
        %v856 = vadd.f32 %v789, %v846
        %v857 = vadd.f32 %v790, %v848
        %v858 = vld [vmem:[%s724 + $0x1] sm:$0xff]
        %v859 = vld [vmem:[%s724 + $0x11] sm:$0xff]
        %v860 = vld [vmem:[%s724 + $0x21] sm:$0xff]
        %v861 = vld [vmem:[%s724 + $0x31] sm:$0xff]
        %v862 = vld [vmem:[%s724 + $0x41] sm:$0xff]
        %v863 = vld [vmem:[%s724 + $0x51] sm:$0xff]
        %v864 = vld [vmem:[%s724 + $0x61] sm:$0xff]
        %v865 = vld [vmem:[%s724 + $0x71] sm:$0xff]
        %v866 = vpack.c.bf16 %v859, %v858
        %v867 = vpack.c.bf16 %v861, %v860
        %v868 = vpack.c.bf16 %v863, %v862
        %v869 = vpack.c.bf16 %v865, %v864
        %s870 = scalar_lea.vmem %s271, 18
        %v871 = vld [vmem:[%s870] sm:$0x3]
        %v873 = vsel %vm301, %v866, 0
        %v876 = vsel %vm301, %v867, 0
        %v879 = vsel %vm301, %v868, 0
        %v882 = vsel %vm301, %v869, 0
        %v885 = vand.u32 %v871, %v317
        %887 = vmatpush.bf16.msra.mxu0 0
        %888 = vmatpush.bf16.msra.mxu0 0
        %889 = vmatpush.bf16.msra.mxu0 0
        %890 = vmatpush.bf16.msra.mxu0 0
        %891 = vmatpush.bf16.msra.mxu0 0
        %892 = vmatpush.bf16.msra.mxu0 0
        %893 = vmatpush.bf16.msra.mxu0 0
        %894 = vmatpush.bf16.msra.mxu0 %v885
        %895 = vmatmul.bf16.gmra.mxu0 %v873
        %v896 = vpop.f32.mrf.mxu0
        %v897 = vadd.f32 0.0, %v896
        %v898 = vpop.f32.mrf.mxu0
        %v899 = vadd.f32 0.0, %v898
        %900 = vmatmul.bf16.gmra.mxu0 %v876
        %v901 = vpop.f32.mrf.mxu0
        %v902 = vadd.f32 0.0, %v901
        %v903 = vpop.f32.mrf.mxu0
        %v904 = vadd.f32 0.0, %v903
        %905 = vmatmul.bf16.gmra.mxu0 %v879
        %v906 = vpop.f32.mrf.mxu0
        %v907 = vadd.f32 0.0, %v906
        %v908 = vpop.f32.mrf.mxu0
        %v909 = vadd.f32 0.0, %v908
        %910 = vmatmul.bf16.gmra.mxu0 %v882
        %v911 = vpop.f32.mrf.mxu0
        %v912 = vadd.f32 0.0, %v911
        %v913 = vpop.f32.mrf.mxu0
        %v914 = vadd.f32 0.0, %v913
        %915 = vdwg.mxu0
        %v916 = vadd.f32 %v850, %v897
        %v917 = vadd.f32 %v851, %v899
        %v918 = vadd.f32 %v852, %v902
        %v919 = vadd.f32 %v853, %v904
        %v920 = vadd.f32 %v854, %v907
        %v921 = vadd.f32 %v855, %v909
        %v922 = vadd.f32 %v856, %v912
        %v923 = vadd.f32 %v857, %v914
        %v924 = vld [vmem:[%s791 + $0x1] sm:$0xff]
        %v925 = vld [vmem:[%s791 + $0x11] sm:$0xff]
        %v926 = vld [vmem:[%s791 + $0x21] sm:$0xff]
        %v927 = vld [vmem:[%s791 + $0x31] sm:$0xff]
        %v928 = vld [vmem:[%s791 + $0x41] sm:$0xff]
        %v929 = vld [vmem:[%s791 + $0x51] sm:$0xff]
        %v930 = vld [vmem:[%s791 + $0x61] sm:$0xff]
        %v931 = vld [vmem:[%s791 + $0x71] sm:$0xff]
        %v932 = vpack.c.bf16 %v925, %v924
        %v933 = vpack.c.bf16 %v927, %v926
        %v934 = vpack.c.bf16 %v929, %v928
        %v935 = vpack.c.bf16 %v931, %v930
        %s936 = scalar_lea.vmem %s271, 20
        %v937 = vld [vmem:[%s936] sm:$0x3]
        %v939 = vsel %vm301, %v932, 0
        %v942 = vsel %vm301, %v933, 0
        %v945 = vsel %vm301, %v934, 0
        %v948 = vsel %vm301, %v935, 0
        %v951 = vand.u32 %v937, %v317
        %953 = vmatpush.bf16.msra.mxu0 0
        %954 = vmatpush.bf16.msra.mxu0 0
        %955 = vmatpush.bf16.msra.mxu0 0
        %956 = vmatpush.bf16.msra.mxu0 0
        %957 = vmatpush.bf16.msra.mxu0 0
        %958 = vmatpush.bf16.msra.mxu0 0
        %959 = vmatpush.bf16.msra.mxu0 0
        %960 = vmatpush.bf16.msra.mxu0 %v951
        %961 = vmatmul.bf16.gmra.mxu0 %v939
        %v962 = vpop.f32.mrf.mxu0
        %v963 = vadd.f32 0.0, %v962
        %v964 = vpop.f32.mrf.mxu0
        %v965 = vadd.f32 0.0, %v964
        %966 = vmatmul.bf16.gmra.mxu0 %v942
        %v967 = vpop.f32.mrf.mxu0
        %v968 = vadd.f32 0.0, %v967
        %v969 = vpop.f32.mrf.mxu0
        %v970 = vadd.f32 0.0, %v969
        %971 = vmatmul.bf16.gmra.mxu0 %v945
        %v972 = vpop.f32.mrf.mxu0
        %v973 = vadd.f32 0.0, %v972
        %v974 = vpop.f32.mrf.mxu0
        %v975 = vadd.f32 0.0, %v974
        %976 = vmatmul.bf16.gmra.mxu0 %v948
        %v977 = vpop.f32.mrf.mxu0
        %v978 = vadd.f32 0.0, %v977
        %v979 = vpop.f32.mrf.mxu0
        %v980 = vadd.f32 0.0, %v979
        %981 = vdwg.mxu0
        %v982 = vadd.f32 %v916, %v963
        %v983 = vadd.f32 %v917, %v965
        %v984 = vadd.f32 %v918, %v968
        %v985 = vadd.f32 %v919, %v970
        %v986 = vadd.f32 %v920, %v973
        %v987 = vadd.f32 %v921, %v975
        %v988 = vadd.f32 %v922, %v978
        %v989 = vadd.f32 %v923, %v980
        %v990 = vld [vmem:[%s724 + $0x2] sm:$0xff]
        %v991 = vld [vmem:[%s724 + $0x12] sm:$0xff]
        %v992 = vld [vmem:[%s724 + $0x22] sm:$0xff]
        %v993 = vld [vmem:[%s724 + $0x32] sm:$0xff]
        %v994 = vld [vmem:[%s724 + $0x42] sm:$0xff]
        %v995 = vld [vmem:[%s724 + $0x52] sm:$0xff]
        %v996 = vld [vmem:[%s724 + $0x62] sm:$0xff]
        %v997 = vld [vmem:[%s724 + $0x72] sm:$0xff]
        %v998 = vpack.c.bf16 %v991, %v990
        %v999 = vpack.c.bf16 %v993, %v992
        %v1000 = vpack.c.bf16 %v995, %v994
        %v1001 = vpack.c.bf16 %v997, %v996
        %s1002 = scalar_lea.vmem %s271, 22
        %v1003 = vld [vmem:[%s1002] sm:$0x3]
        %v1005 = vsel %vm301, %v998, 0
        %v1008 = vsel %vm301, %v999, 0
        %v1011 = vsel %vm301, %v1000, 0
        %v1014 = vsel %vm301, %v1001, 0
        %v1017 = vand.u32 %v1003, %v317
        %1019 = vmatpush.bf16.msra.mxu0 0
        %1020 = vmatpush.bf16.msra.mxu0 0
        %1021 = vmatpush.bf16.msra.mxu0 0
        %1022 = vmatpush.bf16.msra.mxu0 0
        %1023 = vmatpush.bf16.msra.mxu0 0
        %1024 = vmatpush.bf16.msra.mxu0 0
        %1025 = vmatpush.bf16.msra.mxu0 0
        %1026 = vmatpush.bf16.msra.mxu0 %v1017
        %1027 = vmatmul.bf16.gmra.mxu0 %v1005
        %v1028 = vpop.f32.mrf.mxu0
        %v1029 = vadd.f32 0.0, %v1028
        %v1030 = vpop.f32.mrf.mxu0
        %v1031 = vadd.f32 0.0, %v1030
        %1032 = vmatmul.bf16.gmra.mxu0 %v1008
        %v1033 = vpop.f32.mrf.mxu0
        %v1034 = vadd.f32 0.0, %v1033
        %v1035 = vpop.f32.mrf.mxu0
        %v1036 = vadd.f32 0.0, %v1035
        %1037 = vmatmul.bf16.gmra.mxu0 %v1011
        %v1038 = vpop.f32.mrf.mxu0
        %v1039 = vadd.f32 0.0, %v1038
        %v1040 = vpop.f32.mrf.mxu0
        %v1041 = vadd.f32 0.0, %v1040
        %1042 = vmatmul.bf16.gmra.mxu0 %v1014
        %v1043 = vpop.f32.mrf.mxu0
        %v1044 = vadd.f32 0.0, %v1043
        %v1045 = vpop.f32.mrf.mxu0
        %v1046 = vadd.f32 0.0, %v1045
        %1047 = vdwg.mxu0
        %v1048 = vadd.f32 %v982, %v1029
        %v1049 = vadd.f32 %v983, %v1031
        %v1050 = vadd.f32 %v984, %v1034
        %v1051 = vadd.f32 %v985, %v1036
        %v1052 = vadd.f32 %v986, %v1039
        %v1053 = vadd.f32 %v987, %v1041
        %v1054 = vadd.f32 %v988, %v1044
        %v1055 = vadd.f32 %v989, %v1046
        %v1056 = vld [vmem:[%s791 + $0x2] sm:$0xff]
        %v1057 = vld [vmem:[%s791 + $0x12] sm:$0xff]
        %v1058 = vld [vmem:[%s791 + $0x22] sm:$0xff]
        %v1059 = vld [vmem:[%s791 + $0x32] sm:$0xff]
        %v1060 = vld [vmem:[%s791 + $0x42] sm:$0xff]
        %v1061 = vld [vmem:[%s791 + $0x52] sm:$0xff]
        %v1062 = vld [vmem:[%s791 + $0x62] sm:$0xff]
        %v1063 = vld [vmem:[%s791 + $0x72] sm:$0xff]
        %v1064 = vpack.c.bf16 %v1057, %v1056
        %v1065 = vpack.c.bf16 %v1059, %v1058
        %v1066 = vpack.c.bf16 %v1061, %v1060
        %v1067 = vpack.c.bf16 %v1063, %v1062
        %s1068 = scalar_lea.vmem %s271, 24
        %v1069 = vld [vmem:[%s1068] sm:$0x3]
        %v1071 = vsel %vm301, %v1064, 0
        %v1074 = vsel %vm301, %v1065, 0
        %v1077 = vsel %vm301, %v1066, 0
        %v1080 = vsel %vm301, %v1067, 0
        %v1083 = vand.u32 %v1069, %v317
        %1085 = vmatpush.bf16.msra.mxu0 0
        %1086 = vmatpush.bf16.msra.mxu0 0
        %1087 = vmatpush.bf16.msra.mxu0 0
        %1088 = vmatpush.bf16.msra.mxu0 0
        %1089 = vmatpush.bf16.msra.mxu0 0
        %1090 = vmatpush.bf16.msra.mxu0 0
        %1091 = vmatpush.bf16.msra.mxu0 0
        %1092 = vmatpush.bf16.msra.mxu0 %v1083
        %1093 = vmatmul.bf16.gmra.mxu0 %v1071
        %v1094 = vpop.f32.mrf.mxu0
        %v1095 = vadd.f32 0.0, %v1094
        %v1096 = vpop.f32.mrf.mxu0
        %v1097 = vadd.f32 0.0, %v1096
        %1098 = vmatmul.bf16.gmra.mxu0 %v1074
        %v1099 = vpop.f32.mrf.mxu0
        %v1100 = vadd.f32 0.0, %v1099
        %v1101 = vpop.f32.mrf.mxu0
        %v1102 = vadd.f32 0.0, %v1101
        %1103 = vmatmul.bf16.gmra.mxu0 %v1077
        %v1104 = vpop.f32.mrf.mxu0
        %v1105 = vadd.f32 0.0, %v1104
        %v1106 = vpop.f32.mrf.mxu0
        %v1107 = vadd.f32 0.0, %v1106
        %1108 = vmatmul.bf16.gmra.mxu0 %v1080
        %v1109 = vpop.f32.mrf.mxu0
        %v1110 = vadd.f32 0.0, %v1109
        %v1111 = vpop.f32.mrf.mxu0
        %v1112 = vadd.f32 0.0, %v1111
        %1113 = vdwg.mxu0
        %v1114 = vadd.f32 %v1048, %v1095
        %v1115 = vadd.f32 %v1049, %v1097
        %v1116 = vadd.f32 %v1050, %v1100
        %v1117 = vadd.f32 %v1051, %v1102
        %v1118 = vadd.f32 %v1052, %v1105
        %v1119 = vadd.f32 %v1053, %v1107
        %v1120 = vadd.f32 %v1054, %v1110
        %v1121 = vadd.f32 %v1055, %v1112
        %v1122 = vld [vmem:[%s724 + $0x3] sm:$0xff]
        %v1123 = vld [vmem:[%s724 + $0x13] sm:$0xff]
        %v1124 = vld [vmem:[%s724 + $0x23] sm:$0xff]
        %v1125 = vld [vmem:[%s724 + $0x33] sm:$0xff]
        %v1126 = vld [vmem:[%s724 + $0x43] sm:$0xff]
        %v1127 = vld [vmem:[%s724 + $0x53] sm:$0xff]
        %v1128 = vld [vmem:[%s724 + $0x63] sm:$0xff]
        %v1129 = vld [vmem:[%s724 + $0x73] sm:$0xff]
        %v1130 = vpack.c.bf16 %v1123, %v1122
        %v1131 = vpack.c.bf16 %v1125, %v1124
        %v1132 = vpack.c.bf16 %v1127, %v1126
        %v1133 = vpack.c.bf16 %v1129, %v1128
        %s1134 = scalar_lea.vmem %s271, 26
        %v1135 = vld [vmem:[%s1134] sm:$0x3]
        %v1137 = vsel %vm301, %v1130, 0
        %v1140 = vsel %vm301, %v1131, 0
        %v1143 = vsel %vm301, %v1132, 0
        %v1146 = vsel %vm301, %v1133, 0
        %v1149 = vand.u32 %v1135, %v317
        %1151 = vmatpush.bf16.msra.mxu0 0
        %1152 = vmatpush.bf16.msra.mxu0 0
        %1153 = vmatpush.bf16.msra.mxu0 0
        %1154 = vmatpush.bf16.msra.mxu0 0
        %1155 = vmatpush.bf16.msra.mxu0 0
        %1156 = vmatpush.bf16.msra.mxu0 0
        %1157 = vmatpush.bf16.msra.mxu0 0
        %1158 = vmatpush.bf16.msra.mxu0 %v1149
        %1159 = vmatmul.bf16.gmra.mxu0 %v1137
        %v1160 = vpop.f32.mrf.mxu0
        %v1161 = vadd.f32 0.0, %v1160
        %v1162 = vpop.f32.mrf.mxu0
        %v1163 = vadd.f32 0.0, %v1162
        %1164 = vmatmul.bf16.gmra.mxu0 %v1140
        %v1165 = vpop.f32.mrf.mxu0
        %v1166 = vadd.f32 0.0, %v1165
        %v1167 = vpop.f32.mrf.mxu0
        %v1168 = vadd.f32 0.0, %v1167
        %1169 = vmatmul.bf16.gmra.mxu0 %v1143
        %v1170 = vpop.f32.mrf.mxu0
        %v1171 = vadd.f32 0.0, %v1170
        %v1172 = vpop.f32.mrf.mxu0
        %v1173 = vadd.f32 0.0, %v1172
        %1174 = vmatmul.bf16.gmra.mxu0 %v1146
        %v1175 = vpop.f32.mrf.mxu0
        %v1176 = vadd.f32 0.0, %v1175
        %v1177 = vpop.f32.mrf.mxu0
        %v1178 = vadd.f32 0.0, %v1177
        %1179 = vdwg.mxu0
        %v1180 = vadd.f32 %v1114, %v1161
        %v1181 = vadd.f32 %v1115, %v1163
        %v1182 = vadd.f32 %v1116, %v1166
        %v1183 = vadd.f32 %v1117, %v1168
        %v1184 = vadd.f32 %v1118, %v1171
        %v1185 = vadd.f32 %v1119, %v1173
        %v1186 = vadd.f32 %v1120, %v1176
        %v1187 = vadd.f32 %v1121, %v1178
        %s1188 = scalar_lea.vmem %s266, 16
        %v1189 = vld [vmem:[%s1188] sm:$0xff]
        %v1190 = vld [vmem:[%s1188 + $0x10] sm:$0xff]
        %v1191 = vld [vmem:[%s1188 + $0x20] sm:$0xff]
        %v1192 = vld [vmem:[%s1188 + $0x30] sm:$0xff]
        %v1193 = vld [vmem:[%s1188 + $0x40] sm:$0xff]
        %v1194 = vld [vmem:[%s1188 + $0x50] sm:$0xff]
        %v1195 = vld [vmem:[%s1188 + $0x60] sm:$0xff]
        %v1196 = vld [vmem:[%s1188 + $0x70] sm:$0xff]
        %v1197 = vpack.c.bf16 %v1190, %v1189
        %v1198 = vpack.c.bf16 %v1192, %v1191
        %v1199 = vpack.c.bf16 %v1194, %v1193
        %v1200 = vpack.c.bf16 %v1196, %v1195
        %s1201 = scalar_lea.vmem %s271, 28
        %v1202 = vld [vmem:[%s1201] sm:$0x3]
        %v1204 = vsel %vm301, %v1197, 0
        %v1207 = vsel %vm301, %v1198, 0
        %v1210 = vsel %vm301, %v1199, 0
        %v1213 = vsel %vm301, %v1200, 0
        %v1216 = vand.u32 %v1202, %v317
        %1218 = vmatpush.bf16.msra.mxu0 0
        %1219 = vmatpush.bf16.msra.mxu0 0
        %1220 = vmatpush.bf16.msra.mxu0 0
        %1221 = vmatpush.bf16.msra.mxu0 0
        %1222 = vmatpush.bf16.msra.mxu0 0
        %1223 = vmatpush.bf16.msra.mxu0 0
        %1224 = vmatpush.bf16.msra.mxu0 0
        %1225 = vmatpush.bf16.msra.mxu0 %v1216
        %1226 = vmatmul.bf16.gmra.mxu0 %v1204
        %v1227 = vpop.f32.mrf.mxu0
        %v1228 = vadd.f32 0.0, %v1227
        %v1229 = vpop.f32.mrf.mxu0
        %v1230 = vadd.f32 0.0, %v1229
        %1231 = vmatmul.bf16.gmra.mxu0 %v1207
        %v1232 = vpop.f32.mrf.mxu0
        %v1233 = vadd.f32 0.0, %v1232
        %v1234 = vpop.f32.mrf.mxu0
        %v1235 = vadd.f32 0.0, %v1234
        %1236 = vmatmul.bf16.gmra.mxu0 %v1210
        %v1237 = vpop.f32.mrf.mxu0
        %v1238 = vadd.f32 0.0, %v1237
        %v1239 = vpop.f32.mrf.mxu0
        %v1240 = vadd.f32 0.0, %v1239
        %1241 = vmatmul.bf16.gmra.mxu0 %v1213
        %v1242 = vpop.f32.mrf.mxu0
        %v1243 = vadd.f32 0.0, %v1242
        %v1244 = vpop.f32.mrf.mxu0
        %v1245 = vadd.f32 0.0, %v1244
        %1246 = vdwg.mxu0
        %v1247 = vadd.f32 %v1180, %v1228
        %v1248 = vadd.f32 %v1181, %v1230
        %v1249 = vadd.f32 %v1182, %v1233
        %v1250 = vadd.f32 %v1183, %v1235
        %v1251 = vadd.f32 %v1184, %v1238
        %v1252 = vadd.f32 %v1185, %v1240
        %v1253 = vadd.f32 %v1186, %v1243
        %v1254 = vadd.f32 %v1187, %v1245
        %s1255 = scalar_lea.vmem %s266, 192
        %v1256 = vld [vmem:[%s1255] sm:$0xff]
        %v1257 = vld [vmem:[%s1255 + $0x10] sm:$0xff]
        %v1258 = vld [vmem:[%s1255 + $0x20] sm:$0xff]
        %v1259 = vld [vmem:[%s1255 + $0x30] sm:$0xff]
        %v1260 = vld [vmem:[%s1255 + $0x40] sm:$0xff]
        %v1261 = vld [vmem:[%s1255 + $0x50] sm:$0xff]
        %v1262 = vld [vmem:[%s1255 + $0x60] sm:$0xff]
        %v1263 = vld [vmem:[%s1255 + $0x70] sm:$0xff]
        %v1264 = vpack.c.bf16 %v1257, %v1256
        %v1265 = vpack.c.bf16 %v1259, %v1258
        %v1266 = vpack.c.bf16 %v1261, %v1260
        %v1267 = vpack.c.bf16 %v1263, %v1262
        %s1268 = scalar_lea.vmem %s271, 30
        %v1269 = vld [vmem:[%s1268] sm:$0x3]
        %v1271 = vsel %vm301, %v1264, 0
        %v1274 = vsel %vm301, %v1265, 0
        %v1277 = vsel %vm301, %v1266, 0
        %v1280 = vsel %vm301, %v1267, 0
        %v1283 = vand.u32 %v1269, %v317
        %1285 = vmatpush.bf16.msra.mxu0 0
        %1286 = vmatpush.bf16.msra.mxu0 0
        %1287 = vmatpush.bf16.msra.mxu0 0
        %1288 = vmatpush.bf16.msra.mxu0 0
        %1289 = vmatpush.bf16.msra.mxu0 0
        %1290 = vmatpush.bf16.msra.mxu0 0
        %1291 = vmatpush.bf16.msra.mxu0 0
        %1292 = vmatpush.bf16.msra.mxu0 %v1283
        %1293 = vmatmul.bf16.gmra.mxu0 %v1271
        %v1294 = vpop.f32.mrf.mxu0
        %v1295 = vadd.f32 0.0, %v1294
        %v1296 = vpop.f32.mrf.mxu0
        %v1297 = vadd.f32 0.0, %v1296
        %1298 = vmatmul.bf16.gmra.mxu0 %v1274
        %v1299 = vpop.f32.mrf.mxu0
        %v1300 = vadd.f32 0.0, %v1299
        %v1301 = vpop.f32.mrf.mxu0
        %v1302 = vadd.f32 0.0, %v1301
        %1303 = vmatmul.bf16.gmra.mxu0 %v1277
        %v1304 = vpop.f32.mrf.mxu0
        %v1305 = vadd.f32 0.0, %v1304
        %v1306 = vpop.f32.mrf.mxu0
        %v1307 = vadd.f32 0.0, %v1306
        %1308 = vmatmul.bf16.gmra.mxu0 %v1280
        %v1309 = vpop.f32.mrf.mxu0
        %v1310 = vadd.f32 0.0, %v1309
        %v1311 = vpop.f32.mrf.mxu0
        %v1312 = vadd.f32 0.0, %v1311
        %1313 = vdwg.mxu0
        %v1314 = vadd.f32 %v1247, %v1295
        %v1315 = vadd.f32 %v1248, %v1297
        %v1316 = vadd.f32 %v1249, %v1300
        %v1317 = vadd.f32 %v1250, %v1302
        %v1318 = vadd.f32 %v1251, %v1305
        %v1319 = vadd.f32 %v1252, %v1307
        %v1320 = vadd.f32 %v1253, %v1310
        %v1321 = vadd.f32 %v1254, %v1312
        %v1322 = vld [vmem:[%s1188 + $0x1] sm:$0xff]
        %v1323 = vld [vmem:[%s1188 + $0x11] sm:$0xff]
        %v1324 = vld [vmem:[%s1188 + $0x21] sm:$0xff]
        %v1325 = vld [vmem:[%s1188 + $0x31] sm:$0xff]
        %v1326 = vld [vmem:[%s1188 + $0x41] sm:$0xff]
        %v1327 = vld [vmem:[%s1188 + $0x51] sm:$0xff]
        %v1328 = vld [vmem:[%s1188 + $0x61] sm:$0xff]
        %v1329 = vld [vmem:[%s1188 + $0x71] sm:$0xff]
        %v1330 = vpack.c.bf16 %v1323, %v1322
        %v1331 = vpack.c.bf16 %v1325, %v1324
        %v1332 = vpack.c.bf16 %v1327, %v1326
        %v1333 = vpack.c.bf16 %v1329, %v1328
        %s1334 = scalar_lea.vmem %s271, 32
        %v1335 = vld [vmem:[%s1334] sm:$0x3]
        %v1337 = vsel %vm301, %v1330, 0
        %v1340 = vsel %vm301, %v1331, 0
        %v1343 = vsel %vm301, %v1332, 0
        %v1346 = vsel %vm301, %v1333, 0
        %v1349 = vand.u32 %v1335, %v317
        %1351 = vmatpush.bf16.msra.mxu0 0
        %1352 = vmatpush.bf16.msra.mxu0 0
        %1353 = vmatpush.bf16.msra.mxu0 0
        %1354 = vmatpush.bf16.msra.mxu0 0
        %1355 = vmatpush.bf16.msra.mxu0 0
        %1356 = vmatpush.bf16.msra.mxu0 0
        %1357 = vmatpush.bf16.msra.mxu0 0
        %1358 = vmatpush.bf16.msra.mxu0 %v1349
        %1359 = vmatmul.bf16.gmra.mxu0 %v1337
        %v1360 = vpop.f32.mrf.mxu0
        %v1361 = vadd.f32 0.0, %v1360
        %v1362 = vpop.f32.mrf.mxu0
        %v1363 = vadd.f32 0.0, %v1362
        %1364 = vmatmul.bf16.gmra.mxu0 %v1340
        %v1365 = vpop.f32.mrf.mxu0
        %v1366 = vadd.f32 0.0, %v1365
        %v1367 = vpop.f32.mrf.mxu0
        %v1368 = vadd.f32 0.0, %v1367
        %1369 = vmatmul.bf16.gmra.mxu0 %v1343
        %v1370 = vpop.f32.mrf.mxu0
        %v1371 = vadd.f32 0.0, %v1370
        %v1372 = vpop.f32.mrf.mxu0
        %v1373 = vadd.f32 0.0, %v1372
        %1374 = vmatmul.bf16.gmra.mxu0 %v1346
        %v1375 = vpop.f32.mrf.mxu0
        %v1376 = vadd.f32 0.0, %v1375
        %v1377 = vpop.f32.mrf.mxu0
        %v1378 = vadd.f32 0.0, %v1377
        %1379 = vdwg.mxu0
        %v1380 = vadd.f32 %v1314, %v1361
        %v1381 = vadd.f32 %v1315, %v1363
        %v1382 = vadd.f32 %v1316, %v1366
        %v1383 = vadd.f32 %v1317, %v1368
        %v1384 = vadd.f32 %v1318, %v1371
        %v1385 = vadd.f32 %v1319, %v1373
        %v1386 = vadd.f32 %v1320, %v1376
        %v1387 = vadd.f32 %v1321, %v1378
        %v1388 = vld [vmem:[%s1255 + $0x1] sm:$0xff]
        %v1389 = vld [vmem:[%s1255 + $0x11] sm:$0xff]
        %v1390 = vld [vmem:[%s1255 + $0x21] sm:$0xff]
        %v1391 = vld [vmem:[%s1255 + $0x31] sm:$0xff]
        %v1392 = vld [vmem:[%s1255 + $0x41] sm:$0xff]
        %v1393 = vld [vmem:[%s1255 + $0x51] sm:$0xff]
        %v1394 = vld [vmem:[%s1255 + $0x61] sm:$0xff]
        %v1395 = vld [vmem:[%s1255 + $0x71] sm:$0xff]
        %v1396 = vpack.c.bf16 %v1389, %v1388
        %v1397 = vpack.c.bf16 %v1391, %v1390
        %v1398 = vpack.c.bf16 %v1393, %v1392
        %v1399 = vpack.c.bf16 %v1395, %v1394
        %s1400 = scalar_lea.vmem %s271, 34
        %v1401 = vld [vmem:[%s1400] sm:$0x3]
        %v1403 = vsel %vm301, %v1396, 0
        %v1406 = vsel %vm301, %v1397, 0
        %v1409 = vsel %vm301, %v1398, 0
        %v1412 = vsel %vm301, %v1399, 0
        %v1415 = vand.u32 %v1401, %v317
        %1417 = vmatpush.bf16.msra.mxu0 0
        %1418 = vmatpush.bf16.msra.mxu0 0
        %1419 = vmatpush.bf16.msra.mxu0 0
        %1420 = vmatpush.bf16.msra.mxu0 0
        %1421 = vmatpush.bf16.msra.mxu0 0
        %1422 = vmatpush.bf16.msra.mxu0 0
        %1423 = vmatpush.bf16.msra.mxu0 0
        %1424 = vmatpush.bf16.msra.mxu0 %v1415
        %1425 = vmatmul.bf16.gmra.mxu0 %v1403
        %v1426 = vpop.f32.mrf.mxu0
        %v1427 = vadd.f32 0.0, %v1426
        %v1428 = vpop.f32.mrf.mxu0
        %v1429 = vadd.f32 0.0, %v1428
        %1430 = vmatmul.bf16.gmra.mxu0 %v1406
        %v1431 = vpop.f32.mrf.mxu0
        %v1432 = vadd.f32 0.0, %v1431
        %v1433 = vpop.f32.mrf.mxu0
        %v1434 = vadd.f32 0.0, %v1433
        %1435 = vmatmul.bf16.gmra.mxu0 %v1409
        %v1436 = vpop.f32.mrf.mxu0
        %v1437 = vadd.f32 0.0, %v1436
        %v1438 = vpop.f32.mrf.mxu0
        %v1439 = vadd.f32 0.0, %v1438
        %1440 = vmatmul.bf16.gmra.mxu0 %v1412
        %v1441 = vpop.f32.mrf.mxu0
        %v1442 = vadd.f32 0.0, %v1441
        %v1443 = vpop.f32.mrf.mxu0
        %v1444 = vadd.f32 0.0, %v1443
        %1445 = vdwg.mxu0
        %v1446 = vadd.f32 %v1380, %v1427
        %v1447 = vadd.f32 %v1381, %v1429
        %v1448 = vadd.f32 %v1382, %v1432
        %v1449 = vadd.f32 %v1383, %v1434
        %v1450 = vadd.f32 %v1384, %v1437
        %v1451 = vadd.f32 %v1385, %v1439
        %v1452 = vadd.f32 %v1386, %v1442
        %v1453 = vadd.f32 %v1387, %v1444
        %v1454 = vld [vmem:[%s1188 + $0x2] sm:$0xff]
        %v1455 = vld [vmem:[%s1188 + $0x12] sm:$0xff]
        %v1456 = vld [vmem:[%s1188 + $0x22] sm:$0xff]
        %v1457 = vld [vmem:[%s1188 + $0x32] sm:$0xff]
        %v1458 = vld [vmem:[%s1188 + $0x42] sm:$0xff]
        %v1459 = vld [vmem:[%s1188 + $0x52] sm:$0xff]
        %v1460 = vld [vmem:[%s1188 + $0x62] sm:$0xff]
        %v1461 = vld [vmem:[%s1188 + $0x72] sm:$0xff]
        %v1462 = vpack.c.bf16 %v1455, %v1454
        %v1463 = vpack.c.bf16 %v1457, %v1456
        %v1464 = vpack.c.bf16 %v1459, %v1458
        %v1465 = vpack.c.bf16 %v1461, %v1460
        %s1466 = scalar_lea.vmem %s271, 36
        %v1467 = vld [vmem:[%s1466] sm:$0x3]
        %v1469 = vsel %vm301, %v1462, 0
        %v1472 = vsel %vm301, %v1463, 0
        %v1475 = vsel %vm301, %v1464, 0
        %v1478 = vsel %vm301, %v1465, 0
        %v1481 = vand.u32 %v1467, %v317
        %1483 = vmatpush.bf16.msra.mxu0 0
        %1484 = vmatpush.bf16.msra.mxu0 0
        %1485 = vmatpush.bf16.msra.mxu0 0
        %1486 = vmatpush.bf16.msra.mxu0 0
        %1487 = vmatpush.bf16.msra.mxu0 0
        %1488 = vmatpush.bf16.msra.mxu0 0
        %1489 = vmatpush.bf16.msra.mxu0 0
        %1490 = vmatpush.bf16.msra.mxu0 %v1481
        %1491 = vmatmul.bf16.gmra.mxu0 %v1469
        %v1492 = vpop.f32.mrf.mxu0
        %v1493 = vadd.f32 0.0, %v1492
        %v1494 = vpop.f32.mrf.mxu0
        %v1495 = vadd.f32 0.0, %v1494
        %1496 = vmatmul.bf16.gmra.mxu0 %v1472
        %v1497 = vpop.f32.mrf.mxu0
        %v1498 = vadd.f32 0.0, %v1497
        %v1499 = vpop.f32.mrf.mxu0
        %v1500 = vadd.f32 0.0, %v1499
        %1501 = vmatmul.bf16.gmra.mxu0 %v1475
        %v1502 = vpop.f32.mrf.mxu0
        %v1503 = vadd.f32 0.0, %v1502
        %v1504 = vpop.f32.mrf.mxu0
        %v1505 = vadd.f32 0.0, %v1504
        %1506 = vmatmul.bf16.gmra.mxu0 %v1478
        %v1507 = vpop.f32.mrf.mxu0
        %v1508 = vadd.f32 0.0, %v1507
        %v1509 = vpop.f32.mrf.mxu0
        %v1510 = vadd.f32 0.0, %v1509
        %1511 = vdwg.mxu0
        %v1512 = vadd.f32 %v1446, %v1493
        %v1513 = vadd.f32 %v1447, %v1495
        %v1514 = vadd.f32 %v1448, %v1498
        %v1515 = vadd.f32 %v1449, %v1500
        %v1516 = vadd.f32 %v1450, %v1503
        %v1517 = vadd.f32 %v1451, %v1505
        %v1518 = vadd.f32 %v1452, %v1508
        %v1519 = vadd.f32 %v1453, %v1510
        %v1520 = vld [vmem:[%s1255 + $0x2] sm:$0xff]
        %v1521 = vld [vmem:[%s1255 + $0x12] sm:$0xff]
        %v1522 = vld [vmem:[%s1255 + $0x22] sm:$0xff]
        %v1523 = vld [vmem:[%s1255 + $0x32] sm:$0xff]
        %v1524 = vld [vmem:[%s1255 + $0x42] sm:$0xff]
        %v1525 = vld [vmem:[%s1255 + $0x52] sm:$0xff]
        %v1526 = vld [vmem:[%s1255 + $0x62] sm:$0xff]
        %v1527 = vld [vmem:[%s1255 + $0x72] sm:$0xff]
        %v1528 = vpack.c.bf16 %v1521, %v1520
        %v1529 = vpack.c.bf16 %v1523, %v1522
        %v1530 = vpack.c.bf16 %v1525, %v1524
        %v1531 = vpack.c.bf16 %v1527, %v1526
        %s1532 = scalar_lea.vmem %s271, 38
        %v1533 = vld [vmem:[%s1532] sm:$0x3]
        %v1535 = vsel %vm301, %v1528, 0
        %v1538 = vsel %vm301, %v1529, 0
        %v1541 = vsel %vm301, %v1530, 0
        %v1544 = vsel %vm301, %v1531, 0
        %v1547 = vand.u32 %v1533, %v317
        %1549 = vmatpush.bf16.msra.mxu0 0
        %1550 = vmatpush.bf16.msra.mxu0 0
        %1551 = vmatpush.bf16.msra.mxu0 0
        %1552 = vmatpush.bf16.msra.mxu0 0
        %1553 = vmatpush.bf16.msra.mxu0 0
        %1554 = vmatpush.bf16.msra.mxu0 0
        %1555 = vmatpush.bf16.msra.mxu0 0
        %1556 = vmatpush.bf16.msra.mxu0 %v1547
        %1557 = vmatmul.bf16.gmra.mxu0 %v1535
        %v1558 = vpop.f32.mrf.mxu0
        %v1559 = vadd.f32 0.0, %v1558
        %v1560 = vpop.f32.mrf.mxu0
        %v1561 = vadd.f32 0.0, %v1560
        %1562 = vmatmul.bf16.gmra.mxu0 %v1538
        %v1563 = vpop.f32.mrf.mxu0
        %v1564 = vadd.f32 0.0, %v1563
        %v1565 = vpop.f32.mrf.mxu0
        %v1566 = vadd.f32 0.0, %v1565
        %1567 = vmatmul.bf16.gmra.mxu0 %v1541
        %v1568 = vpop.f32.mrf.mxu0
        %v1569 = vadd.f32 0.0, %v1568
        %v1570 = vpop.f32.mrf.mxu0
        %v1571 = vadd.f32 0.0, %v1570
        %1572 = vmatmul.bf16.gmra.mxu0 %v1544
        %v1573 = vpop.f32.mrf.mxu0
        %v1574 = vadd.f32 0.0, %v1573
        %v1575 = vpop.f32.mrf.mxu0
        %v1576 = vadd.f32 0.0, %v1575
        %1577 = vdwg.mxu0
        %v1578 = vadd.f32 %v1512, %v1559
        %v1579 = vadd.f32 %v1513, %v1561
        %v1580 = vadd.f32 %v1514, %v1564
        %v1581 = vadd.f32 %v1515, %v1566
        %v1582 = vadd.f32 %v1516, %v1569
        %v1583 = vadd.f32 %v1517, %v1571
        %v1584 = vadd.f32 %v1518, %v1574
        %v1585 = vadd.f32 %v1519, %v1576
        %v1586 = vld [vmem:[%s1188 + $0x3] sm:$0xff]
        %v1587 = vld [vmem:[%s1188 + $0x13] sm:$0xff]
        %v1588 = vld [vmem:[%s1188 + $0x23] sm:$0xff]
        %v1589 = vld [vmem:[%s1188 + $0x33] sm:$0xff]
        %v1590 = vld [vmem:[%s1188 + $0x43] sm:$0xff]
        %v1591 = vld [vmem:[%s1188 + $0x53] sm:$0xff]
        %v1592 = vld [vmem:[%s1188 + $0x63] sm:$0xff]
        %v1593 = vld [vmem:[%s1188 + $0x73] sm:$0xff]
        %v1594 = vpack.c.bf16 %v1587, %v1586
        %v1595 = vpack.c.bf16 %v1589, %v1588
        %v1596 = vpack.c.bf16 %v1591, %v1590
        %v1597 = vpack.c.bf16 %v1593, %v1592
        %s1598 = scalar_lea.vmem %s271, 40
        %v1599 = vld [vmem:[%s1598] sm:$0x3]
        %v1601 = vsel %vm301, %v1594, 0
        %v1604 = vsel %vm301, %v1595, 0
        %v1607 = vsel %vm301, %v1596, 0
        %v1610 = vsel %vm301, %v1597, 0
        %v1613 = vand.u32 %v1599, %v317
        %1615 = vmatpush.bf16.msra.mxu0 0
        %1616 = vmatpush.bf16.msra.mxu0 0
        %1617 = vmatpush.bf16.msra.mxu0 0
        %1618 = vmatpush.bf16.msra.mxu0 0
        %1619 = vmatpush.bf16.msra.mxu0 0
        %1620 = vmatpush.bf16.msra.mxu0 0
        %1621 = vmatpush.bf16.msra.mxu0 0
        %1622 = vmatpush.bf16.msra.mxu0 %v1613
        %1623 = vmatmul.bf16.gmra.mxu0 %v1601
        %v1624 = vpop.f32.mrf.mxu0
        %v1625 = vadd.f32 0.0, %v1624
        %v1626 = vpop.f32.mrf.mxu0
        %v1627 = vadd.f32 0.0, %v1626
        %1628 = vmatmul.bf16.gmra.mxu0 %v1604
        %v1629 = vpop.f32.mrf.mxu0
        %v1630 = vadd.f32 0.0, %v1629
        %v1631 = vpop.f32.mrf.mxu0
        %v1632 = vadd.f32 0.0, %v1631
        %1633 = vmatmul.bf16.gmra.mxu0 %v1607
        %v1634 = vpop.f32.mrf.mxu0
        %v1635 = vadd.f32 0.0, %v1634
        %v1636 = vpop.f32.mrf.mxu0
        %v1637 = vadd.f32 0.0, %v1636
        %1638 = vmatmul.bf16.gmra.mxu0 %v1610
        %v1639 = vpop.f32.mrf.mxu0
        %v1640 = vadd.f32 0.0, %v1639
        %v1641 = vpop.f32.mrf.mxu0
        %v1642 = vadd.f32 0.0, %v1641
        %1643 = vdwg.mxu0
        %v1644 = vadd.f32 %v1578, %v1625
        %v1645 = vadd.f32 %v1579, %v1627
        %v1646 = vadd.f32 %v1580, %v1630
        %v1647 = vadd.f32 %v1581, %v1632
        %v1648 = vadd.f32 %v1582, %v1635
        %v1649 = vadd.f32 %v1583, %v1637
        %v1650 = vadd.f32 %v1584, %v1640
        %v1651 = vadd.f32 %v1585, %v1642
        %s1652 = scalar_lea.vmem %s266, 368
        %v1653 = vld [vmem:[%s1652] sm:$0xff]
        %v1654 = vld [vmem:[%s1652 + $0x10] sm:$0xff]
        %v1655 = vld [vmem:[%s1652 + $0x20] sm:$0xff]
        %v1656 = vld [vmem:[%s1652 + $0x30] sm:$0xff]
        %v1657 = vld [vmem:[%s1652 + $0x40] sm:$0xff]
        %v1658 = vld [vmem:[%s1652 + $0x50] sm:$0xff]
        %v1659 = vld [vmem:[%s1652 + $0x60] sm:$0xff]
        %v1660 = vld [vmem:[%s1652 + $0x70] sm:$0xff]
        %v1661 = vpack.c.bf16 %v1654, %v1653
        %v1662 = vpack.c.bf16 %v1656, %v1655
        %v1663 = vpack.c.bf16 %v1658, %v1657
        %v1664 = vpack.c.bf16 %v1660, %v1659
        %s1665 = scalar_lea.vmem %s271, 42
        %v1666 = vld [vmem:[%s1665] sm:$0x3]
        %v1668 = vsel %vm301, %v1661, 0
        %v1671 = vsel %vm301, %v1662, 0
        %v1674 = vsel %vm301, %v1663, 0
        %v1677 = vsel %vm301, %v1664, 0
        %v1680 = vand.u32 %v1666, %v317
        %1682 = vmatpush.bf16.msra.mxu0 0
        %1683 = vmatpush.bf16.msra.mxu0 0
        %1684 = vmatpush.bf16.msra.mxu0 0
        %1685 = vmatpush.bf16.msra.mxu0 0
        %1686 = vmatpush.bf16.msra.mxu0 0
        %1687 = vmatpush.bf16.msra.mxu0 0
        %1688 = vmatpush.bf16.msra.mxu0 0
        %1689 = vmatpush.bf16.msra.mxu0 %v1680
        %1690 = vmatmul.bf16.gmra.mxu0 %v1668
        %v1691 = vpop.f32.mrf.mxu0
        %v1692 = vadd.f32 0.0, %v1691
        %v1693 = vpop.f32.mrf.mxu0
        %v1694 = vadd.f32 0.0, %v1693
        %1695 = vmatmul.bf16.gmra.mxu0 %v1671
        %v1696 = vpop.f32.mrf.mxu0
        %v1697 = vadd.f32 0.0, %v1696
        %v1698 = vpop.f32.mrf.mxu0
        %v1699 = vadd.f32 0.0, %v1698
        %1700 = vmatmul.bf16.gmra.mxu0 %v1674
        %v1701 = vpop.f32.mrf.mxu0
        %v1702 = vadd.f32 0.0, %v1701
        %v1703 = vpop.f32.mrf.mxu0
        %v1704 = vadd.f32 0.0, %v1703
        %1705 = vmatmul.bf16.gmra.mxu0 %v1677
        %v1706 = vpop.f32.mrf.mxu0
        %v1707 = vadd.f32 0.0, %v1706
        %v1708 = vpop.f32.mrf.mxu0
        %v1709 = vadd.f32 0.0, %v1708
        %1710 = vdwg.mxu0
        %v1711 = vadd.f32 %v1644, %v1692
        %v1712 = vadd.f32 %v1645, %v1694
        %v1713 = vadd.f32 %v1646, %v1697
        %v1714 = vadd.f32 %v1647, %v1699
        %v1715 = vadd.f32 %v1648, %v1702
        %v1716 = vadd.f32 %v1649, %v1704
        %v1717 = vadd.f32 %v1650, %v1707
        %v1718 = vadd.f32 %v1651, %v1709
        %s1719 = scalar_lea.vmem %s266, 544
        %v1720 = vld [vmem:[%s1719] sm:$0xff]
        %v1721 = vld [vmem:[%s1719 + $0x10] sm:$0xff]
        %v1722 = vld [vmem:[%s1719 + $0x20] sm:$0xff]
        %v1723 = vld [vmem:[%s1719 + $0x30] sm:$0xff]
        %v1724 = vld [vmem:[%s1719 + $0x40] sm:$0xff]
        %v1725 = vld [vmem:[%s1719 + $0x50] sm:$0xff]
        %v1726 = vld [vmem:[%s1719 + $0x60] sm:$0xff]
        %v1727 = vld [vmem:[%s1719 + $0x70] sm:$0xff]
        %v1728 = vpack.c.bf16 %v1721, %v1720
        %v1729 = vpack.c.bf16 %v1723, %v1722
        %v1730 = vpack.c.bf16 %v1725, %v1724
        %v1731 = vpack.c.bf16 %v1727, %v1726
        %s1732 = scalar_lea.vmem %s271, 44
        %v1733 = vld [vmem:[%s1732] sm:$0x3]
        %v1735 = vsel %vm301, %v1728, 0
        %v1738 = vsel %vm301, %v1729, 0
        %v1741 = vsel %vm301, %v1730, 0
        %v1744 = vsel %vm301, %v1731, 0
        %v1747 = vand.u32 %v1733, %v317
        %1749 = vmatpush.bf16.msra.mxu0 0
        %1750 = vmatpush.bf16.msra.mxu0 0
        %1751 = vmatpush.bf16.msra.mxu0 0
        %1752 = vmatpush.bf16.msra.mxu0 0
        %1753 = vmatpush.bf16.msra.mxu0 0
        %1754 = vmatpush.bf16.msra.mxu0 0
        %1755 = vmatpush.bf16.msra.mxu0 0
        %1756 = vmatpush.bf16.msra.mxu0 %v1747
        %1757 = vmatmul.bf16.gmra.mxu0 %v1735
        %v1758 = vpop.f32.mrf.mxu0
        %v1759 = vadd.f32 0.0, %v1758
        %v1760 = vpop.f32.mrf.mxu0
        %v1761 = vadd.f32 0.0, %v1760
        %1762 = vmatmul.bf16.gmra.mxu0 %v1738
        %v1763 = vpop.f32.mrf.mxu0
        %v1764 = vadd.f32 0.0, %v1763
        %v1765 = vpop.f32.mrf.mxu0
        %v1766 = vadd.f32 0.0, %v1765
        %1767 = vmatmul.bf16.gmra.mxu0 %v1741
        %v1768 = vpop.f32.mrf.mxu0
        %v1769 = vadd.f32 0.0, %v1768
        %v1770 = vpop.f32.mrf.mxu0
        %v1771 = vadd.f32 0.0, %v1770
        %1772 = vmatmul.bf16.gmra.mxu0 %v1744
        %v1773 = vpop.f32.mrf.mxu0
        %v1774 = vadd.f32 0.0, %v1773
        %v1775 = vpop.f32.mrf.mxu0
        %v1776 = vadd.f32 0.0, %v1775
        %1777 = vdwg.mxu0
        %v1778 = vadd.f32 %v1711, %v1759
        %v1779 = vadd.f32 %v1712, %v1761
        %v1780 = vadd.f32 %v1713, %v1764
        %v1781 = vadd.f32 %v1714, %v1766
        %v1782 = vadd.f32 %v1715, %v1769
        %v1783 = vadd.f32 %v1716, %v1771
        %v1784 = vadd.f32 %v1717, %v1774
        %v1785 = vadd.f32 %v1718, %v1776
        %v1786 = vld [vmem:[%s1652 + $0x1] sm:$0xff]
        %v1787 = vld [vmem:[%s1652 + $0x11] sm:$0xff]
        %v1788 = vld [vmem:[%s1652 + $0x21] sm:$0xff]
        %v1789 = vld [vmem:[%s1652 + $0x31] sm:$0xff]
        %v1790 = vld [vmem:[%s1652 + $0x41] sm:$0xff]
        %v1791 = vld [vmem:[%s1652 + $0x51] sm:$0xff]
        %v1792 = vld [vmem:[%s1652 + $0x61] sm:$0xff]
        %v1793 = vld [vmem:[%s1652 + $0x71] sm:$0xff]
        %v1794 = vpack.c.bf16 %v1787, %v1786
        %v1795 = vpack.c.bf16 %v1789, %v1788
        %v1796 = vpack.c.bf16 %v1791, %v1790
        %v1797 = vpack.c.bf16 %v1793, %v1792
        %s1798 = scalar_lea.vmem %s271, 46
        %v1799 = vld [vmem:[%s1798] sm:$0x3]
        %v1801 = vsel %vm301, %v1794, 0
        %v1804 = vsel %vm301, %v1795, 0
        %v1807 = vsel %vm301, %v1796, 0
        %v1810 = vsel %vm301, %v1797, 0
        %v1813 = vand.u32 %v1799, %v317
        %1815 = vmatpush.bf16.msra.mxu0 0
        %1816 = vmatpush.bf16.msra.mxu0 0
        %1817 = vmatpush.bf16.msra.mxu0 0
        %1818 = vmatpush.bf16.msra.mxu0 0
        %1819 = vmatpush.bf16.msra.mxu0 0
        %1820 = vmatpush.bf16.msra.mxu0 0
        %1821 = vmatpush.bf16.msra.mxu0 0
        %1822 = vmatpush.bf16.msra.mxu0 %v1813
        %1823 = vmatmul.bf16.gmra.mxu0 %v1801
        %v1824 = vpop.f32.mrf.mxu0
        %v1825 = vadd.f32 0.0, %v1824
        %v1826 = vpop.f32.mrf.mxu0
        %v1827 = vadd.f32 0.0, %v1826
        %1828 = vmatmul.bf16.gmra.mxu0 %v1804
        %v1829 = vpop.f32.mrf.mxu0
        %v1830 = vadd.f32 0.0, %v1829
        %v1831 = vpop.f32.mrf.mxu0
        %v1832 = vadd.f32 0.0, %v1831
        %1833 = vmatmul.bf16.gmra.mxu0 %v1807
        %v1834 = vpop.f32.mrf.mxu0
        %v1835 = vadd.f32 0.0, %v1834
        %v1836 = vpop.f32.mrf.mxu0
        %v1837 = vadd.f32 0.0, %v1836
        %1838 = vmatmul.bf16.gmra.mxu0 %v1810
        %v1839 = vpop.f32.mrf.mxu0
        %v1840 = vadd.f32 0.0, %v1839
        %v1841 = vpop.f32.mrf.mxu0
        %v1842 = vadd.f32 0.0, %v1841
        %1843 = vdwg.mxu0
        %v1844 = vadd.f32 %v1778, %v1825
        %v1845 = vadd.f32 %v1779, %v1827
        %v1846 = vadd.f32 %v1780, %v1830
        %v1847 = vadd.f32 %v1781, %v1832
        %v1848 = vadd.f32 %v1782, %v1835
        %v1849 = vadd.f32 %v1783, %v1837
        %v1850 = vadd.f32 %v1784, %v1840
        %v1851 = vadd.f32 %v1785, %v1842
        %v1852 = vld [vmem:[%s1719 + $0x1] sm:$0xff]
        %v1853 = vld [vmem:[%s1719 + $0x11] sm:$0xff]
        %v1854 = vld [vmem:[%s1719 + $0x21] sm:$0xff]
        %v1855 = vld [vmem:[%s1719 + $0x31] sm:$0xff]
        %v1856 = vld [vmem:[%s1719 + $0x41] sm:$0xff]
        %v1857 = vld [vmem:[%s1719 + $0x51] sm:$0xff]
        %v1858 = vld [vmem:[%s1719 + $0x61] sm:$0xff]
        %v1859 = vld [vmem:[%s1719 + $0x71] sm:$0xff]
        %v1860 = vpack.c.bf16 %v1853, %v1852
        %v1861 = vpack.c.bf16 %v1855, %v1854
        %v1862 = vpack.c.bf16 %v1857, %v1856
        %v1863 = vpack.c.bf16 %v1859, %v1858
        %s1864 = scalar_lea.vmem %s271, 48
        %v1865 = vld [vmem:[%s1864] sm:$0x3]
        %v1867 = vsel %vm301, %v1860, 0
        %v1870 = vsel %vm301, %v1861, 0
        %v1873 = vsel %vm301, %v1862, 0
        %v1876 = vsel %vm301, %v1863, 0
        %v1879 = vand.u32 %v1865, %v317
        %1881 = vmatpush.bf16.msra.mxu0 0
        %1882 = vmatpush.bf16.msra.mxu0 0
        %1883 = vmatpush.bf16.msra.mxu0 0
        %1884 = vmatpush.bf16.msra.mxu0 0
        %1885 = vmatpush.bf16.msra.mxu0 0
        %1886 = vmatpush.bf16.msra.mxu0 0
        %1887 = vmatpush.bf16.msra.mxu0 0
        %1888 = vmatpush.bf16.msra.mxu0 %v1879
        %1889 = vmatmul.bf16.gmra.mxu0 %v1867
        %v1890 = vpop.f32.mrf.mxu0
        %v1891 = vadd.f32 0.0, %v1890
        %v1892 = vpop.f32.mrf.mxu0
        %v1893 = vadd.f32 0.0, %v1892
        %1894 = vmatmul.bf16.gmra.mxu0 %v1870
        %v1895 = vpop.f32.mrf.mxu0
        %v1896 = vadd.f32 0.0, %v1895
        %v1897 = vpop.f32.mrf.mxu0
        %v1898 = vadd.f32 0.0, %v1897
        %1899 = vmatmul.bf16.gmra.mxu0 %v1873
        %v1900 = vpop.f32.mrf.mxu0
        %v1901 = vadd.f32 0.0, %v1900
        %v1902 = vpop.f32.mrf.mxu0
        %v1903 = vadd.f32 0.0, %v1902
        %1904 = vmatmul.bf16.gmra.mxu0 %v1876
        %v1905 = vpop.f32.mrf.mxu0
        %v1906 = vadd.f32 0.0, %v1905
        %v1907 = vpop.f32.mrf.mxu0
        %v1908 = vadd.f32 0.0, %v1907
        %1909 = vdwg.mxu0
        %v1910 = vadd.f32 %v1844, %v1891
        %v1911 = vadd.f32 %v1845, %v1893
        %v1912 = vadd.f32 %v1846, %v1896
        %v1913 = vadd.f32 %v1847, %v1898
        %v1914 = vadd.f32 %v1848, %v1901
        %v1915 = vadd.f32 %v1849, %v1903
        %v1916 = vadd.f32 %v1850, %v1906
        %v1917 = vadd.f32 %v1851, %v1908
        %v1918 = vld [vmem:[%s1652 + $0x2] sm:$0xff]
        %v1919 = vld [vmem:[%s1652 + $0x12] sm:$0xff]
        %v1920 = vld [vmem:[%s1652 + $0x22] sm:$0xff]
        %v1921 = vld [vmem:[%s1652 + $0x32] sm:$0xff]
        %v1922 = vld [vmem:[%s1652 + $0x42] sm:$0xff]
        %v1923 = vld [vmem:[%s1652 + $0x52] sm:$0xff]
        %v1924 = vld [vmem:[%s1652 + $0x62] sm:$0xff]
        %v1925 = vld [vmem:[%s1652 + $0x72] sm:$0xff]
        %v1926 = vpack.c.bf16 %v1919, %v1918
        %v1927 = vpack.c.bf16 %v1921, %v1920
        %v1928 = vpack.c.bf16 %v1923, %v1922
        %v1929 = vpack.c.bf16 %v1925, %v1924
        %s1930 = scalar_lea.vmem %s271, 50
        %v1931 = vld [vmem:[%s1930] sm:$0x3]
        %v1933 = vsel %vm301, %v1926, 0
        %v1936 = vsel %vm301, %v1927, 0
        %v1939 = vsel %vm301, %v1928, 0
        %v1942 = vsel %vm301, %v1929, 0
        %v1945 = vand.u32 %v1931, %v317
        %1947 = vmatpush.bf16.msra.mxu0 0
        %1948 = vmatpush.bf16.msra.mxu0 0
        %1949 = vmatpush.bf16.msra.mxu0 0
        %1950 = vmatpush.bf16.msra.mxu0 0
        %1951 = vmatpush.bf16.msra.mxu0 0
        %1952 = vmatpush.bf16.msra.mxu0 0
        %1953 = vmatpush.bf16.msra.mxu0 0
        %1954 = vmatpush.bf16.msra.mxu0 %v1945
        %1955 = vmatmul.bf16.gmra.mxu0 %v1933
        %v1956 = vpop.f32.mrf.mxu0
        %v1957 = vadd.f32 0.0, %v1956
        %v1958 = vpop.f32.mrf.mxu0
        %v1959 = vadd.f32 0.0, %v1958
        %1960 = vmatmul.bf16.gmra.mxu0 %v1936
        %v1961 = vpop.f32.mrf.mxu0
        %v1962 = vadd.f32 0.0, %v1961
        %v1963 = vpop.f32.mrf.mxu0
        %v1964 = vadd.f32 0.0, %v1963
        %1965 = vmatmul.bf16.gmra.mxu0 %v1939
        %v1966 = vpop.f32.mrf.mxu0
        %v1967 = vadd.f32 0.0, %v1966
        %v1968 = vpop.f32.mrf.mxu0
        %v1969 = vadd.f32 0.0, %v1968
        %1970 = vmatmul.bf16.gmra.mxu0 %v1942
        %v1971 = vpop.f32.mrf.mxu0
        %v1972 = vadd.f32 0.0, %v1971
        %v1973 = vpop.f32.mrf.mxu0
        %v1974 = vadd.f32 0.0, %v1973
        %1975 = vdwg.mxu0
        %v1976 = vadd.f32 %v1910, %v1957
        %v1977 = vadd.f32 %v1911, %v1959
        %v1978 = vadd.f32 %v1912, %v1962
        %v1979 = vadd.f32 %v1913, %v1964
        %v1980 = vadd.f32 %v1914, %v1967
        %v1981 = vadd.f32 %v1915, %v1969
        %v1982 = vadd.f32 %v1916, %v1972
        %v1983 = vadd.f32 %v1917, %v1974
        %v1984 = vld [vmem:[%s1719 + $0x2] sm:$0xff]
        %v1985 = vld [vmem:[%s1719 + $0x12] sm:$0xff]
        %v1986 = vld [vmem:[%s1719 + $0x22] sm:$0xff]
        %v1987 = vld [vmem:[%s1719 + $0x32] sm:$0xff]
        %v1988 = vld [vmem:[%s1719 + $0x42] sm:$0xff]
        %v1989 = vld [vmem:[%s1719 + $0x52] sm:$0xff]
        %v1990 = vld [vmem:[%s1719 + $0x62] sm:$0xff]
        %v1991 = vld [vmem:[%s1719 + $0x72] sm:$0xff]
        %v1992 = vpack.c.bf16 %v1985, %v1984
        %v1993 = vpack.c.bf16 %v1987, %v1986
        %v1994 = vpack.c.bf16 %v1989, %v1988
        %v1995 = vpack.c.bf16 %v1991, %v1990
        %s1996 = scalar_lea.vmem %s271, 52
        %v1997 = vld [vmem:[%s1996] sm:$0x3]
        %v1999 = vsel %vm301, %v1992, 0
        %v2002 = vsel %vm301, %v1993, 0
        %v2005 = vsel %vm301, %v1994, 0
        %v2008 = vsel %vm301, %v1995, 0
        %v2011 = vand.u32 %v1997, %v317
        %2013 = vmatpush.bf16.msra.mxu0 0
        %2014 = vmatpush.bf16.msra.mxu0 0
        %2015 = vmatpush.bf16.msra.mxu0 0
        %2016 = vmatpush.bf16.msra.mxu0 0
        %2017 = vmatpush.bf16.msra.mxu0 0
        %2018 = vmatpush.bf16.msra.mxu0 0
        %2019 = vmatpush.bf16.msra.mxu0 0
        %2020 = vmatpush.bf16.msra.mxu0 %v2011
        %2021 = vmatmul.bf16.gmra.mxu0 %v1999
        %v2022 = vpop.f32.mrf.mxu0
        %v2023 = vadd.f32 0.0, %v2022
        %v2024 = vpop.f32.mrf.mxu0
        %v2025 = vadd.f32 0.0, %v2024
        %2026 = vmatmul.bf16.gmra.mxu0 %v2002
        %v2027 = vpop.f32.mrf.mxu0
        %v2028 = vadd.f32 0.0, %v2027
        %v2029 = vpop.f32.mrf.mxu0
        %v2030 = vadd.f32 0.0, %v2029
        %2031 = vmatmul.bf16.gmra.mxu0 %v2005
        %v2032 = vpop.f32.mrf.mxu0
        %v2033 = vadd.f32 0.0, %v2032
        %v2034 = vpop.f32.mrf.mxu0
        %v2035 = vadd.f32 0.0, %v2034
        %2036 = vmatmul.bf16.gmra.mxu0 %v2008
        %v2037 = vpop.f32.mrf.mxu0
        %v2038 = vadd.f32 0.0, %v2037
        %v2039 = vpop.f32.mrf.mxu0
        %v2040 = vadd.f32 0.0, %v2039
        %2041 = vdwg.mxu0
        %v2042 = vadd.f32 %v1976, %v2023
        %v2043 = vadd.f32 %v1977, %v2025
        %v2044 = vadd.f32 %v1978, %v2028
        %v2045 = vadd.f32 %v1979, %v2030
        %v2046 = vadd.f32 %v1980, %v2033
        %v2047 = vadd.f32 %v1981, %v2035
        %v2048 = vadd.f32 %v1982, %v2038
        %v2049 = vadd.f32 %v1983, %v2040
        %v2050 = vld [vmem:[%s1652 + $0x3] sm:$0xff]
        %v2051 = vld [vmem:[%s1652 + $0x13] sm:$0xff]
        %v2052 = vld [vmem:[%s1652 + $0x23] sm:$0xff]
        %v2053 = vld [vmem:[%s1652 + $0x33] sm:$0xff]
        %v2054 = vld [vmem:[%s1652 + $0x43] sm:$0xff]
        %v2055 = vld [vmem:[%s1652 + $0x53] sm:$0xff]
        %v2056 = vld [vmem:[%s1652 + $0x63] sm:$0xff]
        %v2057 = vld [vmem:[%s1652 + $0x73] sm:$0xff]
        %v2058 = vpack.c.bf16 %v2051, %v2050
        %v2059 = vpack.c.bf16 %v2053, %v2052
        %v2060 = vpack.c.bf16 %v2055, %v2054
        %v2061 = vpack.c.bf16 %v2057, %v2056
        %s2062 = scalar_lea.vmem %s271, 54
        %v2063 = vld [vmem:[%s2062] sm:$0x3]
        %v2065 = vsel %vm301, %v2058, 0
        %v2068 = vsel %vm301, %v2059, 0
        %v2071 = vsel %vm301, %v2060, 0
        %v2074 = vsel %vm301, %v2061, 0
        %v2077 = vand.u32 %v2063, %v317
        %2079 = vmatpush.bf16.msra.mxu0 0
        %2080 = vmatpush.bf16.msra.mxu0 0
        %2081 = vmatpush.bf16.msra.mxu0 0
        %2082 = vmatpush.bf16.msra.mxu0 0
        %2083 = vmatpush.bf16.msra.mxu0 0
        %2084 = vmatpush.bf16.msra.mxu0 0
        %2085 = vmatpush.bf16.msra.mxu0 0
        %2086 = vmatpush.bf16.msra.mxu0 %v2077
        %2087 = vmatmul.bf16.gmra.mxu0 %v2065
        %v2088 = vpop.f32.mrf.mxu0
        %v2089 = vadd.f32 0.0, %v2088
        %v2090 = vpop.f32.mrf.mxu0
        %v2091 = vadd.f32 0.0, %v2090
        %2092 = vmatmul.bf16.gmra.mxu0 %v2068
        %v2093 = vpop.f32.mrf.mxu0
        %v2094 = vadd.f32 0.0, %v2093
        %v2095 = vpop.f32.mrf.mxu0
        %v2096 = vadd.f32 0.0, %v2095
        %2097 = vmatmul.bf16.gmra.mxu0 %v2071
        %v2098 = vpop.f32.mrf.mxu0
        %v2099 = vadd.f32 0.0, %v2098
        %v2100 = vpop.f32.mrf.mxu0
        %v2101 = vadd.f32 0.0, %v2100
        %2102 = vmatmul.bf16.gmra.mxu0 %v2074
        %v2103 = vpop.f32.mrf.mxu0
        %v2104 = vadd.f32 0.0, %v2103
        %v2105 = vpop.f32.mrf.mxu0
        %v2106 = vadd.f32 0.0, %v2105
        %2107 = vdwg.mxu0
        %v2108 = vadd.f32 %v2042, %v2089
        %v2109 = vadd.f32 %v2043, %v2091
        %v2110 = vadd.f32 %v2044, %v2094
        %v2111 = vadd.f32 %v2045, %v2096
        %v2112 = vadd.f32 %v2046, %v2099
        %v2113 = vadd.f32 %v2047, %v2101
        %v2114 = vadd.f32 %v2048, %v2104
        %v2115 = vadd.f32 %v2049, %v2106
        %s2116 = scalar_lea.vmem %s266, 32
        %v2117 = vld [vmem:[%s2116] sm:$0xff]
        %v2118 = vld [vmem:[%s2116 + $0x10] sm:$0xff]
        %v2119 = vld [vmem:[%s2116 + $0x20] sm:$0xff]
        %v2120 = vld [vmem:[%s2116 + $0x30] sm:$0xff]
        %v2121 = vld [vmem:[%s2116 + $0x40] sm:$0xff]
        %v2122 = vld [vmem:[%s2116 + $0x50] sm:$0xff]
        %v2123 = vld [vmem:[%s2116 + $0x60] sm:$0xff]
        %v2124 = vld [vmem:[%s2116 + $0x70] sm:$0xff]
        %v2125 = vpack.c.bf16 %v2118, %v2117
        %v2126 = vpack.c.bf16 %v2120, %v2119
        %v2127 = vpack.c.bf16 %v2122, %v2121
        %v2128 = vpack.c.bf16 %v2124, %v2123
        %s2129 = scalar_lea.vmem %s271, 56
        %v2130 = vld [vmem:[%s2129] sm:$0x3]
        %v2132 = vsel %vm301, %v2125, 0
        %v2135 = vsel %vm301, %v2126, 0
        %v2138 = vsel %vm301, %v2127, 0
        %v2141 = vsel %vm301, %v2128, 0
        %v2144 = vand.u32 %v2130, %v317
        %2146 = vmatpush.bf16.msra.mxu0 0
        %2147 = vmatpush.bf16.msra.mxu0 0
        %2148 = vmatpush.bf16.msra.mxu0 0
        %2149 = vmatpush.bf16.msra.mxu0 0
        %2150 = vmatpush.bf16.msra.mxu0 0
        %2151 = vmatpush.bf16.msra.mxu0 0
        %2152 = vmatpush.bf16.msra.mxu0 0
        %2153 = vmatpush.bf16.msra.mxu0 %v2144
        %2154 = vmatmul.bf16.gmra.mxu0 %v2132
        %v2155 = vpop.f32.mrf.mxu0
        %v2156 = vadd.f32 0.0, %v2155
        %v2157 = vpop.f32.mrf.mxu0
        %v2158 = vadd.f32 0.0, %v2157
        %2159 = vmatmul.bf16.gmra.mxu0 %v2135
        %v2160 = vpop.f32.mrf.mxu0
        %v2161 = vadd.f32 0.0, %v2160
        %v2162 = vpop.f32.mrf.mxu0
        %v2163 = vadd.f32 0.0, %v2162
        %2164 = vmatmul.bf16.gmra.mxu0 %v2138
        %v2165 = vpop.f32.mrf.mxu0
        %v2166 = vadd.f32 0.0, %v2165
        %v2167 = vpop.f32.mrf.mxu0
        %v2168 = vadd.f32 0.0, %v2167
        %2169 = vmatmul.bf16.gmra.mxu0 %v2141
        %v2170 = vpop.f32.mrf.mxu0
        %v2171 = vadd.f32 0.0, %v2170
        %v2172 = vpop.f32.mrf.mxu0
        %v2173 = vadd.f32 0.0, %v2172
        %2174 = vdwg.mxu0
        %v2175 = vadd.f32 %v2108, %v2156
        %v2176 = vadd.f32 %v2109, %v2158
        %v2177 = vadd.f32 %v2110, %v2161
        %v2178 = vadd.f32 %v2111, %v2163
        %v2179 = vadd.f32 %v2112, %v2166
        %v2180 = vadd.f32 %v2113, %v2168
        %v2181 = vadd.f32 %v2114, %v2171
        %v2182 = vadd.f32 %v2115, %v2173
        %s2183 = scalar_lea.vmem %s266, 208
        %v2184 = vld [vmem:[%s2183] sm:$0xff]
        %v2185 = vld [vmem:[%s2183 + $0x10] sm:$0xff]
        %v2186 = vld [vmem:[%s2183 + $0x20] sm:$0xff]
        %v2187 = vld [vmem:[%s2183 + $0x30] sm:$0xff]
        %v2188 = vld [vmem:[%s2183 + $0x40] sm:$0xff]
        %v2189 = vld [vmem:[%s2183 + $0x50] sm:$0xff]
        %v2190 = vld [vmem:[%s2183 + $0x60] sm:$0xff]
        %v2191 = vld [vmem:[%s2183 + $0x70] sm:$0xff]
        %v2192 = vpack.c.bf16 %v2185, %v2184
        %v2193 = vpack.c.bf16 %v2187, %v2186
        %v2194 = vpack.c.bf16 %v2189, %v2188
        %v2195 = vpack.c.bf16 %v2191, %v2190
        %s2196 = scalar_lea.vmem %s271, 58
        %v2197 = vld [vmem:[%s2196] sm:$0x3]
        %v2199 = vsel %vm301, %v2192, 0
        %v2202 = vsel %vm301, %v2193, 0
        %v2205 = vsel %vm301, %v2194, 0
        %v2208 = vsel %vm301, %v2195, 0
        %v2211 = vand.u32 %v2197, %v317
        %2213 = vmatpush.bf16.msra.mxu0 0
        %2214 = vmatpush.bf16.msra.mxu0 0
        %2215 = vmatpush.bf16.msra.mxu0 0
        %2216 = vmatpush.bf16.msra.mxu0 0
        %2217 = vmatpush.bf16.msra.mxu0 0
        %2218 = vmatpush.bf16.msra.mxu0 0
        %2219 = vmatpush.bf16.msra.mxu0 0
        %2220 = vmatpush.bf16.msra.mxu0 %v2211
        %2221 = vmatmul.bf16.gmra.mxu0 %v2199
        %v2222 = vpop.f32.mrf.mxu0
        %v2223 = vadd.f32 0.0, %v2222
        %v2224 = vpop.f32.mrf.mxu0
        %v2225 = vadd.f32 0.0, %v2224
        %2226 = vmatmul.bf16.gmra.mxu0 %v2202
        %v2227 = vpop.f32.mrf.mxu0
        %v2228 = vadd.f32 0.0, %v2227
        %v2229 = vpop.f32.mrf.mxu0
        %v2230 = vadd.f32 0.0, %v2229
        %2231 = vmatmul.bf16.gmra.mxu0 %v2205
        %v2232 = vpop.f32.mrf.mxu0
        %v2233 = vadd.f32 0.0, %v2232
        %v2234 = vpop.f32.mrf.mxu0
        %v2235 = vadd.f32 0.0, %v2234
        %2236 = vmatmul.bf16.gmra.mxu0 %v2208
        %v2237 = vpop.f32.mrf.mxu0
        %v2238 = vadd.f32 0.0, %v2237
        %v2239 = vpop.f32.mrf.mxu0
        %v2240 = vadd.f32 0.0, %v2239
        %2241 = vdwg.mxu0
        %v2242 = vadd.f32 %v2175, %v2223
        %v2243 = vadd.f32 %v2176, %v2225
        %v2244 = vadd.f32 %v2177, %v2228
        %v2245 = vadd.f32 %v2178, %v2230
        %v2246 = vadd.f32 %v2179, %v2233
        %v2247 = vadd.f32 %v2180, %v2235
        %v2248 = vadd.f32 %v2181, %v2238
        %v2249 = vadd.f32 %v2182, %v2240
        %v2250 = vld [vmem:[%s2116 + $0x1] sm:$0xff]
        %v2251 = vld [vmem:[%s2116 + $0x11] sm:$0xff]
        %v2252 = vld [vmem:[%s2116 + $0x21] sm:$0xff]
        %v2253 = vld [vmem:[%s2116 + $0x31] sm:$0xff]
        %v2254 = vld [vmem:[%s2116 + $0x41] sm:$0xff]
        %v2255 = vld [vmem:[%s2116 + $0x51] sm:$0xff]
        %v2256 = vld [vmem:[%s2116 + $0x61] sm:$0xff]
        %v2257 = vld [vmem:[%s2116 + $0x71] sm:$0xff]
        %v2258 = vpack.c.bf16 %v2251, %v2250
        %v2259 = vpack.c.bf16 %v2253, %v2252
        %v2260 = vpack.c.bf16 %v2255, %v2254
        %v2261 = vpack.c.bf16 %v2257, %v2256
        %s2262 = scalar_lea.vmem %s271, 60
        %v2263 = vld [vmem:[%s2262] sm:$0x3]
        %v2265 = vsel %vm301, %v2258, 0
        %v2268 = vsel %vm301, %v2259, 0
        %v2271 = vsel %vm301, %v2260, 0
        %v2274 = vsel %vm301, %v2261, 0
        %v2277 = vand.u32 %v2263, %v317
        %2279 = vmatpush.bf16.msra.mxu0 0
        %2280 = vmatpush.bf16.msra.mxu0 0
        %2281 = vmatpush.bf16.msra.mxu0 0
        %2282 = vmatpush.bf16.msra.mxu0 0
        %2283 = vmatpush.bf16.msra.mxu0 0
        %2284 = vmatpush.bf16.msra.mxu0 0
        %2285 = vmatpush.bf16.msra.mxu0 0
        %2286 = vmatpush.bf16.msra.mxu0 %v2277
        %2287 = vmatmul.bf16.gmra.mxu0 %v2265
        %v2288 = vpop.f32.mrf.mxu0
        %v2289 = vadd.f32 0.0, %v2288
        %v2290 = vpop.f32.mrf.mxu0
        %v2291 = vadd.f32 0.0, %v2290
        %2292 = vmatmul.bf16.gmra.mxu0 %v2268
        %v2293 = vpop.f32.mrf.mxu0
        %v2294 = vadd.f32 0.0, %v2293
        %v2295 = vpop.f32.mrf.mxu0
        %v2296 = vadd.f32 0.0, %v2295
        %2297 = vmatmul.bf16.gmra.mxu0 %v2271
        %v2298 = vpop.f32.mrf.mxu0
        %v2299 = vadd.f32 0.0, %v2298
        %v2300 = vpop.f32.mrf.mxu0
        %v2301 = vadd.f32 0.0, %v2300
        %2302 = vmatmul.bf16.gmra.mxu0 %v2274
        %v2303 = vpop.f32.mrf.mxu0
        %v2304 = vadd.f32 0.0, %v2303
        %v2305 = vpop.f32.mrf.mxu0
        %v2306 = vadd.f32 0.0, %v2305
        %2307 = vdwg.mxu0
        %v2308 = vadd.f32 %v2242, %v2289
        %v2309 = vadd.f32 %v2243, %v2291
        %v2310 = vadd.f32 %v2244, %v2294
        %v2311 = vadd.f32 %v2245, %v2296
        %v2312 = vadd.f32 %v2246, %v2299
        %v2313 = vadd.f32 %v2247, %v2301
        %v2314 = vadd.f32 %v2248, %v2304
        %v2315 = vadd.f32 %v2249, %v2306
        %v2316 = vld [vmem:[%s2183 + $0x1] sm:$0xff]
        %v2317 = vld [vmem:[%s2183 + $0x11] sm:$0xff]
        %v2318 = vld [vmem:[%s2183 + $0x21] sm:$0xff]
        %v2319 = vld [vmem:[%s2183 + $0x31] sm:$0xff]
        %v2320 = vld [vmem:[%s2183 + $0x41] sm:$0xff]
        %v2321 = vld [vmem:[%s2183 + $0x51] sm:$0xff]
        %v2322 = vld [vmem:[%s2183 + $0x61] sm:$0xff]
        %v2323 = vld [vmem:[%s2183 + $0x71] sm:$0xff]
        %v2324 = vpack.c.bf16 %v2317, %v2316
        %v2325 = vpack.c.bf16 %v2319, %v2318
        %v2326 = vpack.c.bf16 %v2321, %v2320
        %v2327 = vpack.c.bf16 %v2323, %v2322
        %s2328 = scalar_lea.vmem %s271, 62
        %v2329 = vld [vmem:[%s2328] sm:$0x3]
        %v2331 = vsel %vm301, %v2324, 0
        %v2334 = vsel %vm301, %v2325, 0
        %v2337 = vsel %vm301, %v2326, 0
        %v2340 = vsel %vm301, %v2327, 0
        %v2343 = vand.u32 %v2329, %v317
        %2345 = vmatpush.bf16.msra.mxu0 0
        %2346 = vmatpush.bf16.msra.mxu0 0
        %2347 = vmatpush.bf16.msra.mxu0 0
        %2348 = vmatpush.bf16.msra.mxu0 0
        %2349 = vmatpush.bf16.msra.mxu0 0
        %2350 = vmatpush.bf16.msra.mxu0 0
        %2351 = vmatpush.bf16.msra.mxu0 0
        %2352 = vmatpush.bf16.msra.mxu0 %v2343
        %2353 = vmatmul.bf16.gmra.mxu0 %v2331
        %v2354 = vpop.f32.mrf.mxu0
        %v2355 = vadd.f32 0.0, %v2354
        %v2356 = vpop.f32.mrf.mxu0
        %v2357 = vadd.f32 0.0, %v2356
        %2358 = vmatmul.bf16.gmra.mxu0 %v2334
        %v2359 = vpop.f32.mrf.mxu0
        %v2360 = vadd.f32 0.0, %v2359
        %v2361 = vpop.f32.mrf.mxu0
        %v2362 = vadd.f32 0.0, %v2361
        %2363 = vmatmul.bf16.gmra.mxu0 %v2337
        %v2364 = vpop.f32.mrf.mxu0
        %v2365 = vadd.f32 0.0, %v2364
        %v2366 = vpop.f32.mrf.mxu0
        %v2367 = vadd.f32 0.0, %v2366
        %2368 = vmatmul.bf16.gmra.mxu0 %v2340
        %v2369 = vpop.f32.mrf.mxu0
        %v2370 = vadd.f32 0.0, %v2369
        %v2371 = vpop.f32.mrf.mxu0
        %v2372 = vadd.f32 0.0, %v2371
        %2373 = vdwg.mxu0
        %v2374 = vadd.f32 %v2308, %v2355
        %v2375 = vadd.f32 %v2309, %v2357
        %v2376 = vadd.f32 %v2310, %v2360
        %v2377 = vadd.f32 %v2311, %v2362
        %v2378 = vadd.f32 %v2312, %v2365
        %v2379 = vadd.f32 %v2313, %v2367
        %v2380 = vadd.f32 %v2314, %v2370
        %v2381 = vadd.f32 %v2315, %v2372
        %v2382 = vld [vmem:[%s2116 + $0x2] sm:$0xff]
        %v2383 = vld [vmem:[%s2116 + $0x12] sm:$0xff]
        %v2384 = vld [vmem:[%s2116 + $0x22] sm:$0xff]
        %v2385 = vld [vmem:[%s2116 + $0x32] sm:$0xff]
        %v2386 = vld [vmem:[%s2116 + $0x42] sm:$0xff]
        %v2387 = vld [vmem:[%s2116 + $0x52] sm:$0xff]
        %v2388 = vld [vmem:[%s2116 + $0x62] sm:$0xff]
        %v2389 = vld [vmem:[%s2116 + $0x72] sm:$0xff]
        %v2390 = vpack.c.bf16 %v2383, %v2382
        %v2391 = vpack.c.bf16 %v2385, %v2384
        %v2392 = vpack.c.bf16 %v2387, %v2386
        %v2393 = vpack.c.bf16 %v2389, %v2388
        %s2394 = scalar_lea.vmem %s271, 64
        %v2395 = vld [vmem:[%s2394] sm:$0x3]
        %v2397 = vsel %vm301, %v2390, 0
        %v2400 = vsel %vm301, %v2391, 0
        %v2403 = vsel %vm301, %v2392, 0
        %v2406 = vsel %vm301, %v2393, 0
        %v2409 = vand.u32 %v2395, %v317
        %2411 = vmatpush.bf16.msra.mxu0 0
        %2412 = vmatpush.bf16.msra.mxu0 0
        %2413 = vmatpush.bf16.msra.mxu0 0
        %2414 = vmatpush.bf16.msra.mxu0 0
        %2415 = vmatpush.bf16.msra.mxu0 0
        %2416 = vmatpush.bf16.msra.mxu0 0
        %2417 = vmatpush.bf16.msra.mxu0 0
        %2418 = vmatpush.bf16.msra.mxu0 %v2409
        %2419 = vmatmul.bf16.gmra.mxu0 %v2397
        %v2420 = vpop.f32.mrf.mxu0
        %v2421 = vadd.f32 0.0, %v2420
        %v2422 = vpop.f32.mrf.mxu0
        %v2423 = vadd.f32 0.0, %v2422
        %2424 = vmatmul.bf16.gmra.mxu0 %v2400
        %v2425 = vpop.f32.mrf.mxu0
        %v2426 = vadd.f32 0.0, %v2425
        %v2427 = vpop.f32.mrf.mxu0
        %v2428 = vadd.f32 0.0, %v2427
        %2429 = vmatmul.bf16.gmra.mxu0 %v2403
        %v2430 = vpop.f32.mrf.mxu0
        %v2431 = vadd.f32 0.0, %v2430
        %v2432 = vpop.f32.mrf.mxu0
        %v2433 = vadd.f32 0.0, %v2432
        %2434 = vmatmul.bf16.gmra.mxu0 %v2406
        %v2435 = vpop.f32.mrf.mxu0
        %v2436 = vadd.f32 0.0, %v2435
        %v2437 = vpop.f32.mrf.mxu0
        %v2438 = vadd.f32 0.0, %v2437
        %2439 = vdwg.mxu0
        %v2440 = vadd.f32 %v2374, %v2421
        %v2441 = vadd.f32 %v2375, %v2423
        %v2442 = vadd.f32 %v2376, %v2426
        %v2443 = vadd.f32 %v2377, %v2428
        %v2444 = vadd.f32 %v2378, %v2431
        %v2445 = vadd.f32 %v2379, %v2433
        %v2446 = vadd.f32 %v2380, %v2436
        %v2447 = vadd.f32 %v2381, %v2438
        %v2448 = vld [vmem:[%s2183 + $0x2] sm:$0xff]
        %v2449 = vld [vmem:[%s2183 + $0x12] sm:$0xff]
        %v2450 = vld [vmem:[%s2183 + $0x22] sm:$0xff]
        %v2451 = vld [vmem:[%s2183 + $0x32] sm:$0xff]
        %v2452 = vld [vmem:[%s2183 + $0x42] sm:$0xff]
        %v2453 = vld [vmem:[%s2183 + $0x52] sm:$0xff]
        %v2454 = vld [vmem:[%s2183 + $0x62] sm:$0xff]
        %v2455 = vld [vmem:[%s2183 + $0x72] sm:$0xff]
        %v2456 = vpack.c.bf16 %v2449, %v2448
        %v2457 = vpack.c.bf16 %v2451, %v2450
        %v2458 = vpack.c.bf16 %v2453, %v2452
        %v2459 = vpack.c.bf16 %v2455, %v2454
        %s2460 = scalar_lea.vmem %s271, 66
        %v2461 = vld [vmem:[%s2460] sm:$0x3]
        %v2463 = vsel %vm301, %v2456, 0
        %v2466 = vsel %vm301, %v2457, 0
        %v2469 = vsel %vm301, %v2458, 0
        %v2472 = vsel %vm301, %v2459, 0
        %v2475 = vand.u32 %v2461, %v317
        %2477 = vmatpush.bf16.msra.mxu0 0
        %2478 = vmatpush.bf16.msra.mxu0 0
        %2479 = vmatpush.bf16.msra.mxu0 0
        %2480 = vmatpush.bf16.msra.mxu0 0
        %2481 = vmatpush.bf16.msra.mxu0 0
        %2482 = vmatpush.bf16.msra.mxu0 0
        %2483 = vmatpush.bf16.msra.mxu0 0
        %2484 = vmatpush.bf16.msra.mxu0 %v2475
        %2485 = vmatmul.bf16.gmra.mxu0 %v2463
        %v2486 = vpop.f32.mrf.mxu0
        %v2487 = vadd.f32 0.0, %v2486
        %v2488 = vpop.f32.mrf.mxu0
        %v2489 = vadd.f32 0.0, %v2488
        %2490 = vmatmul.bf16.gmra.mxu0 %v2466
        %v2491 = vpop.f32.mrf.mxu0
        %v2492 = vadd.f32 0.0, %v2491
        %v2493 = vpop.f32.mrf.mxu0
        %v2494 = vadd.f32 0.0, %v2493
        %2495 = vmatmul.bf16.gmra.mxu0 %v2469
        %v2496 = vpop.f32.mrf.mxu0
        %v2497 = vadd.f32 0.0, %v2496
        %v2498 = vpop.f32.mrf.mxu0
        %v2499 = vadd.f32 0.0, %v2498
        %2500 = vmatmul.bf16.gmra.mxu0 %v2472
        %v2501 = vpop.f32.mrf.mxu0
        %v2502 = vadd.f32 0.0, %v2501
        %v2503 = vpop.f32.mrf.mxu0
        %v2504 = vadd.f32 0.0, %v2503
        %2505 = vdwg.mxu0
        %v2506 = vadd.f32 %v2440, %v2487
        %v2507 = vadd.f32 %v2441, %v2489
        %v2508 = vadd.f32 %v2442, %v2492
        %v2509 = vadd.f32 %v2443, %v2494
        %v2510 = vadd.f32 %v2444, %v2497
        %v2511 = vadd.f32 %v2445, %v2499
        %v2512 = vadd.f32 %v2446, %v2502
        %v2513 = vadd.f32 %v2447, %v2504
        %v2514 = vld [vmem:[%s2116 + $0x3] sm:$0xff]
        %v2515 = vld [vmem:[%s2116 + $0x13] sm:$0xff]
        %v2516 = vld [vmem:[%s2116 + $0x23] sm:$0xff]
        %v2517 = vld [vmem:[%s2116 + $0x33] sm:$0xff]
        %v2518 = vld [vmem:[%s2116 + $0x43] sm:$0xff]
        %v2519 = vld [vmem:[%s2116 + $0x53] sm:$0xff]
        %v2520 = vld [vmem:[%s2116 + $0x63] sm:$0xff]
        %v2521 = vld [vmem:[%s2116 + $0x73] sm:$0xff]
        %v2522 = vpack.c.bf16 %v2515, %v2514
        %v2523 = vpack.c.bf16 %v2517, %v2516
        %v2524 = vpack.c.bf16 %v2519, %v2518
        %v2525 = vpack.c.bf16 %v2521, %v2520
        %s2526 = scalar_lea.vmem %s271, 68
        %v2527 = vld [vmem:[%s2526] sm:$0x3]
        %v2529 = vsel %vm301, %v2522, 0
        %v2532 = vsel %vm301, %v2523, 0
        %v2535 = vsel %vm301, %v2524, 0
        %v2538 = vsel %vm301, %v2525, 0
        %v2541 = vand.u32 %v2527, %v317
        %2543 = vmatpush.bf16.msra.mxu0 0
        %2544 = vmatpush.bf16.msra.mxu0 0
        %2545 = vmatpush.bf16.msra.mxu0 0
        %2546 = vmatpush.bf16.msra.mxu0 0
        %2547 = vmatpush.bf16.msra.mxu0 0
        %2548 = vmatpush.bf16.msra.mxu0 0
        %2549 = vmatpush.bf16.msra.mxu0 0
        %2550 = vmatpush.bf16.msra.mxu0 %v2541
        %2551 = vmatmul.bf16.gmra.mxu0 %v2529
        %v2552 = vpop.f32.mrf.mxu0
        %v2553 = vadd.f32 0.0, %v2552
        %v2554 = vpop.f32.mrf.mxu0
        %v2555 = vadd.f32 0.0, %v2554
        %2556 = vmatmul.bf16.gmra.mxu0 %v2532
        %v2557 = vpop.f32.mrf.mxu0
        %v2558 = vadd.f32 0.0, %v2557
        %v2559 = vpop.f32.mrf.mxu0
        %v2560 = vadd.f32 0.0, %v2559
        %2561 = vmatmul.bf16.gmra.mxu0 %v2535
        %v2562 = vpop.f32.mrf.mxu0
        %v2563 = vadd.f32 0.0, %v2562
        %v2564 = vpop.f32.mrf.mxu0
        %v2565 = vadd.f32 0.0, %v2564
        %2566 = vmatmul.bf16.gmra.mxu0 %v2538
        %v2567 = vpop.f32.mrf.mxu0
        %v2568 = vadd.f32 0.0, %v2567
        %v2569 = vpop.f32.mrf.mxu0
        %v2570 = vadd.f32 0.0, %v2569
        %2571 = vdwg.mxu0
        %v2572 = vadd.f32 %v2506, %v2553
        %v2573 = vadd.f32 %v2507, %v2555
        %v2574 = vadd.f32 %v2508, %v2558
        %v2575 = vadd.f32 %v2509, %v2560
        %v2576 = vadd.f32 %v2510, %v2563
        %v2577 = vadd.f32 %v2511, %v2565
        %v2578 = vadd.f32 %v2512, %v2568
        %v2579 = vadd.f32 %v2513, %v2570
        %s2580 = scalar_lea.vmem %s266, 384
        %v2581 = vld [vmem:[%s2580] sm:$0xff]
        %v2582 = vld [vmem:[%s2580 + $0x10] sm:$0xff]
        %v2583 = vld [vmem:[%s2580 + $0x20] sm:$0xff]
        %v2584 = vld [vmem:[%s2580 + $0x30] sm:$0xff]
        %v2585 = vld [vmem:[%s2580 + $0x40] sm:$0xff]
        %v2586 = vld [vmem:[%s2580 + $0x50] sm:$0xff]
        %v2587 = vld [vmem:[%s2580 + $0x60] sm:$0xff]
        %v2588 = vld [vmem:[%s2580 + $0x70] sm:$0xff]
        %v2589 = vpack.c.bf16 %v2582, %v2581
        %v2590 = vpack.c.bf16 %v2584, %v2583
        %v2591 = vpack.c.bf16 %v2586, %v2585
        %v2592 = vpack.c.bf16 %v2588, %v2587
        %s2593 = scalar_lea.vmem %s271, 70
        %v2594 = vld [vmem:[%s2593] sm:$0x3]
        %v2596 = vsel %vm301, %v2589, 0
        %v2599 = vsel %vm301, %v2590, 0
        %v2602 = vsel %vm301, %v2591, 0
        %v2605 = vsel %vm301, %v2592, 0
        %v2608 = vand.u32 %v2594, %v317
        %2610 = vmatpush.bf16.msra.mxu0 0
        %2611 = vmatpush.bf16.msra.mxu0 0
        %2612 = vmatpush.bf16.msra.mxu0 0
        %2613 = vmatpush.bf16.msra.mxu0 0
        %2614 = vmatpush.bf16.msra.mxu0 0
        %2615 = vmatpush.bf16.msra.mxu0 0
        %2616 = vmatpush.bf16.msra.mxu0 0
        %2617 = vmatpush.bf16.msra.mxu0 %v2608
        %2618 = vmatmul.bf16.gmra.mxu0 %v2596
        %v2619 = vpop.f32.mrf.mxu0
        %v2620 = vadd.f32 0.0, %v2619
        %v2621 = vpop.f32.mrf.mxu0
        %v2622 = vadd.f32 0.0, %v2621
        %2623 = vmatmul.bf16.gmra.mxu0 %v2599
        %v2624 = vpop.f32.mrf.mxu0
        %v2625 = vadd.f32 0.0, %v2624
        %v2626 = vpop.f32.mrf.mxu0
        %v2627 = vadd.f32 0.0, %v2626
        %2628 = vmatmul.bf16.gmra.mxu0 %v2602
        %v2629 = vpop.f32.mrf.mxu0
        %v2630 = vadd.f32 0.0, %v2629
        %v2631 = vpop.f32.mrf.mxu0
        %v2632 = vadd.f32 0.0, %v2631
        %2633 = vmatmul.bf16.gmra.mxu0 %v2605
        %v2634 = vpop.f32.mrf.mxu0
        %v2635 = vadd.f32 0.0, %v2634
        %v2636 = vpop.f32.mrf.mxu0
        %v2637 = vadd.f32 0.0, %v2636
        %2638 = vdwg.mxu0
        %v2639 = vadd.f32 %v2572, %v2620
        %v2640 = vadd.f32 %v2573, %v2622
        %v2641 = vadd.f32 %v2574, %v2625
        %v2642 = vadd.f32 %v2575, %v2627
        %v2643 = vadd.f32 %v2576, %v2630
        %v2644 = vadd.f32 %v2577, %v2632
        %v2645 = vadd.f32 %v2578, %v2635
        %v2646 = vadd.f32 %v2579, %v2637
        %s2647 = scalar_lea.vmem %s266, 560
        %v2648 = vld [vmem:[%s2647] sm:$0xff]
        %v2649 = vld [vmem:[%s2647 + $0x10] sm:$0xff]
        %v2650 = vld [vmem:[%s2647 + $0x20] sm:$0xff]
        %v2651 = vld [vmem:[%s2647 + $0x30] sm:$0xff]
        %v2652 = vld [vmem:[%s2647 + $0x40] sm:$0xff]
        %v2653 = vld [vmem:[%s2647 + $0x50] sm:$0xff]
        %v2654 = vld [vmem:[%s2647 + $0x60] sm:$0xff]
        %v2655 = vld [vmem:[%s2647 + $0x70] sm:$0xff]
        %v2656 = vpack.c.bf16 %v2649, %v2648
        %v2657 = vpack.c.bf16 %v2651, %v2650
        %v2658 = vpack.c.bf16 %v2653, %v2652
        %v2659 = vpack.c.bf16 %v2655, %v2654
        %s2660 = scalar_lea.vmem %s271, 72
        %v2661 = vld [vmem:[%s2660] sm:$0x3]
        %v2663 = vsel %vm301, %v2656, 0
        %v2666 = vsel %vm301, %v2657, 0
        %v2669 = vsel %vm301, %v2658, 0
        %v2672 = vsel %vm301, %v2659, 0
        %v2675 = vand.u32 %v2661, %v317
        %2677 = vmatpush.bf16.msra.mxu0 0
        %2678 = vmatpush.bf16.msra.mxu0 0
        %2679 = vmatpush.bf16.msra.mxu0 0
        %2680 = vmatpush.bf16.msra.mxu0 0
        %2681 = vmatpush.bf16.msra.mxu0 0
        %2682 = vmatpush.bf16.msra.mxu0 0
        %2683 = vmatpush.bf16.msra.mxu0 0
        %2684 = vmatpush.bf16.msra.mxu0 %v2675
        %2685 = vmatmul.bf16.gmra.mxu0 %v2663
        %v2686 = vpop.f32.mrf.mxu0
        %v2687 = vadd.f32 0.0, %v2686
        %v2688 = vpop.f32.mrf.mxu0
        %v2689 = vadd.f32 0.0, %v2688
        %2690 = vmatmul.bf16.gmra.mxu0 %v2666
        %v2691 = vpop.f32.mrf.mxu0
        %v2692 = vadd.f32 0.0, %v2691
        %v2693 = vpop.f32.mrf.mxu0
        %v2694 = vadd.f32 0.0, %v2693
        %2695 = vmatmul.bf16.gmra.mxu0 %v2669
        %v2696 = vpop.f32.mrf.mxu0
        %v2697 = vadd.f32 0.0, %v2696
        %v2698 = vpop.f32.mrf.mxu0
        %v2699 = vadd.f32 0.0, %v2698
        %2700 = vmatmul.bf16.gmra.mxu0 %v2672
        %v2701 = vpop.f32.mrf.mxu0
        %v2702 = vadd.f32 0.0, %v2701
        %v2703 = vpop.f32.mrf.mxu0
        %v2704 = vadd.f32 0.0, %v2703
        %2705 = vdwg.mxu0
        %v2706 = vadd.f32 %v2639, %v2687
        %v2707 = vadd.f32 %v2640, %v2689
        %v2708 = vadd.f32 %v2641, %v2692
        %v2709 = vadd.f32 %v2642, %v2694
        %v2710 = vadd.f32 %v2643, %v2697
        %v2711 = vadd.f32 %v2644, %v2699
        %v2712 = vadd.f32 %v2645, %v2702
        %v2713 = vadd.f32 %v2646, %v2704
        %v2714 = vld [vmem:[%s2580 + $0x1] sm:$0xff]
        %v2715 = vld [vmem:[%s2580 + $0x11] sm:$0xff]
        %v2716 = vld [vmem:[%s2580 + $0x21] sm:$0xff]
        %v2717 = vld [vmem:[%s2580 + $0x31] sm:$0xff]
        %v2718 = vld [vmem:[%s2580 + $0x41] sm:$0xff]
        %v2719 = vld [vmem:[%s2580 + $0x51] sm:$0xff]
        %v2720 = vld [vmem:[%s2580 + $0x61] sm:$0xff]
        %v2721 = vld [vmem:[%s2580 + $0x71] sm:$0xff]
        %v2722 = vpack.c.bf16 %v2715, %v2714
        %v2723 = vpack.c.bf16 %v2717, %v2716
        %v2724 = vpack.c.bf16 %v2719, %v2718
        %v2725 = vpack.c.bf16 %v2721, %v2720
        %s2726 = scalar_lea.vmem %s271, 74
        %v2727 = vld [vmem:[%s2726] sm:$0x3]
        %v2729 = vsel %vm301, %v2722, 0
        %v2732 = vsel %vm301, %v2723, 0
        %v2735 = vsel %vm301, %v2724, 0
        %v2738 = vsel %vm301, %v2725, 0
        %v2741 = vand.u32 %v2727, %v317
        %2743 = vmatpush.bf16.msra.mxu0 0
        %2744 = vmatpush.bf16.msra.mxu0 0
        %2745 = vmatpush.bf16.msra.mxu0 0
        %2746 = vmatpush.bf16.msra.mxu0 0
        %2747 = vmatpush.bf16.msra.mxu0 0
        %2748 = vmatpush.bf16.msra.mxu0 0
        %2749 = vmatpush.bf16.msra.mxu0 0
        %2750 = vmatpush.bf16.msra.mxu0 %v2741
        %2751 = vmatmul.bf16.gmra.mxu0 %v2729
        %v2752 = vpop.f32.mrf.mxu0
        %v2753 = vadd.f32 0.0, %v2752
        %v2754 = vpop.f32.mrf.mxu0
        %v2755 = vadd.f32 0.0, %v2754
        %2756 = vmatmul.bf16.gmra.mxu0 %v2732
        %v2757 = vpop.f32.mrf.mxu0
        %v2758 = vadd.f32 0.0, %v2757
        %v2759 = vpop.f32.mrf.mxu0
        %v2760 = vadd.f32 0.0, %v2759
        %2761 = vmatmul.bf16.gmra.mxu0 %v2735
        %v2762 = vpop.f32.mrf.mxu0
        %v2763 = vadd.f32 0.0, %v2762
        %v2764 = vpop.f32.mrf.mxu0
        %v2765 = vadd.f32 0.0, %v2764
        %2766 = vmatmul.bf16.gmra.mxu0 %v2738
        %v2767 = vpop.f32.mrf.mxu0
        %v2768 = vadd.f32 0.0, %v2767
        %v2769 = vpop.f32.mrf.mxu0
        %v2770 = vadd.f32 0.0, %v2769
        %2771 = vdwg.mxu0
        %v2772 = vadd.f32 %v2706, %v2753
        %v2773 = vadd.f32 %v2707, %v2755
        %v2774 = vadd.f32 %v2708, %v2758
        %v2775 = vadd.f32 %v2709, %v2760
        %v2776 = vadd.f32 %v2710, %v2763
        %v2777 = vadd.f32 %v2711, %v2765
        %v2778 = vadd.f32 %v2712, %v2768
        %v2779 = vadd.f32 %v2713, %v2770
        %v2780 = vld [vmem:[%s2647 + $0x1] sm:$0xff]
        %v2781 = vld [vmem:[%s2647 + $0x11] sm:$0xff]
        %v2782 = vld [vmem:[%s2647 + $0x21] sm:$0xff]
        %v2783 = vld [vmem:[%s2647 + $0x31] sm:$0xff]
        %v2784 = vld [vmem:[%s2647 + $0x41] sm:$0xff]
        %v2785 = vld [vmem:[%s2647 + $0x51] sm:$0xff]
        %v2786 = vld [vmem:[%s2647 + $0x61] sm:$0xff]
        %v2787 = vld [vmem:[%s2647 + $0x71] sm:$0xff]
        %v2788 = vpack.c.bf16 %v2781, %v2780
        %v2789 = vpack.c.bf16 %v2783, %v2782
        %v2790 = vpack.c.bf16 %v2785, %v2784
        %v2791 = vpack.c.bf16 %v2787, %v2786
        %s2792 = scalar_lea.vmem %s271, 76
        %v2793 = vld [vmem:[%s2792] sm:$0x3]
        %v2795 = vsel %vm301, %v2788, 0
        %v2798 = vsel %vm301, %v2789, 0
        %v2801 = vsel %vm301, %v2790, 0
        %v2804 = vsel %vm301, %v2791, 0
        %v2807 = vand.u32 %v2793, %v317
        %2809 = vmatpush.bf16.msra.mxu0 0
        %2810 = vmatpush.bf16.msra.mxu0 0
        %2811 = vmatpush.bf16.msra.mxu0 0
        %2812 = vmatpush.bf16.msra.mxu0 0
        %2813 = vmatpush.bf16.msra.mxu0 0
        %2814 = vmatpush.bf16.msra.mxu0 0
        %2815 = vmatpush.bf16.msra.mxu0 0
        %2816 = vmatpush.bf16.msra.mxu0 %v2807
        %2817 = vmatmul.bf16.gmra.mxu0 %v2795
        %v2818 = vpop.f32.mrf.mxu0
        %v2819 = vadd.f32 0.0, %v2818
        %v2820 = vpop.f32.mrf.mxu0
        %v2821 = vadd.f32 0.0, %v2820
        %2822 = vmatmul.bf16.gmra.mxu0 %v2798
        %v2823 = vpop.f32.mrf.mxu0
        %v2824 = vadd.f32 0.0, %v2823
        %v2825 = vpop.f32.mrf.mxu0
        %v2826 = vadd.f32 0.0, %v2825
        %2827 = vmatmul.bf16.gmra.mxu0 %v2801
        %v2828 = vpop.f32.mrf.mxu0
        %v2829 = vadd.f32 0.0, %v2828
        %v2830 = vpop.f32.mrf.mxu0
        %v2831 = vadd.f32 0.0, %v2830
        %2832 = vmatmul.bf16.gmra.mxu0 %v2804
        %v2833 = vpop.f32.mrf.mxu0
        %v2834 = vadd.f32 0.0, %v2833
        %v2835 = vpop.f32.mrf.mxu0
        %v2836 = vadd.f32 0.0, %v2835
        %2837 = vdwg.mxu0
        %v2838 = vadd.f32 %v2772, %v2819
        %v2839 = vadd.f32 %v2773, %v2821
        %v2840 = vadd.f32 %v2774, %v2824
        %v2841 = vadd.f32 %v2775, %v2826
        %v2842 = vadd.f32 %v2776, %v2829
        %v2843 = vadd.f32 %v2777, %v2831
        %v2844 = vadd.f32 %v2778, %v2834
        %v2845 = vadd.f32 %v2779, %v2836
        %v2846 = vld [vmem:[%s2580 + $0x2] sm:$0xff]
        %v2847 = vld [vmem:[%s2580 + $0x12] sm:$0xff]
        %v2848 = vld [vmem:[%s2580 + $0x22] sm:$0xff]
        %v2849 = vld [vmem:[%s2580 + $0x32] sm:$0xff]
        %v2850 = vld [vmem:[%s2580 + $0x42] sm:$0xff]
        %v2851 = vld [vmem:[%s2580 + $0x52] sm:$0xff]
        %v2852 = vld [vmem:[%s2580 + $0x62] sm:$0xff]
        %v2853 = vld [vmem:[%s2580 + $0x72] sm:$0xff]
        %v2854 = vpack.c.bf16 %v2847, %v2846
        %v2855 = vpack.c.bf16 %v2849, %v2848
        %v2856 = vpack.c.bf16 %v2851, %v2850
        %v2857 = vpack.c.bf16 %v2853, %v2852
        %s2858 = scalar_lea.vmem %s271, 78
        %v2859 = vld [vmem:[%s2858] sm:$0x3]
        %v2861 = vsel %vm301, %v2854, 0
        %v2864 = vsel %vm301, %v2855, 0
        %v2867 = vsel %vm301, %v2856, 0
        %v2870 = vsel %vm301, %v2857, 0
        %v2873 = vand.u32 %v2859, %v317
        %2875 = vmatpush.bf16.msra.mxu0 0
        %2876 = vmatpush.bf16.msra.mxu0 0
        %2877 = vmatpush.bf16.msra.mxu0 0
        %2878 = vmatpush.bf16.msra.mxu0 0
        %2879 = vmatpush.bf16.msra.mxu0 0
        %2880 = vmatpush.bf16.msra.mxu0 0
        %2881 = vmatpush.bf16.msra.mxu0 0
        %2882 = vmatpush.bf16.msra.mxu0 %v2873
        %2883 = vmatmul.bf16.gmra.mxu0 %v2861
        %v2884 = vpop.f32.mrf.mxu0
        %v2885 = vadd.f32 0.0, %v2884
        %v2886 = vpop.f32.mrf.mxu0
        %v2887 = vadd.f32 0.0, %v2886
        %2888 = vmatmul.bf16.gmra.mxu0 %v2864
        %v2889 = vpop.f32.mrf.mxu0
        %v2890 = vadd.f32 0.0, %v2889
        %v2891 = vpop.f32.mrf.mxu0
        %v2892 = vadd.f32 0.0, %v2891
        %2893 = vmatmul.bf16.gmra.mxu0 %v2867
        %v2894 = vpop.f32.mrf.mxu0
        %v2895 = vadd.f32 0.0, %v2894
        %v2896 = vpop.f32.mrf.mxu0
        %v2897 = vadd.f32 0.0, %v2896
        %2898 = vmatmul.bf16.gmra.mxu0 %v2870
        %v2899 = vpop.f32.mrf.mxu0
        %v2900 = vadd.f32 0.0, %v2899
        %v2901 = vpop.f32.mrf.mxu0
        %v2902 = vadd.f32 0.0, %v2901
        %2903 = vdwg.mxu0
        %v2904 = vadd.f32 %v2838, %v2885
        %v2905 = vadd.f32 %v2839, %v2887
        %v2906 = vadd.f32 %v2840, %v2890
        %v2907 = vadd.f32 %v2841, %v2892
        %v2908 = vadd.f32 %v2842, %v2895
        %v2909 = vadd.f32 %v2843, %v2897
        %v2910 = vadd.f32 %v2844, %v2900
        %v2911 = vadd.f32 %v2845, %v2902
        %v2912 = vld [vmem:[%s2647 + $0x2] sm:$0xff]
        %v2913 = vld [vmem:[%s2647 + $0x12] sm:$0xff]
        %v2914 = vld [vmem:[%s2647 + $0x22] sm:$0xff]
        %v2915 = vld [vmem:[%s2647 + $0x32] sm:$0xff]
        %v2916 = vld [vmem:[%s2647 + $0x42] sm:$0xff]
        %v2917 = vld [vmem:[%s2647 + $0x52] sm:$0xff]
        %v2918 = vld [vmem:[%s2647 + $0x62] sm:$0xff]
        %v2919 = vld [vmem:[%s2647 + $0x72] sm:$0xff]
        %v2920 = vpack.c.bf16 %v2913, %v2912
        %v2921 = vpack.c.bf16 %v2915, %v2914
        %v2922 = vpack.c.bf16 %v2917, %v2916
        %v2923 = vpack.c.bf16 %v2919, %v2918
        %s2924 = scalar_lea.vmem %s271, 80
        %v2925 = vld [vmem:[%s2924] sm:$0x3]
        %v2927 = vsel %vm301, %v2920, 0
        %v2930 = vsel %vm301, %v2921, 0
        %v2933 = vsel %vm301, %v2922, 0
        %v2936 = vsel %vm301, %v2923, 0
        %v2939 = vand.u32 %v2925, %v317
        %2941 = vmatpush.bf16.msra.mxu0 0
        %2942 = vmatpush.bf16.msra.mxu0 0
        %2943 = vmatpush.bf16.msra.mxu0 0
        %2944 = vmatpush.bf16.msra.mxu0 0
        %2945 = vmatpush.bf16.msra.mxu0 0
        %2946 = vmatpush.bf16.msra.mxu0 0
        %2947 = vmatpush.bf16.msra.mxu0 0
        %2948 = vmatpush.bf16.msra.mxu0 %v2939
        %2949 = vmatmul.bf16.gmra.mxu0 %v2927
        %v2950 = vpop.f32.mrf.mxu0
        %v2951 = vadd.f32 0.0, %v2950
        %v2952 = vpop.f32.mrf.mxu0
        %v2953 = vadd.f32 0.0, %v2952
        %2954 = vmatmul.bf16.gmra.mxu0 %v2930
        %v2955 = vpop.f32.mrf.mxu0
        %v2956 = vadd.f32 0.0, %v2955
        %v2957 = vpop.f32.mrf.mxu0
        %v2958 = vadd.f32 0.0, %v2957
        %2959 = vmatmul.bf16.gmra.mxu0 %v2933
        %v2960 = vpop.f32.mrf.mxu0
        %v2961 = vadd.f32 0.0, %v2960
        %v2962 = vpop.f32.mrf.mxu0
        %v2963 = vadd.f32 0.0, %v2962
        %2964 = vmatmul.bf16.gmra.mxu0 %v2936
        %v2965 = vpop.f32.mrf.mxu0
        %v2966 = vadd.f32 0.0, %v2965
        %v2967 = vpop.f32.mrf.mxu0
        %v2968 = vadd.f32 0.0, %v2967
        %2969 = vdwg.mxu0
        %v2970 = vadd.f32 %v2904, %v2951
        %v2971 = vadd.f32 %v2905, %v2953
        %v2972 = vadd.f32 %v2906, %v2956
        %v2973 = vadd.f32 %v2907, %v2958
        %v2974 = vadd.f32 %v2908, %v2961
        %v2975 = vadd.f32 %v2909, %v2963
        %v2976 = vadd.f32 %v2910, %v2966
        %v2977 = vadd.f32 %v2911, %v2968
        %v2978 = vld [vmem:[%s2580 + $0x3] sm:$0xff]
        %v2979 = vld [vmem:[%s2580 + $0x13] sm:$0xff]
        %v2980 = vld [vmem:[%s2580 + $0x23] sm:$0xff]
        %v2981 = vld [vmem:[%s2580 + $0x33] sm:$0xff]
        %v2982 = vld [vmem:[%s2580 + $0x43] sm:$0xff]
        %v2983 = vld [vmem:[%s2580 + $0x53] sm:$0xff]
        %v2984 = vld [vmem:[%s2580 + $0x63] sm:$0xff]
        %v2985 = vld [vmem:[%s2580 + $0x73] sm:$0xff]
        %v2986 = vpack.c.bf16 %v2979, %v2978
        %v2987 = vpack.c.bf16 %v2981, %v2980
        %v2988 = vpack.c.bf16 %v2983, %v2982
        %v2989 = vpack.c.bf16 %v2985, %v2984
        %s2990 = scalar_lea.vmem %s271, 82
        %v2991 = vld [vmem:[%s2990] sm:$0x3]
        %v2993 = vsel %vm301, %v2986, 0
        %v2996 = vsel %vm301, %v2987, 0
        %v2999 = vsel %vm301, %v2988, 0
        %v3002 = vsel %vm301, %v2989, 0
        %v3005 = vand.u32 %v2991, %v317
        %3007 = vmatpush.bf16.msra.mxu0 0
        %3008 = vmatpush.bf16.msra.mxu0 0
        %3009 = vmatpush.bf16.msra.mxu0 0
        %3010 = vmatpush.bf16.msra.mxu0 0
        %3011 = vmatpush.bf16.msra.mxu0 0
        %3012 = vmatpush.bf16.msra.mxu0 0
        %3013 = vmatpush.bf16.msra.mxu0 0
        %3014 = vmatpush.bf16.msra.mxu0 %v3005
        %3015 = vmatmul.bf16.gmra.mxu0 %v2993
        %v3016 = vpop.f32.mrf.mxu0
        %v3017 = vadd.f32 0.0, %v3016
        %v3018 = vpop.f32.mrf.mxu0
        %v3019 = vadd.f32 0.0, %v3018
        %3020 = vmatmul.bf16.gmra.mxu0 %v2996
        %v3021 = vpop.f32.mrf.mxu0
        %v3022 = vadd.f32 0.0, %v3021
        %v3023 = vpop.f32.mrf.mxu0
        %v3024 = vadd.f32 0.0, %v3023
        %3025 = vmatmul.bf16.gmra.mxu0 %v2999
        %v3026 = vpop.f32.mrf.mxu0
        %v3027 = vadd.f32 0.0, %v3026
        %v3028 = vpop.f32.mrf.mxu0
        %v3029 = vadd.f32 0.0, %v3028
        %3030 = vmatmul.bf16.gmra.mxu0 %v3002
        %v3031 = vpop.f32.mrf.mxu0
        %v3032 = vadd.f32 0.0, %v3031
        %v3033 = vpop.f32.mrf.mxu0
        %v3034 = vadd.f32 0.0, %v3033
        %3035 = vdwg.mxu0
        %v3036 = vadd.f32 %v2970, %v3017
        %v3037 = vadd.f32 %v2971, %v3019
        %v3038 = vadd.f32 %v2972, %v3022
        %v3039 = vadd.f32 %v2973, %v3024
        %v3040 = vadd.f32 %v2974, %v3027
        %v3041 = vadd.f32 %v2975, %v3029
        %v3042 = vadd.f32 %v2976, %v3032
        %v3043 = vadd.f32 %v2977, %v3034
        %s3044 = scalar_lea.vmem %s266, 48
        %v3045 = vld [vmem:[%s3044] sm:$0xff]
        %v3046 = vld [vmem:[%s3044 + $0x10] sm:$0xff]
        %v3047 = vld [vmem:[%s3044 + $0x20] sm:$0xff]
        %v3048 = vld [vmem:[%s3044 + $0x30] sm:$0xff]
        %v3049 = vld [vmem:[%s3044 + $0x40] sm:$0xff]
        %v3050 = vld [vmem:[%s3044 + $0x50] sm:$0xff]
        %v3051 = vld [vmem:[%s3044 + $0x60] sm:$0xff]
        %v3052 = vld [vmem:[%s3044 + $0x70] sm:$0xff]
        %v3053 = vpack.c.bf16 %v3046, %v3045
        %v3054 = vpack.c.bf16 %v3048, %v3047
        %v3055 = vpack.c.bf16 %v3050, %v3049
        %v3056 = vpack.c.bf16 %v3052, %v3051
        %s3057 = scalar_lea.vmem %s271, 84
        %v3058 = vld [vmem:[%s3057] sm:$0x3]
        %v3060 = vsel %vm301, %v3053, 0
        %v3063 = vsel %vm301, %v3054, 0
        %v3066 = vsel %vm301, %v3055, 0
        %v3069 = vsel %vm301, %v3056, 0
        %v3072 = vand.u32 %v3058, %v317
        %3074 = vmatpush.bf16.msra.mxu0 0
        %3075 = vmatpush.bf16.msra.mxu0 0
        %3076 = vmatpush.bf16.msra.mxu0 0
        %3077 = vmatpush.bf16.msra.mxu0 0
        %3078 = vmatpush.bf16.msra.mxu0 0
        %3079 = vmatpush.bf16.msra.mxu0 0
        %3080 = vmatpush.bf16.msra.mxu0 0
        %3081 = vmatpush.bf16.msra.mxu0 %v3072
        %3082 = vmatmul.bf16.gmra.mxu0 %v3060
        %v3083 = vpop.f32.mrf.mxu0
        %v3084 = vadd.f32 0.0, %v3083
        %v3085 = vpop.f32.mrf.mxu0
        %v3086 = vadd.f32 0.0, %v3085
        %3087 = vmatmul.bf16.gmra.mxu0 %v3063
        %v3088 = vpop.f32.mrf.mxu0
        %v3089 = vadd.f32 0.0, %v3088
        %v3090 = vpop.f32.mrf.mxu0
        %v3091 = vadd.f32 0.0, %v3090
        %3092 = vmatmul.bf16.gmra.mxu0 %v3066
        %v3093 = vpop.f32.mrf.mxu0
        %v3094 = vadd.f32 0.0, %v3093
        %v3095 = vpop.f32.mrf.mxu0
        %v3096 = vadd.f32 0.0, %v3095
        %3097 = vmatmul.bf16.gmra.mxu0 %v3069
        %v3098 = vpop.f32.mrf.mxu0
        %v3099 = vadd.f32 0.0, %v3098
        %v3100 = vpop.f32.mrf.mxu0
        %v3101 = vadd.f32 0.0, %v3100
        %3102 = vdwg.mxu0
        %v3103 = vadd.f32 %v3036, %v3084
        %v3104 = vadd.f32 %v3037, %v3086
        %v3105 = vadd.f32 %v3038, %v3089
        %v3106 = vadd.f32 %v3039, %v3091
        %v3107 = vadd.f32 %v3040, %v3094
        %v3108 = vadd.f32 %v3041, %v3096
        %v3109 = vadd.f32 %v3042, %v3099
        %v3110 = vadd.f32 %v3043, %v3101
        %s3111 = scalar_lea.vmem %s266, 224
        %v3112 = vld [vmem:[%s3111] sm:$0xff]
        %v3113 = vld [vmem:[%s3111 + $0x10] sm:$0xff]
        %v3114 = vld [vmem:[%s3111 + $0x20] sm:$0xff]
        %v3115 = vld [vmem:[%s3111 + $0x30] sm:$0xff]
        %v3116 = vld [vmem:[%s3111 + $0x40] sm:$0xff]
        %v3117 = vld [vmem:[%s3111 + $0x50] sm:$0xff]
        %v3118 = vld [vmem:[%s3111 + $0x60] sm:$0xff]
        %v3119 = vld [vmem:[%s3111 + $0x70] sm:$0xff]
        %v3120 = vpack.c.bf16 %v3113, %v3112
        %v3121 = vpack.c.bf16 %v3115, %v3114
        %v3122 = vpack.c.bf16 %v3117, %v3116
        %v3123 = vpack.c.bf16 %v3119, %v3118
        %s3124 = scalar_lea.vmem %s271, 86
        %v3125 = vld [vmem:[%s3124] sm:$0x3]
        %v3127 = vsel %vm301, %v3120, 0
        %v3130 = vsel %vm301, %v3121, 0
        %v3133 = vsel %vm301, %v3122, 0
        %v3136 = vsel %vm301, %v3123, 0
        %v3139 = vand.u32 %v3125, %v317
        %3141 = vmatpush.bf16.msra.mxu0 0
        %3142 = vmatpush.bf16.msra.mxu0 0
        %3143 = vmatpush.bf16.msra.mxu0 0
        %3144 = vmatpush.bf16.msra.mxu0 0
        %3145 = vmatpush.bf16.msra.mxu0 0
        %3146 = vmatpush.bf16.msra.mxu0 0
        %3147 = vmatpush.bf16.msra.mxu0 0
        %3148 = vmatpush.bf16.msra.mxu0 %v3139
        %3149 = vmatmul.bf16.gmra.mxu0 %v3127
        %v3150 = vpop.f32.mrf.mxu0
        %v3151 = vadd.f32 0.0, %v3150
        %v3152 = vpop.f32.mrf.mxu0
        %v3153 = vadd.f32 0.0, %v3152
        %3154 = vmatmul.bf16.gmra.mxu0 %v3130
        %v3155 = vpop.f32.mrf.mxu0
        %v3156 = vadd.f32 0.0, %v3155
        %v3157 = vpop.f32.mrf.mxu0
        %v3158 = vadd.f32 0.0, %v3157
        %3159 = vmatmul.bf16.gmra.mxu0 %v3133
        %v3160 = vpop.f32.mrf.mxu0
        %v3161 = vadd.f32 0.0, %v3160
        %v3162 = vpop.f32.mrf.mxu0
        %v3163 = vadd.f32 0.0, %v3162
        %3164 = vmatmul.bf16.gmra.mxu0 %v3136
        %v3165 = vpop.f32.mrf.mxu0
        %v3166 = vadd.f32 0.0, %v3165
        %v3167 = vpop.f32.mrf.mxu0
        %v3168 = vadd.f32 0.0, %v3167
        %3169 = vdwg.mxu0
        %v3170 = vadd.f32 %v3103, %v3151
        %v3171 = vadd.f32 %v3104, %v3153
        %v3172 = vadd.f32 %v3105, %v3156
        %v3173 = vadd.f32 %v3106, %v3158
        %v3174 = vadd.f32 %v3107, %v3161
        %v3175 = vadd.f32 %v3108, %v3163
        %v3176 = vadd.f32 %v3109, %v3166
        %v3177 = vadd.f32 %v3110, %v3168
        %v3178 = vld [vmem:[%s3044 + $0x1] sm:$0xff]
        %v3179 = vld [vmem:[%s3044 + $0x11] sm:$0xff]
        %v3180 = vld [vmem:[%s3044 + $0x21] sm:$0xff]
        %v3181 = vld [vmem:[%s3044 + $0x31] sm:$0xff]
        %v3182 = vld [vmem:[%s3044 + $0x41] sm:$0xff]
        %v3183 = vld [vmem:[%s3044 + $0x51] sm:$0xff]
        %v3184 = vld [vmem:[%s3044 + $0x61] sm:$0xff]
        %v3185 = vld [vmem:[%s3044 + $0x71] sm:$0xff]
        %v3186 = vpack.c.bf16 %v3179, %v3178
        %v3187 = vpack.c.bf16 %v3181, %v3180
        %v3188 = vpack.c.bf16 %v3183, %v3182
        %v3189 = vpack.c.bf16 %v3185, %v3184
        %s3190 = scalar_lea.vmem %s271, 88
        %v3191 = vld [vmem:[%s3190] sm:$0x3]
        %v3193 = vsel %vm301, %v3186, 0
        %v3196 = vsel %vm301, %v3187, 0
        %v3199 = vsel %vm301, %v3188, 0
        %v3202 = vsel %vm301, %v3189, 0
        %v3205 = vand.u32 %v3191, %v317
        %3207 = vmatpush.bf16.msra.mxu0 0
        %3208 = vmatpush.bf16.msra.mxu0 0
        %3209 = vmatpush.bf16.msra.mxu0 0
        %3210 = vmatpush.bf16.msra.mxu0 0
        %3211 = vmatpush.bf16.msra.mxu0 0
        %3212 = vmatpush.bf16.msra.mxu0 0
        %3213 = vmatpush.bf16.msra.mxu0 0
        %3214 = vmatpush.bf16.msra.mxu0 %v3205
        %3215 = vmatmul.bf16.gmra.mxu0 %v3193
        %v3216 = vpop.f32.mrf.mxu0
        %v3217 = vadd.f32 0.0, %v3216
        %v3218 = vpop.f32.mrf.mxu0
        %v3219 = vadd.f32 0.0, %v3218
        %3220 = vmatmul.bf16.gmra.mxu0 %v3196
        %v3221 = vpop.f32.mrf.mxu0
        %v3222 = vadd.f32 0.0, %v3221
        %v3223 = vpop.f32.mrf.mxu0
        %v3224 = vadd.f32 0.0, %v3223
        %3225 = vmatmul.bf16.gmra.mxu0 %v3199
        %v3226 = vpop.f32.mrf.mxu0
        %v3227 = vadd.f32 0.0, %v3226
        %v3228 = vpop.f32.mrf.mxu0
        %v3229 = vadd.f32 0.0, %v3228
        %3230 = vmatmul.bf16.gmra.mxu0 %v3202
        %v3231 = vpop.f32.mrf.mxu0
        %v3232 = vadd.f32 0.0, %v3231
        %v3233 = vpop.f32.mrf.mxu0
        %v3234 = vadd.f32 0.0, %v3233
        %3235 = vdwg.mxu0
        %v3236 = vadd.f32 %v3170, %v3217
        %v3237 = vadd.f32 %v3171, %v3219
        %v3238 = vadd.f32 %v3172, %v3222
        %v3239 = vadd.f32 %v3173, %v3224
        %v3240 = vadd.f32 %v3174, %v3227
        %v3241 = vadd.f32 %v3175, %v3229
        %v3242 = vadd.f32 %v3176, %v3232
        %v3243 = vadd.f32 %v3177, %v3234
        %v3244 = vld [vmem:[%s3111 + $0x1] sm:$0xff]
        %v3245 = vld [vmem:[%s3111 + $0x11] sm:$0xff]
        %v3246 = vld [vmem:[%s3111 + $0x21] sm:$0xff]
        %v3247 = vld [vmem:[%s3111 + $0x31] sm:$0xff]
        %v3248 = vld [vmem:[%s3111 + $0x41] sm:$0xff]
        %v3249 = vld [vmem:[%s3111 + $0x51] sm:$0xff]
        %v3250 = vld [vmem:[%s3111 + $0x61] sm:$0xff]
        %v3251 = vld [vmem:[%s3111 + $0x71] sm:$0xff]
        %v3252 = vpack.c.bf16 %v3245, %v3244
        %v3253 = vpack.c.bf16 %v3247, %v3246
        %v3254 = vpack.c.bf16 %v3249, %v3248
        %v3255 = vpack.c.bf16 %v3251, %v3250
        %s3256 = scalar_lea.vmem %s271, 90
        %v3257 = vld [vmem:[%s3256] sm:$0x3]
        %v3259 = vsel %vm301, %v3252, 0
        %v3262 = vsel %vm301, %v3253, 0
        %v3265 = vsel %vm301, %v3254, 0
        %v3268 = vsel %vm301, %v3255, 0
        %v3271 = vand.u32 %v3257, %v317
        %3273 = vmatpush.bf16.msra.mxu0 0
        %3274 = vmatpush.bf16.msra.mxu0 0
        %3275 = vmatpush.bf16.msra.mxu0 0
        %3276 = vmatpush.bf16.msra.mxu0 0
        %3277 = vmatpush.bf16.msra.mxu0 0
        %3278 = vmatpush.bf16.msra.mxu0 0
        %3279 = vmatpush.bf16.msra.mxu0 0
        %3280 = vmatpush.bf16.msra.mxu0 %v3271
        %3281 = vmatmul.bf16.gmra.mxu0 %v3259
        %v3282 = vpop.f32.mrf.mxu0
        %v3283 = vadd.f32 0.0, %v3282
        %v3284 = vpop.f32.mrf.mxu0
        %v3285 = vadd.f32 0.0, %v3284
        %3286 = vmatmul.bf16.gmra.mxu0 %v3262
        %v3287 = vpop.f32.mrf.mxu0
        %v3288 = vadd.f32 0.0, %v3287
        %v3289 = vpop.f32.mrf.mxu0
        %v3290 = vadd.f32 0.0, %v3289
        %3291 = vmatmul.bf16.gmra.mxu0 %v3265
        %v3292 = vpop.f32.mrf.mxu0
        %v3293 = vadd.f32 0.0, %v3292
        %v3294 = vpop.f32.mrf.mxu0
        %v3295 = vadd.f32 0.0, %v3294
        %3296 = vmatmul.bf16.gmra.mxu0 %v3268
        %v3297 = vpop.f32.mrf.mxu0
        %v3298 = vadd.f32 0.0, %v3297
        %v3299 = vpop.f32.mrf.mxu0
        %v3300 = vadd.f32 0.0, %v3299
        %3301 = vdwg.mxu0
        %v3302 = vadd.f32 %v3236, %v3283
        %v3303 = vadd.f32 %v3237, %v3285
        %v3304 = vadd.f32 %v3238, %v3288
        %v3305 = vadd.f32 %v3239, %v3290
        %v3306 = vadd.f32 %v3240, %v3293
        %v3307 = vadd.f32 %v3241, %v3295
        %v3308 = vadd.f32 %v3242, %v3298
        %v3309 = vadd.f32 %v3243, %v3300
        %v3310 = vld [vmem:[%s3044 + $0x2] sm:$0xff]
        %v3311 = vld [vmem:[%s3044 + $0x12] sm:$0xff]
        %v3312 = vld [vmem:[%s3044 + $0x22] sm:$0xff]
        %v3313 = vld [vmem:[%s3044 + $0x32] sm:$0xff]
        %v3314 = vld [vmem:[%s3044 + $0x42] sm:$0xff]
        %v3315 = vld [vmem:[%s3044 + $0x52] sm:$0xff]
        %v3316 = vld [vmem:[%s3044 + $0x62] sm:$0xff]
        %v3317 = vld [vmem:[%s3044 + $0x72] sm:$0xff]
        %v3318 = vpack.c.bf16 %v3311, %v3310
        %v3319 = vpack.c.bf16 %v3313, %v3312
        %v3320 = vpack.c.bf16 %v3315, %v3314
        %v3321 = vpack.c.bf16 %v3317, %v3316
        %s3322 = scalar_lea.vmem %s271, 92
        %v3323 = vld [vmem:[%s3322] sm:$0x3]
        %v3325 = vsel %vm301, %v3318, 0
        %v3328 = vsel %vm301, %v3319, 0
        %v3331 = vsel %vm301, %v3320, 0
        %v3334 = vsel %vm301, %v3321, 0
        %v3337 = vand.u32 %v3323, %v317
        %3339 = vmatpush.bf16.msra.mxu0 0
        %3340 = vmatpush.bf16.msra.mxu0 0
        %3341 = vmatpush.bf16.msra.mxu0 0
        %3342 = vmatpush.bf16.msra.mxu0 0
        %3343 = vmatpush.bf16.msra.mxu0 0
        %3344 = vmatpush.bf16.msra.mxu0 0
        %3345 = vmatpush.bf16.msra.mxu0 0
        %3346 = vmatpush.bf16.msra.mxu0 %v3337
        %3347 = vmatmul.bf16.gmra.mxu0 %v3325
        %v3348 = vpop.f32.mrf.mxu0
        %v3349 = vadd.f32 0.0, %v3348
        %v3350 = vpop.f32.mrf.mxu0
        %v3351 = vadd.f32 0.0, %v3350
        %3352 = vmatmul.bf16.gmra.mxu0 %v3328
        %v3353 = vpop.f32.mrf.mxu0
        %v3354 = vadd.f32 0.0, %v3353
        %v3355 = vpop.f32.mrf.mxu0
        %v3356 = vadd.f32 0.0, %v3355
        %3357 = vmatmul.bf16.gmra.mxu0 %v3331
        %v3358 = vpop.f32.mrf.mxu0
        %v3359 = vadd.f32 0.0, %v3358
        %v3360 = vpop.f32.mrf.mxu0
        %v3361 = vadd.f32 0.0, %v3360
        %3362 = vmatmul.bf16.gmra.mxu0 %v3334
        %v3363 = vpop.f32.mrf.mxu0
        %v3364 = vadd.f32 0.0, %v3363
        %v3365 = vpop.f32.mrf.mxu0
        %v3366 = vadd.f32 0.0, %v3365
        %3367 = vdwg.mxu0
        %v3368 = vadd.f32 %v3302, %v3349
        %v3369 = vadd.f32 %v3303, %v3351
        %v3370 = vadd.f32 %v3304, %v3354
        %v3371 = vadd.f32 %v3305, %v3356
        %v3372 = vadd.f32 %v3306, %v3359
        %v3373 = vadd.f32 %v3307, %v3361
        %v3374 = vadd.f32 %v3308, %v3364
        %v3375 = vadd.f32 %v3309, %v3366
        %v3376 = vld [vmem:[%s3111 + $0x2] sm:$0xff]
        %v3377 = vld [vmem:[%s3111 + $0x12] sm:$0xff]
        %v3378 = vld [vmem:[%s3111 + $0x22] sm:$0xff]
        %v3379 = vld [vmem:[%s3111 + $0x32] sm:$0xff]
        %v3380 = vld [vmem:[%s3111 + $0x42] sm:$0xff]
        %v3381 = vld [vmem:[%s3111 + $0x52] sm:$0xff]
        %v3382 = vld [vmem:[%s3111 + $0x62] sm:$0xff]
        %v3383 = vld [vmem:[%s3111 + $0x72] sm:$0xff]
        %v3384 = vpack.c.bf16 %v3377, %v3376
        %v3385 = vpack.c.bf16 %v3379, %v3378
        %v3386 = vpack.c.bf16 %v3381, %v3380
        %v3387 = vpack.c.bf16 %v3383, %v3382
        %s3388 = scalar_lea.vmem %s271, 94
        %v3389 = vld [vmem:[%s3388] sm:$0x3]
        %v3391 = vsel %vm301, %v3384, 0
        %v3394 = vsel %vm301, %v3385, 0
        %v3397 = vsel %vm301, %v3386, 0
        %v3400 = vsel %vm301, %v3387, 0
        %v3403 = vand.u32 %v3389, %v317
        %3405 = vmatpush.bf16.msra.mxu0 0
        %3406 = vmatpush.bf16.msra.mxu0 0
        %3407 = vmatpush.bf16.msra.mxu0 0
        %3408 = vmatpush.bf16.msra.mxu0 0
        %3409 = vmatpush.bf16.msra.mxu0 0
        %3410 = vmatpush.bf16.msra.mxu0 0
        %3411 = vmatpush.bf16.msra.mxu0 0
        %3412 = vmatpush.bf16.msra.mxu0 %v3403
        %3413 = vmatmul.bf16.gmra.mxu0 %v3391
        %v3414 = vpop.f32.mrf.mxu0
        %v3415 = vadd.f32 0.0, %v3414
        %v3416 = vpop.f32.mrf.mxu0
        %v3417 = vadd.f32 0.0, %v3416
        %3418 = vmatmul.bf16.gmra.mxu0 %v3394
        %v3419 = vpop.f32.mrf.mxu0
        %v3420 = vadd.f32 0.0, %v3419
        %v3421 = vpop.f32.mrf.mxu0
        %v3422 = vadd.f32 0.0, %v3421
        %3423 = vmatmul.bf16.gmra.mxu0 %v3397
        %v3424 = vpop.f32.mrf.mxu0
        %v3425 = vadd.f32 0.0, %v3424
        %v3426 = vpop.f32.mrf.mxu0
        %v3427 = vadd.f32 0.0, %v3426
        %3428 = vmatmul.bf16.gmra.mxu0 %v3400
        %v3429 = vpop.f32.mrf.mxu0
        %v3430 = vadd.f32 0.0, %v3429
        %v3431 = vpop.f32.mrf.mxu0
        %v3432 = vadd.f32 0.0, %v3431
        %3433 = vdwg.mxu0
        %v3434 = vadd.f32 %v3368, %v3415
        %v3435 = vadd.f32 %v3369, %v3417
        %v3436 = vadd.f32 %v3370, %v3420
        %v3437 = vadd.f32 %v3371, %v3422
        %v3438 = vadd.f32 %v3372, %v3425
        %v3439 = vadd.f32 %v3373, %v3427
        %v3440 = vadd.f32 %v3374, %v3430
        %v3441 = vadd.f32 %v3375, %v3432
        %v3442 = vld [vmem:[%s3044 + $0x3] sm:$0xff]
        %v3443 = vld [vmem:[%s3044 + $0x13] sm:$0xff]
        %v3444 = vld [vmem:[%s3044 + $0x23] sm:$0xff]
        %v3445 = vld [vmem:[%s3044 + $0x33] sm:$0xff]
        %v3446 = vld [vmem:[%s3044 + $0x43] sm:$0xff]
        %v3447 = vld [vmem:[%s3044 + $0x53] sm:$0xff]
        %v3448 = vld [vmem:[%s3044 + $0x63] sm:$0xff]
        %v3449 = vld [vmem:[%s3044 + $0x73] sm:$0xff]
        %v3450 = vpack.c.bf16 %v3443, %v3442
        %v3451 = vpack.c.bf16 %v3445, %v3444
        %v3452 = vpack.c.bf16 %v3447, %v3446
        %v3453 = vpack.c.bf16 %v3449, %v3448
        %s3454 = scalar_lea.vmem %s271, 96
        %v3455 = vld [vmem:[%s3454] sm:$0x3]
        %v3457 = vsel %vm301, %v3450, 0
        %v3460 = vsel %vm301, %v3451, 0
        %v3463 = vsel %vm301, %v3452, 0
        %v3466 = vsel %vm301, %v3453, 0
        %v3469 = vand.u32 %v3455, %v317
        %3471 = vmatpush.bf16.msra.mxu0 0
        %3472 = vmatpush.bf16.msra.mxu0 0
        %3473 = vmatpush.bf16.msra.mxu0 0
        %3474 = vmatpush.bf16.msra.mxu0 0
        %3475 = vmatpush.bf16.msra.mxu0 0
        %3476 = vmatpush.bf16.msra.mxu0 0
        %3477 = vmatpush.bf16.msra.mxu0 0
        %3478 = vmatpush.bf16.msra.mxu0 %v3469
        %3479 = vmatmul.bf16.gmra.mxu0 %v3457
        %v3480 = vpop.f32.mrf.mxu0
        %v3481 = vadd.f32 0.0, %v3480
        %v3482 = vpop.f32.mrf.mxu0
        %v3483 = vadd.f32 0.0, %v3482
        %3484 = vmatmul.bf16.gmra.mxu0 %v3460
        %v3485 = vpop.f32.mrf.mxu0
        %v3486 = vadd.f32 0.0, %v3485
        %v3487 = vpop.f32.mrf.mxu0
        %v3488 = vadd.f32 0.0, %v3487
        %3489 = vmatmul.bf16.gmra.mxu0 %v3463
        %v3490 = vpop.f32.mrf.mxu0
        %v3491 = vadd.f32 0.0, %v3490
        %v3492 = vpop.f32.mrf.mxu0
        %v3493 = vadd.f32 0.0, %v3492
        %3494 = vmatmul.bf16.gmra.mxu0 %v3466
        %v3495 = vpop.f32.mrf.mxu0
        %v3496 = vadd.f32 0.0, %v3495
        %v3497 = vpop.f32.mrf.mxu0
        %v3498 = vadd.f32 0.0, %v3497
        %3499 = vdwg.mxu0
        %v3500 = vadd.f32 %v3434, %v3481
        %v3501 = vadd.f32 %v3435, %v3483
        %v3502 = vadd.f32 %v3436, %v3486
        %v3503 = vadd.f32 %v3437, %v3488
        %v3504 = vadd.f32 %v3438, %v3491
        %v3505 = vadd.f32 %v3439, %v3493
        %v3506 = vadd.f32 %v3440, %v3496
        %v3507 = vadd.f32 %v3441, %v3498
        %vm3508 = vcmask 523264
        %3509 = vst.msk [vmem:[%s253] sm:$0xff] %vm3508, %v3500
        %3510 = vst.msk [vmem:[%s253 + $0x8] sm:$0xff] %vm3508, %v3501
        %3511 = vst.msk [vmem:[%s253 + $0x10] sm:$0xff] %vm3508, %v3502
        %3512 = vst.msk [vmem:[%s253 + $0x18] sm:$0xff] %vm3508, %v3503
        %3513 = vst.msk [vmem:[%s253 + $0x20] sm:$0xff] %vm3508, %v3504
        %3514 = vst.msk [vmem:[%s253 + $0x28] sm:$0xff] %vm3508, %v3505
        %3515 = vst.msk [vmem:[%s253 + $0x30] sm:$0xff] %vm3508, %v3506
        %3516 = vst.msk [vmem:[%s253 + $0x38] sm:$0xff] %vm3508, %v3507
        %v3517 = vsel %vm3508, %v3500, 0.0
        %v3518 = vsel %vm3508, %v3501, 0.0
        %v3519 = vadd.f32 %v3517, %v3518
        %v3520 = vsel %vm3508, %v3502, 0.0
        %v3521 = vadd.f32 %v3519, %v3520
        %v3522 = vsel %vm3508, %v3503, 0.0
        %v3523 = vadd.f32 %v3521, %v3522
        %v3524 = vsel %vm3508, %v3504, 0.0
        %v3525 = vadd.f32 %v3523, %v3524
        %v3526 = vsel %vm3508, %v3505, 0.0
        %v3527 = vadd.f32 %v3525, %v3526
        %v3528 = vsel %vm3508, %v3506, 0.0
        %v3529 = vadd.f32 %v3527, %v3528
        %v3530 = vsel %vm3508, %v3507, 0.0
        %v3531 = vadd.f32 %v3529, %v3530
        %v3532 = vsel %vm3508, %v3531, 0.0
        %v3533 = vrot.slane %v3532, 4
        %v3534 = vadd.f32 %v3532, %v3533
        %v3535 = vrot.slane %v3534, 2
        %v3536 = vadd.f32 %v3534, %v3535
        %v3537 = vrot.slane %v3536, 1
        %v3538 = vadd.f32 %v3536, %v3537
        %v3539 = vmul.f32 %v3500, %v3500
        %v3540 = vmul.f32 %v3501, %v3501
        %v3541 = vmul.f32 %v3502, %v3502
        %v3542 = vmul.f32 %v3503, %v3503
        %v3543 = vmul.f32 %v3504, %v3504
        %v3544 = vmul.f32 %v3505, %v3505
        %v3545 = vmul.f32 %v3506, %v3506
        %v3546 = vmul.f32 %v3507, %v3507
        %v3547 = vsel %vm3508, %v3539, 0.0
        %v3548 = vsel %vm3508, %v3540, 0.0
        %v3549 = vadd.f32 %v3547, %v3548
        %v3550 = vsel %vm3508, %v3541, 0.0
        %v3551 = vadd.f32 %v3549, %v3550
        %v3552 = vsel %vm3508, %v3542, 0.0
        %v3553 = vadd.f32 %v3551, %v3552
        %v3554 = vsel %vm3508, %v3543, 0.0
        %v3555 = vadd.f32 %v3553, %v3554
        %v3556 = vsel %vm3508, %v3544, 0.0
        %v3557 = vadd.f32 %v3555, %v3556
        %v3558 = vsel %vm3508, %v3545, 0.0
        %v3559 = vadd.f32 %v3557, %v3558
        %v3560 = vsel %vm3508, %v3546, 0.0
        %v3561 = vadd.f32 %v3559, %v3560
        %v3562 = vsel %vm3508, %v3561, 0.0
        %v3563 = vrot.slane %v3562, 4
        %v3564 = vadd.f32 %v3562, %v3563
        %v3565 = vrot.slane %v3564, 2
        %v3566 = vadd.f32 %v3564, %v3565
        %v3567 = vrot.slane %v3566, 1
        %v3568 = vadd.f32 %v3566, %v3567
        %v3569 = vsel %vm314, %v3538, %v3568
        %vm3570 = vcmask 517120
        %3571 = vst.msk [vmem:[%s260] sm:$0x3] %vm3570, %v3569
        %s3572 = sand.u32 %s139, 1
        %s3573 = scalar_lea.sflag [#allocation3], %s3572
        %s3574 = sand.u32 %s139, 1
        %s3575 = smul.addr %s3574, 64
        %s3576 = scalar_lea.vmem [#allocation2], %s3575
        %s3577 = sand.u32 %s167, 1
        %s3578 = scalar_lea.sflag [#allocation5], %s3577
        %s3579 = sand.u32 %s167, 1
        %s3580 = smul.addr %s3579, 2
        %s3581 = scalar_lea.vmem [#allocation4], %s3580
        // Predicated region
        $region37: #{tpu_custom_call.1} parent=35 // pred_check
          %p3582 = pneg %p149
        $region38: #{tpu_custom_call.1} parent=35 // pred_check_branch
          %3584 = sbr.rel (%p3582) target = $region40
        $region39: #{tpu_custom_call.1} parent=35 // pred_region
          %3586 = vsyncadd %s3573, 0
          %s3587 = smul.addr %s27, 8
          %s3588 = sadd.s32 %s28, %s3587
          %s3589 = smul.addr %s3588, 8
          %s3590 = scalar_lea.hbm %s4, %s3589
          %s3591 = sshll.u32 %s3576, 4
          %s3592 = int_to_ptr.vmem [resolvable:$true] %s3591
          %s3593 = sshll.u32 %s3590, 4
          %s3594 = int_to_ptr.hbm [resolvable:$true] %s3593
          %3599 = dma.vmem_to_hbm [thread:$0]  %s3592, 1024, %s3594, %s3573, 128, 128, 8
        $region40: #{tpu_custom_call.1} parent=35 // pred_fallthru
          _
        // Predicated region
        $region41: #{tpu_custom_call.1} parent=35 // pred_check
          %p3600 = pneg %p177
        $region42: #{tpu_custom_call.1} parent=35 // pred_check_branch
          %3602 = sbr.rel (%p3600) target = $region44
        $region43: #{tpu_custom_call.1} parent=35 // pred_region
          %3604 = vsyncadd %s3578, 0
          %s3605 = sadd.s32 %s28, %s27
          %s3606 = smul.addr %s3605, 2
          %s3607 = scalar_lea.hbm %s5, %s3606
          %s3609 = sshll.u32 %s3581, 4
          %s3610 = int_to_ptr.vmem [resolvable:$true] %s3609
          %s3611 = sshll.u32 %s3607, 4
          %s3612 = int_to_ptr.hbm [resolvable:$true] %s3611
          %3614 = dma.vmem_to_hbm [thread:$0]  %s3610, 32, %s3612, %s3578
        $region44: #{tpu_custom_call.1} parent=35 // pred_fallthru
          _
      $region36: #{tpu_custom_call.1} parent=5 // pred_fallthru
        _
      %p3615 = scmp.le.s32.totalorder 2, %s18
      // Predicated region
      $region45: #{tpu_custom_call.1} parent=5 // pred_check
        %p3616 = pneg %p3615
      $region46: #{tpu_custom_call.1} parent=5 // pred_check_branch
        %3618 = sbr.rel (%p3616) target = $region48
      $region47: #{tpu_custom_call.1} parent=5 // pred_region
        %s3619 = ssub.s32 %s18, 2
        // Predicated region
        $region49: #{tpu_custom_call.1} parent=47 // pred_check
          %p3620 = pneg %p155
        $region50: #{tpu_custom_call.1} parent=47 // pred_check_branch
          %3622 = sbr.rel (%p3620) target = $region52
        $region51: #{tpu_custom_call.1} parent=47 // pred_region
          %s3623 = sand.u32 %s140, 1
          %s3624 = scalar_lea.sflag [#allocation3], %s3623
          %s3625 = sand.u32 %s140, 1
          %s3626 = smul.addr %s3625, 64
          %s3627 = scalar_lea.vmem [#allocation2], %s3626
          %3629 = dma.done %s3624, 1024
        $region52: #{tpu_custom_call.1} parent=47 // pred_fallthru
          _
        // Predicated region
        $region53: #{tpu_custom_call.1} parent=47 // pred_check
          %p3630 = pneg %p183
        $region54: #{tpu_custom_call.1} parent=47 // pred_check_branch
          %3632 = sbr.rel (%p3630) target = $region56
        $region55: #{tpu_custom_call.1} parent=47 // pred_region
          %s3633 = sand.u32 %s168, 1
          %s3634 = scalar_lea.sflag [#allocation5], %s3633
          %s3635 = sand.u32 %s168, 1
          %s3636 = smul.addr %s3635, 2
          %s3637 = scalar_lea.vmem [#allocation4], %s3636
          %3639 = dma.done %s3634, 32
        $region56: #{tpu_custom_call.1} parent=47 // pred_fallthru
          _
      $region48: #{tpu_custom_call.1} parent=5 // pred_fallthru
        _
    $region6: #{tpu_custom_call.1} parent=1 // loop_footer
      %s22 = sadd.s32 1, %s18
    $region7: #{tpu_custom_call.1} parent=1 // loop_footer_branch
      %17 = sbr.rel target = $region3
    $region8: #{tpu_custom_call.1} parent=1 // loop_exit
      _
    %3640 = vsyncpa [#allocation3], 1
    %s3641 = scalar_lea.sflag [#allocation3], 1
    %3642 = vsyncpa %s3641, 1
    %3643 = vsyncpa [#allocation5], 1
    %s3644 = scalar_lea.sflag [#allocation5], 1
    %3645 = vsyncpa %s3644, 1

</llo_original>
